<compile_context>
chip_gen: v6e
topology: v6e:2x2x1
jax: 0.10.0
libtpu: 0.0.40
codegen_flags: <defaults>
</compile_context>

<pallas_src>
import functools
import math

import jax
import jax.numpy as jnp
from jax import lax
from jax.experimental import pallas as pl
from jax.experimental.pallas import tpu as pltpu  # TPU backend (kept for clarity)

CURVATURE = -1.0
LN_EPS = 1e-5


# --------------------------------------------------------------------------
# In-kernel helpers (pure values, traced inside the fused kernel)
# --------------------------------------------------------------------------
def _hyper_map(x, k):
    """x -> logmap_0( expmap_{proj(x)}( x / (||x|| + 1e-7) ) ), rowwise.

    TODO(synk): expmap/logmap are not defined in the reference source file; we
    use geoopt-style Poincare-ball formulas.  The base point is projected onto
    the open ball first so the conformal factor 2/(1 + k||x||^2) stays
    well-defined when the Euclidean input has ||x|| >= 1/sqrt(-k).
    """
    sk = math.sqrt(-k)                                     # curvature k < 0

    x2 = jnp.sum(x * x, axis=-1, keepdims=True)            # single reduction
    xnorm = jnp.sqrt(x2)

    # tangent vector u = x / (||x|| + 1e-7)  (reference expression); its norm
    # follows from scalar algebra (no extra cross-lane reduce).
    u_norm = xnorm / (xnorm + 1e-7)

    # project base point onto the ball of radius (1 - 1e-5)/sqrt(-k)
    max_r = (1.0 - 1e-5) / sk
    proj = jnp.minimum(1.0, max_r / jnp.maximum(xnorm, 1e-15))
    xp = x * proj
    xp2 = x2 * proj * proj

    # expmap_{xp}(u) on the Poincare ball
    lam = 2.0 / jnp.maximum(1.0 + k * xp2, 1e-15)          # lambda_x^k
    t = 0.5 * lam * u_norm
    # tan_k(t) * u/||u||  ==  x * tanh(sk*t)/(sk*||x||)    (single divide)
    second = x * (jnp.tanh(sk * t) / (sk * jnp.maximum(xnorm, 1e-15)))

    # mobius_add(xp, second, k)
    y2 = jnp.sum(second * second, axis=-1, keepdims=True)
    xy = jnp.sum(xp * second, axis=-1, keepdims=True)
    num = (1.0 - 2.0 * k * xy - k * y2) * xp + (1.0 + k * xp2) * second
    den = jnp.maximum(1.0 - 2.0 * k * xy + (k * k) * xp2 * y2, 1e-15)
    h = num / den

    # logmap_0(h) = artanh(sqrt(-k)||h||) * h / (sqrt(-k)||h||)
    hnorm = jnp.maximum(jnp.sqrt(jnp.sum(h * h, axis=-1, keepdims=True)), 1e-15)
    z = jnp.clip(sk * hnorm, -1.0 + 1e-5, 1.0 - 1e-5)
    artanh = 0.5 * jnp.log((1.0 + z) / (1.0 - z))
    # fold (artanh/sk)/hnorm into a single reciprocal-based coefficient
    return h * (artanh * pl.reciprocal(sk * hnorm))


def _layer_norm(x, g, b):
    mu = jnp.mean(x, axis=-1, keepdims=True)
    xc = x - mu
    var = jnp.mean(xc * xc, axis=-1, keepdims=True)
    return xc * lax.rsqrt(var + LN_EPS) * g + b


# --------------------------------------------------------------------------
# Fused whole-decoder kernel: [hyper_map -> cross-attn -> self-attn -> FFN] x L
# --------------------------------------------------------------------------
def _decoder_kernel(q_ref, mem_ref, pos_ref, wsm_ref, vec_ref, w1_ref, b1_ref,
                    w2_ref, o_ref, *, nheads, num_layers, k):
    B, Q, D = q_ref.shape
    S = mem_ref.shape[1]
    H = nheads
    dh = D // H

    mem2d = mem_ref[...].reshape(B * S, D)
    pos2d = pos_ref[...].reshape(B * S, D)

    # ---- layer-invariant work, hoisted out of the layer loop ----
    # hyper_map of (memory + pos): identical input every layer -> compute once.
    k_euc = _hyper_map(mem2d + pos2d, k)

    # head-selector matrices E (D,H) / ET (H,D): E[d,h] = 1 iff d is in head h.
    # They let multi-head attention run as plain 2-D matmuls (no lane slices).
    d_i = lax.broadcasted_iota(jnp.int32, (D, H), 0)
    h_i = lax.broadcasted_iota(jnp.int32, (D, H), 1)
    E = jnp.where((d_i >= h_i * dh) & (d_i < (h_i + 1) * dh),
                  1.0, 0.0).astype(jnp.float32)
    h_j = lax.broadcasted_iota(jnp.int32, (H, D), 0)
    d_j = lax.broadcasted_iota(jnp.int32, (H, D), 1)
    ET = jnp.where((d_j >= h_j * dh) & (d_j < (h_j + 1) * dh),
                   1.0, 0.0).astype(jnp.float32)

    def mha(Qp2, Kp2, Vp3, Lq, Lk, wo, bo):
        """Multi-head attention (Q already carries the 1/sqrt(dh) scale).
        Per-head dot products are one broadcast-multiply + a (D,H) indicator
        matmul; the head-expanded probabilities come back via (H,D)."""
        Qp = Qp2.reshape(B, Lq, D)
        Kp = Kp2.reshape(B, Lk, D)
        prod = Qp[:, :, None, :] * Kp[:, None, :, :]          # (B,Lq,Lk,D)
        s = jnp.dot(prod.reshape(B * Lq * Lk, D), E,
                    preferred_element_type=jnp.float32).reshape(B, Lq, Lk, H)
        s = s - jnp.max(s, axis=2, keepdims=True)
        e = jnp.exp(s)
        p = e / jnp.sum(e, axis=2, keepdims=True)             # exact softmax
        pe = jnp.dot(p.reshape(B * Lq * Lk, H), ET,
                     preferred_element_type=jnp.float32).reshape(B, Lq, Lk, D)
        o = jnp.sum(pe * Vp3[:, None, :, :], axis=2)          # (B,Lq,D)
        return jnp.dot(o.reshape(B * Lq, D), wo,
                       preferred_element_type=jnp.float32) + bo

    x = q_ref[...].reshape(B * Q, D)                          # VMEM-resident carry

    for l in range(num_layers):                               # static unroll (tiny L)
        def W(c, l=l):                                        # (D,D) weight block
            return wsm_ref[l, c]

        def V(i, l=l):                                        # (1,D) bias / LN row
            return vec_ref[l, i:i + 1, :]

        # ---- HyperbolicCrossAttentionLayer.forward_post (query_pos=None) ----
        q_euc = _hyper_map(x, k)
        Qp = jnp.dot(q_euc, W(0), preferred_element_type=jnp.float32) + V(0)
        Kp = jnp.dot(k_euc, W(1), preferred_element_type=jnp.float32) + V(1)
        Vp = (jnp.dot(mem2d, W(2), preferred_element_type=jnp.float32)
              + V(2)).reshape(B, S, D)
        attn = mha(Qp, Kp, Vp, Q, S, W(3), V(3))
        x = _layer_norm(x + attn, V(4), V(5))

        # ---- SelfAttentionLayer.forward_post (query_pos=None) ----
        Qs = jnp.dot(x, W(4), preferred_element_type=jnp.float32) + V(6)
        Ks = jnp.dot(x, W(5), preferred_element_type=jnp.float32) + V(7)
        Vs = (jnp.dot(x, W(6), preferred_element_type=jnp.float32)
              + V(8)).reshape(B, Q, D)
        attn2 = mha(Qs, Ks, Vs, Q, Q, W(7), V(9))
        x = _layer_norm(x + attn2, V(10), V(11))

        # ---- FFNLayer.forward_post (relu, dropout=0) ----
        hdn = jnp.maximum(
            jnp.dot(x, w1_ref[l], preferred_element_type=jnp.float32) + b1_ref[l],
            0.0)
        y = jnp.dot(hdn, w2_ref[l], preferred_element_type=jnp.float32) + V(12)
        x = _layer_norm(x + y, V(13), V(14))

    # Single (B,Q,D) writeback for the whole decoder (D=32 < 128 lanes means a
    # masked store, but it now happens exactly once).
    o_ref[...] = x.reshape(B, Q, D)


def _full_spec(shape):
    nd = len(shape)
    return pl.BlockSpec(shape, lambda nd=nd: (0,) * nd)


def hyperbolic_refine_decoder(params, query, memory, mask_features, pos_embed,
                              nheads, curvature=CURVATURE):
    """Matches HyperbolicRefineDecoder.forward.  Inputs keep PyTorch's
    sequence-first (L,B,D) convention; transposed to (B,L,D) exactly once."""
    del mask_features                          # unused in the reference forward
    Qn, B, D = query.shape
    assert D % nheads == 0
    num_layers = params['wsm'].shape[0]

    q = jnp.transpose(query, (1, 0, 2)).astype(jnp.float32)      # (B, Q, D)
    mem = jnp.transpose(memory, (1, 0, 2)).astype(jnp.float32)   # (B, S, D)
    pos = jnp.transpose(pos_embed, (1, 0, 2)).astype(jnp.float32)

    args = (q, mem, pos, params['wsm'], params['vec'],
            params['w1'], params['b1'], params['w2'])

    out = pl.pallas_call(
        functools.partial(_decoder_kernel, nheads=nheads,
                          num_layers=num_layers, k=curvature),
        out_shape=jax.ShapeDtypeStruct((B, Qn, D), jnp.float32),
        in_specs=[_full_spec(a.shape) for a in args],
        out_specs=_full_spec((B, Qn, D)),
    )(*args)
    return jnp.transpose(out, (1, 0, 2))                         # (Q, B, D)


# --------------------------------------------------------------------------
# Deterministic synthetic parameters, pre-packed for the fused kernel:
#   wsm (L,8,D,D), vec (L,15,D), w1 (L,D,F), b1 (L,1,F), w2 (L,F,D).
# wsm slot order: [c_wq*scale, c_wk, c_wv, c_wo, s_wq*scale, s_wk, s_wv, s_wo]
# vec row order : [c_bq, c_bk, c_bv, c_bo, c_ln_g, c_ln_b,
#                  s_bq, s_bk, s_bv, s_bo, s_ln_g, s_ln_b,
#                  f_b2, f_ln_g, f_ln_b]
# The 1/sqrt(dh) attention scale is folded into the query projections
# (weights; query biases are zero here), so the kernel applies no per-score
# scaling.
# --------------------------------------------------------------------------
_NVEC = 15


def _xavier(key, shape):
    bound = math.sqrt(6.0 / (shape[0] + shape[1]))
    return jax.random.uniform(key, shape, jnp.float32, -bound, bound)


def init_params(key, D, F, num_layers, nheads):
    scale = (D // nheads) ** -0.5
    wsm, vec, w1, b1, w2 = [], [], [], [], []
    for _ in range(num_layers):
        key, *ks = jax.random.split(key, 11)
        c_wq, c_wk, c_wv, c_wo = (_xavier(ks[i], (D, D)) for i in range(4))
        s_wq, s_wk, s_wv, s_wo = (_xavier(ks[4 + i], (D, D)) for i in range(4))
        wsm.append(jnp.stack([c_wq * scale, c_wk, c_wv, c_wo,
                              s_wq * scale, s_wk, s_wv, s_wo]))
        v = jnp.zeros((_NVEC, D), jnp.float32)
        v = v.at[4].set(1.0).at[10].set(1.0).at[13].set(1.0)      # LN gammas
        vec.append(v)
        w1.append(_xavier(ks[8], (D, F)))
        b1.append(jnp.zeros((1, F), jnp.float32))
        w2.append(_xavier(ks[9], (F, D)))
    return dict(wsm=jnp.stack(wsm), vec=jnp.stack(vec),
                w1=jnp.stack(w1), b1=jnp.stack(b1), w2=jnp.stack(w2))


if __name__ == "__main__":
    hidden_dim, nheads, dim_ff = 32, 4, 1024      # dim_feedforward=1024 as in module
    num_refine_layers = 1
    Qn, S, B = 8, 16, 2

    key = jax.random.PRNGKey(0)
    k1, k2, k3, k4, kp = jax.random.split(key, 5)
    query = jax.random.normal(k1, (Qn, B, hidden_dim), jnp.float32)
    memory = jax.random.normal(k2, (S, B, hidden_dim), jnp.float32)
    mask_features = jax.random.normal(k3, (B, hidden_dim, 8, 8), jnp.float32)  # unused
    pos_embed = jax.random.normal(k4, (S, B, hidden_dim), jnp.float32)

    params = init_params(kp, hidden_dim, dim_ff, num_refine_layers, nheads)

    out = hyperbolic_refine_decoder(params, query, memory, mask_features,
                                    pos_embed, nheads)
    jax.block_until_ready(out)
    assert out.shape == (Qn, B, hidden_dim)
    assert bool(jnp.all(jnp.isfinite(out)))
    print("KERNEL_OK")
</pallas_src>

<mosaic_0001>
module attributes {stable_mosaic.version = 11 : i64} {
  func.func @_decoder_kernel(%arg0: memref<2x8x32xf32, #tpu.memory_space<vmem>>, %arg1: memref<2x16x32xf32, #tpu.memory_space<vmem>>, %arg2: memref<2x16x32xf32, #tpu.memory_space<vmem>>, %arg3: memref<1x8x32x32xf32, #tpu.memory_space<vmem>>, %arg4: memref<1x15x32xf32, #tpu.memory_space<vmem>>, %arg5: memref<1x32x1024xf32, #tpu.memory_space<vmem>>, %arg6: memref<1x1x1024xf32, #tpu.memory_space<vmem>>, %arg7: memref<1x1024x32xf32, #tpu.memory_space<vmem>>, %arg8: memref<2x8x32xf32, #tpu.memory_space<vmem>>) attributes {dimension_semantics = [], scalar_prefetch = 0 : i64, scratch_operands = 0 : i64, tpu.core_type = #tpu.core_type<tc>} {
    %c0 = arith.constant 0 : index
    %c0_0 = arith.constant 0 : index
    %c0_1 = arith.constant 0 : index
    %0 = vector.load %arg1[%c0, %c0_0, %c0_1] : memref<2x16x32xf32, #tpu.memory_space<vmem>>, vector<2x16x32xf32>
    %1 = vector.shape_cast %0 : vector<2x16x32xf32> to vector<32x32xf32>
    %c0_2 = arith.constant 0 : index
    %c0_3 = arith.constant 0 : index
    %c0_4 = arith.constant 0 : index
    %2 = vector.load %arg2[%c0_2, %c0_3, %c0_4] : memref<2x16x32xf32, #tpu.memory_space<vmem>>, vector<2x16x32xf32>
    %3 = vector.shape_cast %2 : vector<2x16x32xf32> to vector<32x32xf32>
    %4 = arith.addf %1, %3 : vector<32x32xf32>
    %5 = arith.mulf %4, %4 : vector<32x32xf32>
    %cst = arith.constant dense<0.000000e+00> : vector<32xf32>
    %6 = vector.multi_reduction <add>, %5, %cst [1] : vector<32x32xf32> to vector<32xf32>
    %7 = vector.shape_cast %6 : vector<32xf32> to vector<32x1xf32>
    %8 = math.sqrt %7 : vector<32x1xf32>
    %cst_5 = arith.constant 1.000000e-07 : f32
    %9 = vector.broadcast %cst_5 : f32 to vector<32x1xf32>
    %10 = arith.addf %8, %9 : vector<32x1xf32>
    %11 = arith.divf %8, %10 : vector<32x1xf32>
    %cst_6 = arith.constant 1.000000e-15 : f32
    %12 = vector.broadcast %cst_6 : f32 to vector<32x1xf32>
    %13 = arith.maximumf %8, %12 : vector<32x1xf32>
    %cst_7 = arith.constant 0.999989986 : f32
    %14 = vector.broadcast %cst_7 : f32 to vector<32x1xf32>
    %15 = arith.divf %14, %13 : vector<32x1xf32>
    %cst_8 = arith.constant 1.000000e+00 : f32
    %16 = vector.broadcast %cst_8 : f32 to vector<32x1xf32>
    %17 = arith.minimumf %16, %15 : vector<32x1xf32>
    %18 = vector.broadcast %17 : vector<32x1xf32> to vector<32x32xf32>
    %19 = arith.mulf %4, %18 : vector<32x32xf32>
    %20 = arith.mulf %7, %17 : vector<32x1xf32>
    %21 = arith.mulf %20, %17 : vector<32x1xf32>
    %cst_9 = arith.constant -1.000000e+00 : f32
    %22 = vector.broadcast %cst_9 : f32 to vector<32x1xf32>
    %23 = arith.mulf %22, %21 : vector<32x1xf32>
    %cst_10 = arith.constant 1.000000e+00 : f32
    %24 = vector.broadcast %cst_10 : f32 to vector<32x1xf32>
    %25 = arith.addf %24, %23 : vector<32x1xf32>
    %cst_11 = arith.constant 1.000000e-15 : f32
    %26 = vector.broadcast %cst_11 : f32 to vector<32x1xf32>
    %27 = arith.maximumf %25, %26 : vector<32x1xf32>
    %cst_12 = arith.constant 2.000000e+00 : f32
    %28 = vector.broadcast %cst_12 : f32 to vector<32x1xf32>
    %29 = arith.divf %28, %27 : vector<32x1xf32>
    %cst_13 = arith.constant 5.000000e-01 : f32
    %30 = vector.broadcast %cst_13 : f32 to vector<32x1xf32>
    %31 = arith.mulf %30, %29 : vector<32x1xf32>
    %32 = arith.mulf %31, %11 : vector<32x1xf32>
    %cst_14 = arith.constant 1.000000e+00 : f32
    %33 = vector.broadcast %cst_14 : f32 to vector<32x1xf32>
    %34 = arith.mulf %33, %32 : vector<32x1xf32>
    %35 = math.tanh %34 : vector<32x1xf32>
    %cst_15 = arith.constant 1.000000e-15 : f32
    %36 = vector.broadcast %cst_15 : f32 to vector<32x1xf32>
    %37 = arith.maximumf %8, %36 : vector<32x1xf32>
    %cst_16 = arith.constant 1.000000e+00 : f32
    %38 = vector.broadcast %cst_16 : f32 to vector<32x1xf32>
    %39 = arith.mulf %38, %37 : vector<32x1xf32>
    %40 = arith.divf %35, %39 : vector<32x1xf32>
    %41 = vector.broadcast %40 : vector<32x1xf32> to vector<32x32xf32>
    %42 = arith.mulf %4, %41 : vector<32x32xf32>
    %43 = arith.mulf %42, %42 : vector<32x32xf32>
    %cst_17 = arith.constant dense<0.000000e+00> : vector<32xf32>
    %44 = vector.multi_reduction <add>, %43, %cst_17 [1] : vector<32x32xf32> to vector<32xf32>
    %45 = vector.shape_cast %44 : vector<32xf32> to vector<32x1xf32>
    %46 = arith.mulf %19, %42 : vector<32x32xf32>
    %cst_18 = arith.constant dense<0.000000e+00> : vector<32xf32>
    %47 = vector.multi_reduction <add>, %46, %cst_18 [1] : vector<32x32xf32> to vector<32xf32>
    %48 = vector.shape_cast %47 : vector<32xf32> to vector<32x1xf32>
    %cst_19 = arith.constant -2.000000e+00 : f32
    %49 = vector.broadcast %cst_19 : f32 to vector<32x1xf32>
    %50 = arith.mulf %49, %48 : vector<32x1xf32>
    %cst_20 = arith.constant 1.000000e+00 : f32
    %51 = vector.broadcast %cst_20 : f32 to vector<32x1xf32>
    %52 = arith.subf %51, %50 : vector<32x1xf32>
    %cst_21 = arith.constant -1.000000e+00 : f32
    %53 = vector.broadcast %cst_21 : f32 to vector<32x1xf32>
    %54 = arith.mulf %53, %45 : vector<32x1xf32>
    %55 = arith.subf %52, %54 : vector<32x1xf32>
    %56 = vector.broadcast %55 : vector<32x1xf32> to vector<32x32xf32>
    %57 = arith.mulf %56, %19 : vector<32x32xf32>
    %cst_22 = arith.constant -1.000000e+00 : f32
    %58 = vector.broadcast %cst_22 : f32 to vector<32x1xf32>
    %59 = arith.mulf %58, %21 : vector<32x1xf32>
    %cst_23 = arith.constant 1.000000e+00 : f32
    %60 = vector.broadcast %cst_23 : f32 to vector<32x1xf32>
    %61 = arith.addf %60, %59 : vector<32x1xf32>
    %62 = vector.broadcast %61 : vector<32x1xf32> to vector<32x32xf32>
    %63 = arith.mulf %62, %42 : vector<32x32xf32>
    %64 = arith.addf %57, %63 : vector<32x32xf32>
    %cst_24 = arith.constant -2.000000e+00 : f32
    %65 = vector.broadcast %cst_24 : f32 to vector<32x1xf32>
    %66 = arith.mulf %65, %48 : vector<32x1xf32>
    %cst_25 = arith.constant 1.000000e+00 : f32
    %67 = vector.broadcast %cst_25 : f32 to vector<32x1xf32>
    %68 = arith.subf %67, %66 : vector<32x1xf32>
    %cst_26 = arith.constant 1.000000e+00 : f32
    %69 = vector.broadcast %cst_26 : f32 to vector<32x1xf32>
    %70 = arith.mulf %69, %21 : vector<32x1xf32>
    %71 = arith.mulf %70, %45 : vector<32x1xf32>
    %72 = arith.addf %68, %71 : vector<32x1xf32>
    %cst_27 = arith.constant 1.000000e-15 : f32
    %73 = vector.broadcast %cst_27 : f32 to vector<32x1xf32>
    %74 = arith.maximumf %72, %73 : vector<32x1xf32>
    %75 = vector.broadcast %74 : vector<32x1xf32> to vector<32x32xf32>
    %76 = arith.divf %64, %75 : vector<32x32xf32>
    %77 = arith.mulf %76, %76 : vector<32x32xf32>
    %cst_28 = arith.constant dense<0.000000e+00> : vector<32xf32>
    %78 = vector.multi_reduction <add>, %77, %cst_28 [1] : vector<32x32xf32> to vector<32xf32>
    %79 = vector.shape_cast %78 : vector<32xf32> to vector<32x1xf32>
    %80 = math.sqrt %79 : vector<32x1xf32>
    %cst_29 = arith.constant 1.000000e-15 : f32
    %81 = vector.broadcast %cst_29 : f32 to vector<32x1xf32>
    %82 = arith.maximumf %80, %81 : vector<32x1xf32>
    %cst_30 = arith.constant 1.000000e+00 : f32
    %83 = vector.broadcast %cst_30 : f32 to vector<32x1xf32>
    %84 = arith.mulf %83, %82 : vector<32x1xf32>
    %cst_31 = arith.constant -0.999989986 : f32
    %cst_32 = arith.constant 0.999989986 : f32
    %85 = vector.broadcast %cst_31 : f32 to vector<32x1xf32>
    %86 = arith.maximumf %85, %84 : vector<32x1xf32>
    %87 = vector.broadcast %cst_32 : f32 to vector<32x1xf32>
    %88 = arith.minimumf %87, %86 : vector<32x1xf32>
    %cst_33 = arith.constant 1.000000e+00 : f32
    %89 = vector.broadcast %cst_33 : f32 to vector<32x1xf32>
    %90 = arith.addf %89, %88 : vector<32x1xf32>
    %cst_34 = arith.constant 1.000000e+00 : f32
    %91 = vector.broadcast %cst_34 : f32 to vector<32x1xf32>
    %92 = arith.subf %91, %88 : vector<32x1xf32>
    %93 = arith.divf %90, %92 : vector<32x1xf32>
    %94 = math.log %93 : vector<32x1xf32>
    %cst_35 = arith.constant 5.000000e-01 : f32
    %95 = vector.broadcast %cst_35 : f32 to vector<32x1xf32>
    %96 = arith.mulf %95, %94 : vector<32x1xf32>
    %cst_36 = arith.constant 1.000000e+00 : f32
    %97 = vector.broadcast %cst_36 : f32 to vector<32x1xf32>
    %98 = arith.mulf %97, %82 : vector<32x1xf32>
    %99 = tpu.reciprocal %98 : vector<32x1xf32> -> vector<32x1xf32>
    %100 = arith.mulf %96, %99 : vector<32x1xf32>
    %101 = vector.broadcast %100 : vector<32x1xf32> to vector<32x32xf32>
    %102 = arith.mulf %76, %101 : vector<32x32xf32>
    %103 = tpu.iota {dimensions = array<i32: 0>} : vector<32x4xi32>
    %104 = tpu.iota {dimensions = array<i32: 1>} : vector<32x4xi32>
    %c8_i32 = arith.constant 8 : i32
    %105 = vector.broadcast %c8_i32 : i32 to vector<32x4xi32>
    %106 = arith.muli %104, %105 : vector<32x4xi32>
    %107 = arith.cmpi sge, %103, %106 : vector<32x4xi32>
    %c1_i32 = arith.constant 1 : i32
    %108 = vector.broadcast %c1_i32 : i32 to vector<32x4xi32>
    %109 = arith.addi %104, %108 : vector<32x4xi32>
    %c8_i32_37 = arith.constant 8 : i32
    %110 = vector.broadcast %c8_i32_37 : i32 to vector<32x4xi32>
    %111 = arith.muli %109, %110 : vector<32x4xi32>
    %112 = arith.cmpi slt, %103, %111 : vector<32x4xi32>
    %113 = arith.andi %107, %112 : vector<32x4xi1>
    %cst_38 = arith.constant 1.000000e+00 : f32
    %cst_39 = arith.constant 0.000000e+00 : f32
    %114 = vector.broadcast %cst_38 : f32 to vector<32x4xf32>
    %115 = vector.broadcast %cst_39 : f32 to vector<32x4xf32>
    %116 = arith.select %113, %114, %115 : vector<32x4xi1>, vector<32x4xf32>
    %117 = tpu.iota {dimensions = array<i32: 0>} : vector<4x32xi32>
    %118 = tpu.iota {dimensions = array<i32: 1>} : vector<4x32xi32>
    %c8_i32_40 = arith.constant 8 : i32
    %119 = vector.broadcast %c8_i32_40 : i32 to vector<4x32xi32>
    %120 = arith.muli %117, %119 : vector<4x32xi32>
    %121 = arith.cmpi sge, %118, %120 : vector<4x32xi32>
    %c1_i32_41 = arith.constant 1 : i32
    %122 = vector.broadcast %c1_i32_41 : i32 to vector<4x32xi32>
    %123 = arith.addi %117, %122 : vector<4x32xi32>
    %c8_i32_42 = arith.constant 8 : i32
    %124 = vector.broadcast %c8_i32_42 : i32 to vector<4x32xi32>
    %125 = arith.muli %123, %124 : vector<4x32xi32>
    %126 = arith.cmpi slt, %118, %125 : vector<4x32xi32>
    %127 = arith.andi %121, %126 : vector<4x32xi1>
    %cst_43 = arith.constant 1.000000e+00 : f32
    %cst_44 = arith.constant 0.000000e+00 : f32
    %128 = vector.broadcast %cst_43 : f32 to vector<4x32xf32>
    %129 = vector.broadcast %cst_44 : f32 to vector<4x32xf32>
    %130 = arith.select %127, %128, %129 : vector<4x32xi1>, vector<4x32xf32>
    %c0_45 = arith.constant 0 : index
    %c0_46 = arith.constant 0 : index
    %c0_47 = arith.constant 0 : index
    %131 = vector.load %arg0[%c0_45, %c0_46, %c0_47] : memref<2x8x32xf32, #tpu.memory_space<vmem>>, vector<2x8x32xf32>
    %132 = vector.shape_cast %131 : vector<2x8x32xf32> to vector<16x32xf32>
    %133 = arith.mulf %132, %132 : vector<16x32xf32>
    %cst_48 = arith.constant dense<0.000000e+00> : vector<16xf32>
    %134 = vector.multi_reduction <add>, %133, %cst_48 [1] : vector<16x32xf32> to vector<16xf32>
    %135 = vector.shape_cast %134 : vector<16xf32> to vector<16x1xf32>
    %136 = math.sqrt %135 : vector<16x1xf32>
    %cst_49 = arith.constant 1.000000e-07 : f32
    %137 = vector.broadcast %cst_49 : f32 to vector<16x1xf32>
    %138 = arith.addf %136, %137 : vector<16x1xf32>
    %139 = arith.divf %136, %138 : vector<16x1xf32>
    %cst_50 = arith.constant 1.000000e-15 : f32
    %140 = vector.broadcast %cst_50 : f32 to vector<16x1xf32>
    %141 = arith.maximumf %136, %140 : vector<16x1xf32>
    %cst_51 = arith.constant 0.999989986 : f32
    %142 = vector.broadcast %cst_51 : f32 to vector<16x1xf32>
    %143 = arith.divf %142, %141 : vector<16x1xf32>
    %cst_52 = arith.constant 1.000000e+00 : f32
    %144 = vector.broadcast %cst_52 : f32 to vector<16x1xf32>
    %145 = arith.minimumf %144, %143 : vector<16x1xf32>
    %146 = vector.broadcast %145 : vector<16x1xf32> to vector<16x32xf32>
    %147 = arith.mulf %132, %146 : vector<16x32xf32>
    %148 = arith.mulf %135, %145 : vector<16x1xf32>
    %149 = arith.mulf %148, %145 : vector<16x1xf32>
    %cst_53 = arith.constant -1.000000e+00 : f32
    %150 = vector.broadcast %cst_53 : f32 to vector<16x1xf32>
    %151 = arith.mulf %150, %149 : vector<16x1xf32>
    %cst_54 = arith.constant 1.000000e+00 : f32
    %152 = vector.broadcast %cst_54 : f32 to vector<16x1xf32>
    %153 = arith.addf %152, %151 : vector<16x1xf32>
    %cst_55 = arith.constant 1.000000e-15 : f32
    %154 = vector.broadcast %cst_55 : f32 to vector<16x1xf32>
    %155 = arith.maximumf %153, %154 : vector<16x1xf32>
    %cst_56 = arith.constant 2.000000e+00 : f32
    %156 = vector.broadcast %cst_56 : f32 to vector<16x1xf32>
    %157 = arith.divf %156, %155 : vector<16x1xf32>
    %cst_57 = arith.constant 5.000000e-01 : f32
    %158 = vector.broadcast %cst_57 : f32 to vector<16x1xf32>
    %159 = arith.mulf %158, %157 : vector<16x1xf32>
    %160 = arith.mulf %159, %139 : vector<16x1xf32>
    %cst_58 = arith.constant 1.000000e+00 : f32
    %161 = vector.broadcast %cst_58 : f32 to vector<16x1xf32>
    %162 = arith.mulf %161, %160 : vector<16x1xf32>
    %163 = math.tanh %162 : vector<16x1xf32>
    %cst_59 = arith.constant 1.000000e-15 : f32
    %164 = vector.broadcast %cst_59 : f32 to vector<16x1xf32>
    %165 = arith.maximumf %136, %164 : vector<16x1xf32>
    %cst_60 = arith.constant 1.000000e+00 : f32
    %166 = vector.broadcast %cst_60 : f32 to vector<16x1xf32>
    %167 = arith.mulf %166, %165 : vector<16x1xf32>
    %168 = arith.divf %163, %167 : vector<16x1xf32>
    %169 = vector.broadcast %168 : vector<16x1xf32> to vector<16x32xf32>
    %170 = arith.mulf %132, %169 : vector<16x32xf32>
    %171 = arith.mulf %170, %170 : vector<16x32xf32>
    %cst_61 = arith.constant dense<0.000000e+00> : vector<16xf32>
    %172 = vector.multi_reduction <add>, %171, %cst_61 [1] : vector<16x32xf32> to vector<16xf32>
    %173 = vector.shape_cast %172 : vector<16xf32> to vector<16x1xf32>
    %174 = arith.mulf %147, %170 : vector<16x32xf32>
    %cst_62 = arith.constant dense<0.000000e+00> : vector<16xf32>
    %175 = vector.multi_reduction <add>, %174, %cst_62 [1] : vector<16x32xf32> to vector<16xf32>
    %176 = vector.shape_cast %175 : vector<16xf32> to vector<16x1xf32>
    %cst_63 = arith.constant -2.000000e+00 : f32
    %177 = vector.broadcast %cst_63 : f32 to vector<16x1xf32>
    %178 = arith.mulf %177, %176 : vector<16x1xf32>
    %cst_64 = arith.constant 1.000000e+00 : f32
    %179 = vector.broadcast %cst_64 : f32 to vector<16x1xf32>
    %180 = arith.subf %179, %178 : vector<16x1xf32>
    %cst_65 = arith.constant -1.000000e+00 : f32
    %181 = vector.broadcast %cst_65 : f32 to vector<16x1xf32>
    %182 = arith.mulf %181, %173 : vector<16x1xf32>
    %183 = arith.subf %180, %182 : vector<16x1xf32>
    %184 = vector.broadcast %183 : vector<16x1xf32> to vector<16x32xf32>
    %185 = arith.mulf %184, %147 : vector<16x32xf32>
    %cst_66 = arith.constant -1.000000e+00 : f32
    %186 = vector.broadcast %cst_66 : f32 to vector<16x1xf32>
    %187 = arith.mulf %186, %149 : vector<16x1xf32>
    %cst_67 = arith.constant 1.000000e+00 : f32
    %188 = vector.broadcast %cst_67 : f32 to vector<16x1xf32>
    %189 = arith.addf %188, %187 : vector<16x1xf32>
    %190 = vector.broadcast %189 : vector<16x1xf32> to vector<16x32xf32>
    %191 = arith.mulf %190, %170 : vector<16x32xf32>
    %192 = arith.addf %185, %191 : vector<16x32xf32>
    %cst_68 = arith.constant -2.000000e+00 : f32
    %193 = vector.broadcast %cst_68 : f32 to vector<16x1xf32>
    %194 = arith.mulf %193, %176 : vector<16x1xf32>
    %cst_69 = arith.constant 1.000000e+00 : f32
    %195 = vector.broadcast %cst_69 : f32 to vector<16x1xf32>
    %196 = arith.subf %195, %194 : vector<16x1xf32>
    %cst_70 = arith.constant 1.000000e+00 : f32
    %197 = vector.broadcast %cst_70 : f32 to vector<16x1xf32>
    %198 = arith.mulf %197, %149 : vector<16x1xf32>
    %199 = arith.mulf %198, %173 : vector<16x1xf32>
    %200 = arith.addf %196, %199 : vector<16x1xf32>
    %cst_71 = arith.constant 1.000000e-15 : f32
    %201 = vector.broadcast %cst_71 : f32 to vector<16x1xf32>
    %202 = arith.maximumf %200, %201 : vector<16x1xf32>
    %203 = vector.broadcast %202 : vector<16x1xf32> to vector<16x32xf32>
    %204 = arith.divf %192, %203 : vector<16x32xf32>
    %205 = arith.mulf %204, %204 : vector<16x32xf32>
    %cst_72 = arith.constant dense<0.000000e+00> : vector<16xf32>
    %206 = vector.multi_reduction <add>, %205, %cst_72 [1] : vector<16x32xf32> to vector<16xf32>
    %207 = vector.shape_cast %206 : vector<16xf32> to vector<16x1xf32>
    %208 = math.sqrt %207 : vector<16x1xf32>
    %cst_73 = arith.constant 1.000000e-15 : f32
    %209 = vector.broadcast %cst_73 : f32 to vector<16x1xf32>
    %210 = arith.maximumf %208, %209 : vector<16x1xf32>
    %cst_74 = arith.constant 1.000000e+00 : f32
    %211 = vector.broadcast %cst_74 : f32 to vector<16x1xf32>
    %212 = arith.mulf %211, %210 : vector<16x1xf32>
    %cst_75 = arith.constant -0.999989986 : f32
    %cst_76 = arith.constant 0.999989986 : f32
    %213 = vector.broadcast %cst_75 : f32 to vector<16x1xf32>
    %214 = arith.maximumf %213, %212 : vector<16x1xf32>
    %215 = vector.broadcast %cst_76 : f32 to vector<16x1xf32>
    %216 = arith.minimumf %215, %214 : vector<16x1xf32>
    %cst_77 = arith.constant 1.000000e+00 : f32
    %217 = vector.broadcast %cst_77 : f32 to vector<16x1xf32>
    %218 = arith.addf %217, %216 : vector<16x1xf32>
    %cst_78 = arith.constant 1.000000e+00 : f32
    %219 = vector.broadcast %cst_78 : f32 to vector<16x1xf32>
    %220 = arith.subf %219, %216 : vector<16x1xf32>
    %221 = arith.divf %218, %220 : vector<16x1xf32>
    %222 = math.log %221 : vector<16x1xf32>
    %cst_79 = arith.constant 5.000000e-01 : f32
    %223 = vector.broadcast %cst_79 : f32 to vector<16x1xf32>
    %224 = arith.mulf %223, %222 : vector<16x1xf32>
    %cst_80 = arith.constant 1.000000e+00 : f32
    %225 = vector.broadcast %cst_80 : f32 to vector<16x1xf32>
    %226 = arith.mulf %225, %210 : vector<16x1xf32>
    %227 = tpu.reciprocal %226 : vector<16x1xf32> -> vector<16x1xf32>
    %228 = arith.mulf %224, %227 : vector<16x1xf32>
    %229 = vector.broadcast %228 : vector<16x1xf32> to vector<16x32xf32>
    %230 = arith.mulf %204, %229 : vector<16x32xf32>
    %c0_81 = arith.constant 0 : index
    %c0_82 = arith.constant 0 : index
    %c0_83 = arith.constant 0 : index
    %c0_84 = arith.constant 0 : index
    %231 = vector.load %arg3[%c0_81, %c0_82, %c0_83, %c0_84] : memref<1x8x32x32xf32, #tpu.memory_space<vmem>>, vector<1x1x32x32xf32>
    %232 = vector.shape_cast %231 : vector<1x1x32x32xf32> to vector<32x32xf32>
    %cst_85 = arith.constant dense<0.000000e+00> : vector<16x32xf32>
    %233 = tpu.matmul %230, %232, %cst_85 {dimension_numbers = #tpu.dot_dimension_numbers<[1], [0], [0], [1], [0, 0, 1, 1], [], []>} : vector<16x32xf32>, vector<32x32xf32>, vector<16x32xf32> -> vector<16x32xf32>
    %c0_86 = arith.constant 0 : index
    %c0_87 = arith.constant 0 : index
    %c0_88 = arith.constant 0 : index
    %234 = vector.load %arg4[%c0_86, %c0_87, %c0_88] : memref<1x15x32xf32, #tpu.memory_space<vmem>>, vector<1x1x32xf32>
    %235 = vector.shape_cast %234 : vector<1x1x32xf32> to vector<1x32xf32>
    %236 = vector.broadcast %235 : vector<1x32xf32> to vector<16x32xf32>
    %237 = arith.addf %233, %236 : vector<16x32xf32>
    %c0_89 = arith.constant 0 : index
    %c1 = arith.constant 1 : index
    %c0_90 = arith.constant 0 : index
    %c0_91 = arith.constant 0 : index
    %238 = vector.load %arg3[%c0_89, %c1, %c0_90, %c0_91] : memref<1x8x32x32xf32, #tpu.memory_space<vmem>>, vector<1x1x32x32xf32>
    %239 = vector.shape_cast %238 : vector<1x1x32x32xf32> to vector<32x32xf32>
    %cst_92 = arith.constant dense<0.000000e+00> : vector<32x32xf32>
    %240 = tpu.matmul %102, %239, %cst_92 {dimension_numbers = #tpu.dot_dimension_numbers<[1], [0], [0], [1], [0, 0, 1, 1], [], []>} : vector<32x32xf32>, vector<32x32xf32>, vector<32x32xf32> -> vector<32x32xf32>
    %c0_93 = arith.constant 0 : index
    %c1_94 = arith.constant 1 : index
    %c0_95 = arith.constant 0 : index
    %241 = vector.load %arg4[%c0_93, %c1_94, %c0_95] : memref<1x15x32xf32, #tpu.memory_space<vmem>>, vector<1x1x32xf32>
    %242 = vector.shape_cast %241 : vector<1x1x32xf32> to vector<1x32xf32>
    %243 = vector.broadcast %242 : vector<1x32xf32> to vector<32x32xf32>
    %244 = arith.addf %240, %243 : vector<32x32xf32>
    %c0_96 = arith.constant 0 : index
    %c2 = arith.constant 2 : index
    %c0_97 = arith.constant 0 : index
    %c0_98 = arith.constant 0 : index
    %245 = vector.load %arg3[%c0_96, %c2, %c0_97, %c0_98] : memref<1x8x32x32xf32, #tpu.memory_space<vmem>>, vector<1x1x32x32xf32>
    %246 = vector.shape_cast %245 : vector<1x1x32x32xf32> to vector<32x32xf32>
    %cst_99 = arith.constant dense<0.000000e+00> : vector<32x32xf32>
    %247 = tpu.matmul %1, %246, %cst_99 {dimension_numbers = #tpu.dot_dimension_numbers<[1], [0], [0], [1], [0, 0, 1, 1], [], []>} : vector<32x32xf32>, vector<32x32xf32>, vector<32x32xf32> -> vector<32x32xf32>
    %c0_100 = arith.constant 0 : index
    %c2_101 = arith.constant 2 : index
    %c0_102 = arith.constant 0 : index
    %248 = vector.load %arg4[%c0_100, %c2_101, %c0_102] : memref<1x15x32xf32, #tpu.memory_space<vmem>>, vector<1x1x32xf32>
    %249 = vector.shape_cast %248 : vector<1x1x32xf32> to vector<1x32xf32>
    %250 = vector.broadcast %249 : vector<1x32xf32> to vector<32x32xf32>
    %251 = arith.addf %247, %250 : vector<32x32xf32>
    %252 = vector.shape_cast %251 : vector<32x32xf32> to vector<2x16x32xf32>
    %c0_103 = arith.constant 0 : index
    %c3 = arith.constant 3 : index
    %c0_104 = arith.constant 0 : index
    %c0_105 = arith.constant 0 : index
    %253 = vector.load %arg3[%c0_103, %c3, %c0_104, %c0_105] : memref<1x8x32x32xf32, #tpu.memory_space<vmem>>, vector<1x1x32x32xf32>
    %254 = vector.shape_cast %253 : vector<1x1x32x32xf32> to vector<32x32xf32>
    %c0_106 = arith.constant 0 : index
    %c3_107 = arith.constant 3 : index
    %c0_108 = arith.constant 0 : index
    %255 = vector.load %arg4[%c0_106, %c3_107, %c0_108] : memref<1x15x32xf32, #tpu.memory_space<vmem>>, vector<1x1x32xf32>
    %256 = vector.shape_cast %255 : vector<1x1x32xf32> to vector<1x32xf32>
    %257 = vector.shape_cast %237 : vector<16x32xf32> to vector<2x8x32xf32>
    %258 = vector.shape_cast %244 : vector<32x32xf32> to vector<2x16x32xf32>
    %259 = vector.shape_cast %257 : vector<2x8x32xf32> to vector<2x8x1x32xf32>
    %260 = vector.shape_cast %258 : vector<2x16x32xf32> to vector<2x1x16x32xf32>
    %261 = vector.broadcast %259 : vector<2x8x1x32xf32> to vector<2x8x16x32xf32>
    %262 = vector.broadcast %260 : vector<2x1x16x32xf32> to vector<2x8x16x32xf32>
    %263 = arith.mulf %261, %262 : vector<2x8x16x32xf32>
    %264 = vector.shape_cast %263 : vector<2x8x16x32xf32> to vector<256x32xf32>
    %cst_109 = arith.constant dense<0.000000e+00> : vector<256x4xf32>
    %265 = tpu.matmul %264, %116, %cst_109 {dimension_numbers = #tpu.dot_dimension_numbers<[1], [0], [0], [1], [0, 0, 1, 1], [], []>} : vector<256x32xf32>, vector<32x4xf32>, vector<256x4xf32> -> vector<256x4xf32>
    %266 = vector.shape_cast %265 : vector<256x4xf32> to vector<2x8x16x4xf32>
    %cst_110 = arith.constant dense<0xFF800000> : vector<2x8x4xf32>
    %267 = vector.multi_reduction <maximumf>, %266, %cst_110 [2] : vector<2x8x16x4xf32> to vector<2x8x4xf32>
    %268 = vector.shape_cast %267 : vector<2x8x4xf32> to vector<2x8x1x4xf32>
    %269 = vector.broadcast %268 : vector<2x8x1x4xf32> to vector<2x8x16x4xf32>
    %270 = arith.subf %266, %269 : vector<2x8x16x4xf32>
    %271 = math.exp %270 : vector<2x8x16x4xf32>
    %cst_111 = arith.constant dense<0.000000e+00> : vector<2x8x4xf32>
    %272 = vector.multi_reduction <add>, %271, %cst_111 [2] : vector<2x8x16x4xf32> to vector<2x8x4xf32>
    %273 = vector.shape_cast %272 : vector<2x8x4xf32> to vector<2x8x1x4xf32>
    %274 = vector.broadcast %273 : vector<2x8x1x4xf32> to vector<2x8x16x4xf32>
    %275 = arith.divf %271, %274 : vector<2x8x16x4xf32>
    %276 = vector.shape_cast %275 : vector<2x8x16x4xf32> to vector<256x4xf32>
    %cst_112 = arith.constant dense<0.000000e+00> : vector<256x32xf32>
    %277 = tpu.matmul %276, %130, %cst_112 {dimension_numbers = #tpu.dot_dimension_numbers<[1], [0], [0], [1], [0, 0, 1, 1], [], []>} : vector<256x4xf32>, vector<4x32xf32>, vector<256x32xf32> -> vector<256x32xf32>
    %278 = vector.shape_cast %277 : vector<256x32xf32> to vector<2x8x16x32xf32>
    %279 = vector.shape_cast %252 : vector<2x16x32xf32> to vector<2x1x16x32xf32>
    %280 = vector.broadcast %279 : vector<2x1x16x32xf32> to vector<2x8x16x32xf32>
    %281 = arith.mulf %278, %280 : vector<2x8x16x32xf32>
    %cst_113 = arith.constant dense<0.000000e+00> : vector<2x8x32xf32>
    %282 = vector.multi_reduction <add>, %281, %cst_113 [2] : vector<2x8x16x32xf32> to vector<2x8x32xf32>
    %283 = vector.shape_cast %282 : vector<2x8x32xf32> to vector<16x32xf32>
    %cst_114 = arith.constant dense<0.000000e+00> : vector<16x32xf32>
    %284 = tpu.matmul %283, %254, %cst_114 {dimension_numbers = #tpu.dot_dimension_numbers<[1], [0], [0], [1], [0, 0, 1, 1], [], []>} : vector<16x32xf32>, vector<32x32xf32>, vector<16x32xf32> -> vector<16x32xf32>
    %285 = vector.broadcast %256 : vector<1x32xf32> to vector<16x32xf32>
    %286 = arith.addf %284, %285 : vector<16x32xf32>
    %287 = arith.addf %132, %286 : vector<16x32xf32>
    %c0_115 = arith.constant 0 : index
    %c4 = arith.constant 4 : index
    %c0_116 = arith.constant 0 : index
    %288 = vector.load %arg4[%c0_115, %c4, %c0_116] : memref<1x15x32xf32, #tpu.memory_space<vmem>>, vector<1x1x32xf32>
    %289 = vector.shape_cast %288 : vector<1x1x32xf32> to vector<1x32xf32>
    %c0_117 = arith.constant 0 : index
    %c5 = arith.constant 5 : index
    %c0_118 = arith.constant 0 : index
    %290 = vector.load %arg4[%c0_117, %c5, %c0_118] : memref<1x15x32xf32, #tpu.memory_space<vmem>>, vector<1x1x32xf32>
    %291 = vector.shape_cast %290 : vector<1x1x32xf32> to vector<1x32xf32>
    %cst_119 = arith.constant dense<0.000000e+00> : vector<16xf32>
    %292 = vector.multi_reduction <add>, %287, %cst_119 [1] : vector<16x32xf32> to vector<16xf32>
    %293 = vector.shape_cast %292 : vector<16xf32> to vector<16x1xf32>
    %cst_120 = arith.constant 3.200000e+01 : f32
    %294 = vector.broadcast %cst_120 : f32 to vector<16x1xf32>
    %295 = arith.divf %293, %294 : vector<16x1xf32>
    %296 = vector.broadcast %295 : vector<16x1xf32> to vector<16x32xf32>
    %297 = arith.subf %287, %296 : vector<16x32xf32>
    %298 = arith.mulf %297, %297 : vector<16x32xf32>
    %cst_121 = arith.constant dense<0.000000e+00> : vector<16xf32>
    %299 = vector.multi_reduction <add>, %298, %cst_121 [1] : vector<16x32xf32> to vector<16xf32>
    %300 = vector.shape_cast %299 : vector<16xf32> to vector<16x1xf32>
    %cst_122 = arith.constant 3.200000e+01 : f32
    %301 = vector.broadcast %cst_122 : f32 to vector<16x1xf32>
    %302 = arith.divf %300, %301 : vector<16x1xf32>
    %cst_123 = arith.constant 9.99999974E-6 : f32
    %303 = vector.broadcast %cst_123 : f32 to vector<16x1xf32>
    %304 = arith.addf %302, %303 : vector<16x1xf32>
    %305 = math.rsqrt %304 : vector<16x1xf32>
    %306 = vector.broadcast %305 : vector<16x1xf32> to vector<16x32xf32>
    %307 = arith.mulf %297, %306 : vector<16x32xf32>
    %308 = vector.broadcast %289 : vector<1x32xf32> to vector<16x32xf32>
    %309 = arith.mulf %307, %308 : vector<16x32xf32>
    %310 = vector.broadcast %291 : vector<1x32xf32> to vector<16x32xf32>
    %311 = arith.addf %309, %310 : vector<16x32xf32>
    %c0_124 = arith.constant 0 : index
    %c4_125 = arith.constant 4 : index
    %c0_126 = arith.constant 0 : index
    %c0_127 = arith.constant 0 : index
    %312 = vector.load %arg3[%c0_124, %c4_125, %c0_126, %c0_127] : memref<1x8x32x32xf32, #tpu.memory_space<vmem>>, vector<1x1x32x32xf32>
    %313 = vector.shape_cast %312 : vector<1x1x32x32xf32> to vector<32x32xf32>
    %cst_128 = arith.constant dense<0.000000e+00> : vector<16x32xf32>
    %314 = tpu.matmul %311, %313, %cst_128 {dimension_numbers = #tpu.dot_dimension_numbers<[1], [0], [0], [1], [0, 0, 1, 1], [], []>} : vector<16x32xf32>, vector<32x32xf32>, vector<16x32xf32> -> vector<16x32xf32>
    %c0_129 = arith.constant 0 : index
    %c6 = arith.constant 6 : index
    %c0_130 = arith.constant 0 : index
    %315 = vector.load %arg4[%c0_129, %c6, %c0_130] : memref<1x15x32xf32, #tpu.memory_space<vmem>>, vector<1x1x32xf32>
    %316 = vector.shape_cast %315 : vector<1x1x32xf32> to vector<1x32xf32>
    %317 = vector.broadcast %316 : vector<1x32xf32> to vector<16x32xf32>
    %318 = arith.addf %314, %317 : vector<16x32xf32>
    %c0_131 = arith.constant 0 : index
    %c5_132 = arith.constant 5 : index
    %c0_133 = arith.constant 0 : index
    %c0_134 = arith.constant 0 : index
    %319 = vector.load %arg3[%c0_131, %c5_132, %c0_133, %c0_134] : memref<1x8x32x32xf32, #tpu.memory_space<vmem>>, vector<1x1x32x32xf32>
    %320 = vector.shape_cast %319 : vector<1x1x32x32xf32> to vector<32x32xf32>
    %cst_135 = arith.constant dense<0.000000e+00> : vector<16x32xf32>
    %321 = tpu.matmul %311, %320, %cst_135 {dimension_numbers = #tpu.dot_dimension_numbers<[1], [0], [0], [1], [0, 0, 1, 1], [], []>} : vector<16x32xf32>, vector<32x32xf32>, vector<16x32xf32> -> vector<16x32xf32>
    %c0_136 = arith.constant 0 : index
    %c7 = arith.constant 7 : index
    %c0_137 = arith.constant 0 : index
    %322 = vector.load %arg4[%c0_136, %c7, %c0_137] : memref<1x15x32xf32, #tpu.memory_space<vmem>>, vector<1x1x32xf32>
    %323 = vector.shape_cast %322 : vector<1x1x32xf32> to vector<1x32xf32>
    %324 = vector.broadcast %323 : vector<1x32xf32> to vector<16x32xf32>
    %325 = arith.addf %321, %324 : vector<16x32xf32>
    %c0_138 = arith.constant 0 : index
    %c6_139 = arith.constant 6 : index
    %c0_140 = arith.constant 0 : index
    %c0_141 = arith.constant 0 : index
    %326 = vector.load %arg3[%c0_138, %c6_139, %c0_140, %c0_141] : memref<1x8x32x32xf32, #tpu.memory_space<vmem>>, vector<1x1x32x32xf32>
    %327 = vector.shape_cast %326 : vector<1x1x32x32xf32> to vector<32x32xf32>
    %cst_142 = arith.constant dense<0.000000e+00> : vector<16x32xf32>
    %328 = tpu.matmul %311, %327, %cst_142 {dimension_numbers = #tpu.dot_dimension_numbers<[1], [0], [0], [1], [0, 0, 1, 1], [], []>} : vector<16x32xf32>, vector<32x32xf32>, vector<16x32xf32> -> vector<16x32xf32>
    %c0_143 = arith.constant 0 : index
    %c8 = arith.constant 8 : index
    %c0_144 = arith.constant 0 : index
    %329 = vector.load %arg4[%c0_143, %c8, %c0_144] : memref<1x15x32xf32, #tpu.memory_space<vmem>>, vector<1x1x32xf32>
    %330 = vector.shape_cast %329 : vector<1x1x32xf32> to vector<1x32xf32>
    %331 = vector.broadcast %330 : vector<1x32xf32> to vector<16x32xf32>
    %332 = arith.addf %328, %331 : vector<16x32xf32>
    %333 = vector.shape_cast %332 : vector<16x32xf32> to vector<2x8x32xf32>
    %c0_145 = arith.constant 0 : index
    %c7_146 = arith.constant 7 : index
    %c0_147 = arith.constant 0 : index
    %c0_148 = arith.constant 0 : index
    %334 = vector.load %arg3[%c0_145, %c7_146, %c0_147, %c0_148] : memref<1x8x32x32xf32, #tpu.memory_space<vmem>>, vector<1x1x32x32xf32>
    %335 = vector.shape_cast %334 : vector<1x1x32x32xf32> to vector<32x32xf32>
    %c0_149 = arith.constant 0 : index
    %c9 = arith.constant 9 : index
    %c0_150 = arith.constant 0 : index
    %336 = vector.load %arg4[%c0_149, %c9, %c0_150] : memref<1x15x32xf32, #tpu.memory_space<vmem>>, vector<1x1x32xf32>
    %337 = vector.shape_cast %336 : vector<1x1x32xf32> to vector<1x32xf32>
    %338 = vector.shape_cast %318 : vector<16x32xf32> to vector<2x8x32xf32>
    %339 = vector.shape_cast %325 : vector<16x32xf32> to vector<2x8x32xf32>
    %340 = vector.shape_cast %338 : vector<2x8x32xf32> to vector<2x8x1x32xf32>
    %341 = vector.shape_cast %339 : vector<2x8x32xf32> to vector<2x1x8x32xf32>
    %342 = vector.broadcast %340 : vector<2x8x1x32xf32> to vector<2x8x8x32xf32>
    %343 = vector.broadcast %341 : vector<2x1x8x32xf32> to vector<2x8x8x32xf32>
    %344 = arith.mulf %342, %343 : vector<2x8x8x32xf32>
    %345 = vector.shape_cast %344 : vector<2x8x8x32xf32> to vector<128x32xf32>
    %cst_151 = arith.constant dense<0.000000e+00> : vector<128x4xf32>
    %346 = tpu.matmul %345, %116, %cst_151 {dimension_numbers = #tpu.dot_dimension_numbers<[1], [0], [0], [1], [0, 0, 1, 1], [], []>} : vector<128x32xf32>, vector<32x4xf32>, vector<128x4xf32> -> vector<128x4xf32>
    %347 = vector.shape_cast %346 : vector<128x4xf32> to vector<2x8x8x4xf32>
    %cst_152 = arith.constant dense<0xFF800000> : vector<2x8x4xf32>
    %348 = vector.multi_reduction <maximumf>, %347, %cst_152 [2] : vector<2x8x8x4xf32> to vector<2x8x4xf32>
    %349 = vector.shape_cast %348 : vector<2x8x4xf32> to vector<2x8x1x4xf32>
    %350 = vector.broadcast %349 : vector<2x8x1x4xf32> to vector<2x8x8x4xf32>
    %351 = arith.subf %347, %350 : vector<2x8x8x4xf32>
    %352 = math.exp %351 : vector<2x8x8x4xf32>
    %cst_153 = arith.constant dense<0.000000e+00> : vector<2x8x4xf32>
    %353 = vector.multi_reduction <add>, %352, %cst_153 [2] : vector<2x8x8x4xf32> to vector<2x8x4xf32>
    %354 = vector.shape_cast %353 : vector<2x8x4xf32> to vector<2x8x1x4xf32>
    %355 = vector.broadcast %354 : vector<2x8x1x4xf32> to vector<2x8x8x4xf32>
    %356 = arith.divf %352, %355 : vector<2x8x8x4xf32>
    %357 = vector.shape_cast %356 : vector<2x8x8x4xf32> to vector<128x4xf32>
    %cst_154 = arith.constant dense<0.000000e+00> : vector<128x32xf32>
    %358 = tpu.matmul %357, %130, %cst_154 {dimension_numbers = #tpu.dot_dimension_numbers<[1], [0], [0], [1], [0, 0, 1, 1], [], []>} : vector<128x4xf32>, vector<4x32xf32>, vector<128x32xf32> -> vector<128x32xf32>
    %359 = vector.shape_cast %358 : vector<128x32xf32> to vector<2x8x8x32xf32>
    %360 = vector.shape_cast %333 : vector<2x8x32xf32> to vector<2x1x8x32xf32>
    %361 = vector.broadcast %360 : vector<2x1x8x32xf32> to vector<2x8x8x32xf32>
    %362 = arith.mulf %359, %361 : vector<2x8x8x32xf32>
    %cst_155 = arith.constant dense<0.000000e+00> : vector<2x8x32xf32>
    %363 = vector.multi_reduction <add>, %362, %cst_155 [2] : vector<2x8x8x32xf32> to vector<2x8x32xf32>
    %364 = vector.shape_cast %363 : vector<2x8x32xf32> to vector<16x32xf32>
    %cst_156 = arith.constant dense<0.000000e+00> : vector<16x32xf32>
    %365 = tpu.matmul %364, %335, %cst_156 {dimension_numbers = #tpu.dot_dimension_numbers<[1], [0], [0], [1], [0, 0, 1, 1], [], []>} : vector<16x32xf32>, vector<32x32xf32>, vector<16x32xf32> -> vector<16x32xf32>
    %366 = vector.broadcast %337 : vector<1x32xf32> to vector<16x32xf32>
    %367 = arith.addf %365, %366 : vector<16x32xf32>
    %368 = arith.addf %311, %367 : vector<16x32xf32>
    %c0_157 = arith.constant 0 : index
    %c10 = arith.constant 10 : index
    %c0_158 = arith.constant 0 : index
    %369 = vector.load %arg4[%c0_157, %c10, %c0_158] : memref<1x15x32xf32, #tpu.memory_space<vmem>>, vector<1x1x32xf32>
    %370 = vector.shape_cast %369 : vector<1x1x32xf32> to vector<1x32xf32>
    %c0_159 = arith.constant 0 : index
    %c11 = arith.constant 11 : index
    %c0_160 = arith.constant 0 : index
    %371 = vector.load %arg4[%c0_159, %c11, %c0_160] : memref<1x15x32xf32, #tpu.memory_space<vmem>>, vector<1x1x32xf32>
    %372 = vector.shape_cast %371 : vector<1x1x32xf32> to vector<1x32xf32>
    %cst_161 = arith.constant dense<0.000000e+00> : vector<16xf32>
    %373 = vector.multi_reduction <add>, %368, %cst_161 [1] : vector<16x32xf32> to vector<16xf32>
    %374 = vector.shape_cast %373 : vector<16xf32> to vector<16x1xf32>
    %cst_162 = arith.constant 3.200000e+01 : f32
    %375 = vector.broadcast %cst_162 : f32 to vector<16x1xf32>
    %376 = arith.divf %374, %375 : vector<16x1xf32>
    %377 = vector.broadcast %376 : vector<16x1xf32> to vector<16x32xf32>
    %378 = arith.subf %368, %377 : vector<16x32xf32>
    %379 = arith.mulf %378, %378 : vector<16x32xf32>
    %cst_163 = arith.constant dense<0.000000e+00> : vector<16xf32>
    %380 = vector.multi_reduction <add>, %379, %cst_163 [1] : vector<16x32xf32> to vector<16xf32>
    %381 = vector.shape_cast %380 : vector<16xf32> to vector<16x1xf32>
    %cst_164 = arith.constant 3.200000e+01 : f32
    %382 = vector.broadcast %cst_164 : f32 to vector<16x1xf32>
    %383 = arith.divf %381, %382 : vector<16x1xf32>
    %cst_165 = arith.constant 9.99999974E-6 : f32
    %384 = vector.broadcast %cst_165 : f32 to vector<16x1xf32>
    %385 = arith.addf %383, %384 : vector<16x1xf32>
    %386 = math.rsqrt %385 : vector<16x1xf32>
    %387 = vector.broadcast %386 : vector<16x1xf32> to vector<16x32xf32>
    %388 = arith.mulf %378, %387 : vector<16x32xf32>
    %389 = vector.broadcast %370 : vector<1x32xf32> to vector<16x32xf32>
    %390 = arith.mulf %388, %389 : vector<16x32xf32>
    %391 = vector.broadcast %372 : vector<1x32xf32> to vector<16x32xf32>
    %392 = arith.addf %390, %391 : vector<16x32xf32>
    %c0_166 = arith.constant 0 : index
    %c0_167 = arith.constant 0 : index
    %c0_168 = arith.constant 0 : index
    %393 = vector.load %arg5[%c0_166, %c0_167, %c0_168] : memref<1x32x1024xf32, #tpu.memory_space<vmem>>, vector<1x32x1024xf32>
    %394 = vector.shape_cast %393 : vector<1x32x1024xf32> to vector<32x1024xf32>
    %cst_169 = arith.constant dense<0.000000e+00> : vector<16x1024xf32>
    %395 = tpu.matmul %392, %394, %cst_169 {dimension_numbers = #tpu.dot_dimension_numbers<[1], [0], [0], [1], [0, 0, 1, 1], [], []>} : vector<16x32xf32>, vector<32x1024xf32>, vector<16x1024xf32> -> vector<16x1024xf32>
    %c0_170 = arith.constant 0 : index
    %c0_171 = arith.constant 0 : index
    %c0_172 = arith.constant 0 : index
    %396 = vector.load %arg6[%c0_170, %c0_171, %c0_172] : memref<1x1x1024xf32, #tpu.memory_space<vmem>>, vector<1x1x1024xf32>
    %397 = vector.shape_cast %396 : vector<1x1x1024xf32> to vector<1x1024xf32>
    %398 = vector.broadcast %397 : vector<1x1024xf32> to vector<16x1024xf32>
    %399 = arith.addf %395, %398 : vector<16x1024xf32>
    %cst_173 = arith.constant 0.000000e+00 : f32
    %400 = vector.broadcast %cst_173 : f32 to vector<16x1024xf32>
    %401 = arith.maximumf %399, %400 : vector<16x1024xf32>
    %c0_174 = arith.constant 0 : index
    %c0_175 = arith.constant 0 : index
    %c0_176 = arith.constant 0 : index
    %402 = vector.load %arg7[%c0_174, %c0_175, %c0_176] : memref<1x1024x32xf32, #tpu.memory_space<vmem>>, vector<1x1024x32xf32>
    %403 = vector.shape_cast %402 : vector<1x1024x32xf32> to vector<1024x32xf32>
    %cst_177 = arith.constant dense<0.000000e+00> : vector<16x32xf32>
    %404 = tpu.matmul %401, %403, %cst_177 {dimension_numbers = #tpu.dot_dimension_numbers<[1], [0], [0], [1], [0, 0, 1, 1], [], []>} : vector<16x1024xf32>, vector<1024x32xf32>, vector<16x32xf32> -> vector<16x32xf32>
    %c0_178 = arith.constant 0 : index
    %c12 = arith.constant 12 : index
    %c0_179 = arith.constant 0 : index
    %405 = vector.load %arg4[%c0_178, %c12, %c0_179] : memref<1x15x32xf32, #tpu.memory_space<vmem>>, vector<1x1x32xf32>
    %406 = vector.shape_cast %405 : vector<1x1x32xf32> to vector<1x32xf32>
    %407 = vector.broadcast %406 : vector<1x32xf32> to vector<16x32xf32>
    %408 = arith.addf %404, %407 : vector<16x32xf32>
    %409 = arith.addf %392, %408 : vector<16x32xf32>
    %c0_180 = arith.constant 0 : index
    %c13 = arith.constant 13 : index
    %c0_181 = arith.constant 0 : index
    %410 = vector.load %arg4[%c0_180, %c13, %c0_181] : memref<1x15x32xf32, #tpu.memory_space<vmem>>, vector<1x1x32xf32>
    %411 = vector.shape_cast %410 : vector<1x1x32xf32> to vector<1x32xf32>
    %c0_182 = arith.constant 0 : index
    %c14 = arith.constant 14 : index
    %c0_183 = arith.constant 0 : index
    %412 = vector.load %arg4[%c0_182, %c14, %c0_183] : memref<1x15x32xf32, #tpu.memory_space<vmem>>, vector<1x1x32xf32>
    %413 = vector.shape_cast %412 : vector<1x1x32xf32> to vector<1x32xf32>
    %cst_184 = arith.constant dense<0.000000e+00> : vector<16xf32>
    %414 = vector.multi_reduction <add>, %409, %cst_184 [1] : vector<16x32xf32> to vector<16xf32>
    %415 = vector.shape_cast %414 : vector<16xf32> to vector<16x1xf32>
    %cst_185 = arith.constant 3.200000e+01 : f32
    %416 = vector.broadcast %cst_185 : f32 to vector<16x1xf32>
    %417 = arith.divf %415, %416 : vector<16x1xf32>
    %418 = vector.broadcast %417 : vector<16x1xf32> to vector<16x32xf32>
    %419 = arith.subf %409, %418 : vector<16x32xf32>
    %420 = arith.mulf %419, %419 : vector<16x32xf32>
    %cst_186 = arith.constant dense<0.000000e+00> : vector<16xf32>
    %421 = vector.multi_reduction <add>, %420, %cst_186 [1] : vector<16x32xf32> to vector<16xf32>
    %422 = vector.shape_cast %421 : vector<16xf32> to vector<16x1xf32>
    %cst_187 = arith.constant 3.200000e+01 : f32
    %423 = vector.broadcast %cst_187 : f32 to vector<16x1xf32>
    %424 = arith.divf %422, %423 : vector<16x1xf32>
    %cst_188 = arith.constant 9.99999974E-6 : f32
    %425 = vector.broadcast %cst_188 : f32 to vector<16x1xf32>
    %426 = arith.addf %424, %425 : vector<16x1xf32>
    %427 = math.rsqrt %426 : vector<16x1xf32>
    %428 = vector.broadcast %427 : vector<16x1xf32> to vector<16x32xf32>
    %429 = arith.mulf %419, %428 : vector<16x32xf32>
    %430 = vector.broadcast %411 : vector<1x32xf32> to vector<16x32xf32>
    %431 = arith.mulf %429, %430 : vector<16x32xf32>
    %432 = vector.broadcast %413 : vector<1x32xf32> to vector<16x32xf32>
    %433 = arith.addf %431, %432 : vector<16x32xf32>
    %434 = vector.shape_cast %433 : vector<16x32xf32> to vector<2x8x32xf32>
    %c0_189 = arith.constant 0 : index
    %c0_190 = arith.constant 0 : index
    %c0_191 = arith.constant 0 : index
    %435 = vector.load %arg8[%c0_189, %c0_190, %c0_191] : memref<2x8x32xf32, #tpu.memory_space<vmem>>, vector<2x8x32xf32>
    tpu.vector_store %arg8[%c0_189, %c0_190, %c0_191], %434 {strides = array<i32>} : memref<2x8x32xf32, #tpu.memory_space<vmem>>, vector<2x8x32xf32>,
    return
  }
}

</mosaic_0001>

<llo_original>
// kernel: tpu_custom_call.1
$region0: #{tpu_custom_call.1}
  #allocation0 [shape = 'u32[]', space=smem, size = 0x4, offset = 0x4, fixed_abs, tag = 'smem constant byte address 0x4 - core index']
  #allocation1 [shape = 'u32[144,128]{1,0:T(1,128)}', space=vmem, size = 0x12000, scoped, tag = 'internal scratch']
  %s0 = inlined_call_operand.vmem [shape: f32[2,8,32], index: 0, kind: input, shape index: {}]
  %s1 = inlined_call_operand.vmem [shape: f32[2,16,32], index: 1, kind: input, shape index: {}]
  %s2 = inlined_call_operand.vmem [shape: f32[2,16,32], index: 2, kind: input, shape index: {}]
  %s3 = inlined_call_operand.vmem [shape: f32[1,8,32,32], index: 3, kind: input, shape index: {}]
  %s4 = inlined_call_operand.vmem [shape: f32[1,15,32], index: 4, kind: input, shape index: {}]
  %s5 = inlined_call_operand.vmem [shape: f32[1,32,1024], index: 5, kind: input, shape index: {}]
  %s6 = inlined_call_operand.vmem [shape: f32[1,1,1024], index: 6, kind: input, shape index: {}]
  %s7 = inlined_call_operand.vmem [shape: f32[1,1024,32], index: 7, kind: input, shape index: {}]
  %s8 = inlined_call_operand.hbm [shape: f32[2,8,32], index: 8, kind: output, shape index: {}]
  %s9 = sld [smem:[#allocation0]]
  $region42: #{tpu_custom_call.1} parent=0
    _
  %s11 = ssub.s32 1, %s9
  %s12 = scalar_select 0, %s11, %s9
  $region1: #{tpu_custom_call.1} parent=0
    #allocation2 [shape = 'u8[8192]{0}', space=vmem, size = 0x2000, scoped, tag = 'output window, operand 0, single buffered']
    #allocation3 [shape = 's32[1]{0}', space=sflag, size = 0x4, scoped, tag = 'scoped memory for tpu_custom_call.1']
    %13 = vsyncpa [#allocation3], 0
    // Predicated region
    $region2: #{tpu_custom_call.1} parent=1 // pred_check
      _
    $region3: #{tpu_custom_call.1} parent=1 // pred_check_branch
      %15 = sbr.rel (0) target = $region5
    $region4: #{tpu_custom_call.1} parent=1 // pred_region
      _
    $region5: #{tpu_custom_call.1} parent=1 // pred_fallthru
      _
    // Predicated region
    $region6: #{tpu_custom_call.1} parent=1 // pred_check
      _
    $region7: #{tpu_custom_call.1} parent=1 // pred_check_branch
      %17 = sbr.rel (0) target = $region9
    $region8: #{tpu_custom_call.1} parent=1 // pred_region
      _
    $region9: #{tpu_custom_call.1} parent=1 // pred_fallthru
      _
    // Predicated region
    $region10: #{tpu_custom_call.1} parent=1 // pred_check
      _
    $region11: #{tpu_custom_call.1} parent=1 // pred_check_branch
      %19 = sbr.rel (0) target = $region13
    $region12: #{tpu_custom_call.1} parent=1 // pred_region
      _
    $region13: #{tpu_custom_call.1} parent=1 // pred_fallthru
      _
    // Predicated region
    $region14: #{tpu_custom_call.1} parent=1 // pred_check
      _
    $region15: #{tpu_custom_call.1} parent=1 // pred_check_branch
      %21 = sbr.rel (0) target = $region17
    $region16: #{tpu_custom_call.1} parent=1 // pred_region
      _
    $region17: #{tpu_custom_call.1} parent=1 // pred_fallthru
      _
    // Predicated region
    $region18: #{tpu_custom_call.1} parent=1 // pred_check
      _
    $region19: #{tpu_custom_call.1} parent=1 // pred_check_branch
      %23 = sbr.rel (0) target = $region21
    $region20: #{tpu_custom_call.1} parent=1 // pred_region
      _
    $region21: #{tpu_custom_call.1} parent=1 // pred_fallthru
      _
    // Predicated region
    $region22: #{tpu_custom_call.1} parent=1 // pred_check
      _
    $region23: #{tpu_custom_call.1} parent=1 // pred_check_branch
      %25 = sbr.rel (0) target = $region25
    $region24: #{tpu_custom_call.1} parent=1 // pred_region
      _
    $region25: #{tpu_custom_call.1} parent=1 // pred_fallthru
      _
    // Predicated region
    $region26: #{tpu_custom_call.1} parent=1 // pred_check
      _
    $region27: #{tpu_custom_call.1} parent=1 // pred_check_branch
      %27 = sbr.rel (0) target = $region29
    $region28: #{tpu_custom_call.1} parent=1 // pred_region
      _
    $region29: #{tpu_custom_call.1} parent=1 // pred_fallthru
      _
    // Predicated region
    $region30: #{tpu_custom_call.1} parent=1 // pred_check
      _
    $region31: #{tpu_custom_call.1} parent=1 // pred_check_branch
      %29 = sbr.rel (0) target = $region33
    $region32: #{tpu_custom_call.1} parent=1 // pred_region
      _
    $region33: #{tpu_custom_call.1} parent=1 // pred_fallthru
      _
    %v30 = vld [vmem:[%s1] sm:$0xff]
    %v31 = vld [vmem:[%s1 + $0x8] sm:$0xff]
    %v32 = vld [vmem:[%s1 + $0x10] sm:$0xff]
    %v33 = vld [vmem:[%s1 + $0x18] sm:$0xff]
    %v34 = vld [vmem:[%s2] sm:$0xff]
    %v35 = vld [vmem:[%s2 + $0x8] sm:$0xff]
    %v36 = vld [vmem:[%s2 + $0x10] sm:$0xff]
    %v37 = vld [vmem:[%s2 + $0x18] sm:$0xff]
    %v38 = vadd.f32 %v30, %v34
    %v39 = vadd.f32 %v31, %v35
    %v40 = vadd.f32 %v32, %v36
    %v41 = vadd.f32 %v33, %v37
    %v42 = vmul.f32 %v38, %v38
    %v43 = vmul.f32 %v39, %v39
    %v44 = vmul.f32 %v40, %v40
    %v45 = vmul.f32 %v41, %v41
    %vm46 = vcmask 261120
    %v47 = vsel %vm46, %v42, 0.0
    %48 = vadd.xlane.f32.xlu0 %v47
    %v49 = vpop.xlane.xlu0 %48
    %v50 = vsel %vm46, %v43, 0.0
    %51 = vadd.xlane.f32.xlu0 %v50
    %v52 = vpop.xlane.xlu0 %51
    %v53 = vsel %vm46, %v44, 0.0
    %54 = vadd.xlane.f32.xlu0 %v53
    %v55 = vpop.xlane.xlu0 %54
    %v56 = vsel %vm46, %v45, 0.0
    %57 = vadd.xlane.f32.xlu0 %v56
    %v58 = vpop.xlane.xlu0 %57
    %v59 = vrsqrt.pop %v49
    %v60 = vmul.f32 %v49, %v59
    %vm61 = vcmp.eq.f32.partialorder %v49, inf
    %v62 = vsel %vm61, %v49, %v60
    %vm63 = vcmp.eq.f32.partialorder %v49, 0.0
    %v64 = vand.u32 %v49, 2147483648
    %v65 = vsel %vm63, %v64, %v62
    %v66 = vrsqrt.pop %v52
    %v67 = vmul.f32 %v52, %v66
    %vm68 = vcmp.eq.f32.partialorder %v52, inf
    %v69 = vsel %vm68, %v52, %v67
    %vm70 = vcmp.eq.f32.partialorder %v52, 0.0
    %v71 = vand.u32 %v52, 2147483648
    %v72 = vsel %vm70, %v71, %v69
    %v73 = vrsqrt.pop %v55
    %v74 = vmul.f32 %v55, %v73
    %vm75 = vcmp.eq.f32.partialorder %v55, inf
    %v76 = vsel %vm75, %v55, %v74
    %vm77 = vcmp.eq.f32.partialorder %v55, 0.0
    %v78 = vand.u32 %v55, 2147483648
    %v79 = vsel %vm77, %v78, %v76
    %v80 = vrsqrt.pop %v58
    %v81 = vmul.f32 %v58, %v80
    %vm82 = vcmp.eq.f32.partialorder %v58, inf
    %v83 = vsel %vm82, %v58, %v81
    %vm84 = vcmp.eq.f32.partialorder %v58, 0.0
    %v85 = vand.u32 %v58, 2147483648
    %v86 = vsel %vm84, %v85, %v83
    %v87 = vadd.f32 %v65, 1e-07
    %v88 = vadd.f32 %v72, 1e-07
    %v89 = vadd.f32 %v79, 1e-07
    %v90 = vadd.f32 %v86, 1e-07
    %v91 = vrcp.pop %v87
    %v92 = vmul.f32 %v65, %v91
    %v93 = vrcp.pop %v88
    %v94 = vmul.f32 %v72, %v93
    %v95 = vrcp.pop %v89
    %v96 = vmul.f32 %v79, %v95
    %v97 = vrcp.pop %v90
    %v98 = vmul.f32 %v86, %v97
    %v99 = vmax.f32 %v65, 1e-15
    %v100 = vmax.f32 %v72, 1e-15
    %v101 = vmax.f32 %v79, 1e-15
    %v102 = vmax.f32 %v86, 1e-15
    %v103 = vrcp.pop %v99
    %v104 = vmul.f32 0.99999, %v103
    %v105 = vrcp.pop %v100
    %v106 = vmul.f32 0.99999, %v105
    %v107 = vrcp.pop %v101
    %v108 = vmul.f32 0.99999, %v107
    %v109 = vrcp.pop %v102
    %v110 = vmul.f32 0.99999, %v109
    %v111 = vmin.f32 %v104, 1.0
    %v112 = vmin.f32 %v106, 1.0
    %v113 = vmin.f32 %v108, 1.0
    %v114 = vmin.f32 %v110, 1.0
    %v115 = vmul.f32 %v38, %v111
    %v116 = vmul.f32 %v39, %v112
    %v117 = vmul.f32 %v40, %v113
    %v118 = vmul.f32 %v41, %v114
    %v119 = vmul.f32 %v49, %v111
    %v120 = vmul.f32 %v52, %v112
    %v121 = vmul.f32 %v55, %v113
    %v122 = vmul.f32 %v58, %v114
    %v123 = vmul.f32 %v119, %v111
    %v124 = vmul.f32 %v120, %v112
    %v125 = vmul.f32 %v121, %v113
    %v126 = vmul.f32 %v122, %v114
    %v127 = vmul.f32 %v123, -1.0
    %v128 = vmul.f32 %v124, -1.0
    %v129 = vmul.f32 %v125, -1.0
    %v130 = vmul.f32 %v126, -1.0
    %v131 = vadd.f32 %v127, 1.0
    %v132 = vadd.f32 %v128, 1.0
    %v133 = vadd.f32 %v129, 1.0
    %v134 = vadd.f32 %v130, 1.0
    %v135 = vmax.f32 %v131, 1e-15
    %v136 = vmax.f32 %v132, 1e-15
    %v137 = vmax.f32 %v133, 1e-15
    %v138 = vmax.f32 %v134, 1e-15
    %v139 = vrcp.pop %v135
    %v140 = vmul.f32 2.0, %v139
    %v141 = vrcp.pop %v136
    %v142 = vmul.f32 2.0, %v141
    %v143 = vrcp.pop %v137
    %v144 = vmul.f32 2.0, %v143
    %v145 = vrcp.pop %v138
    %v146 = vmul.f32 2.0, %v145
    %v147 = vmul.f32 %v140, 0.5
    %v148 = vmul.f32 %v142, 0.5
    %v149 = vmul.f32 %v144, 0.5
    %v150 = vmul.f32 %v146, 0.5
    %v151 = vmul.f32 %v147, %v92
    %v152 = vmul.f32 %v148, %v94
    %v153 = vmul.f32 %v149, %v96
    %v154 = vmul.f32 %v150, %v98
    %v155 = vtanh.pop %v151
    %v156 = vtanh.pop %v152
    %v157 = vtanh.pop %v153
    %v158 = vtanh.pop %v154
    %v159 = vmul.f32 %v155, %v103
    %v160 = vmul.f32 %v156, %v105
    %v161 = vmul.f32 %v157, %v107
    %v162 = vmul.f32 %v158, %v109
    %v163 = vmul.f32 %v38, %v159
    %v164 = vmul.f32 %v39, %v160
    %v165 = vmul.f32 %v40, %v161
    %v166 = vmul.f32 %v41, %v162
    %v167 = vmul.f32 %v163, %v163
    %v168 = vmul.f32 %v164, %v164
    %v169 = vmul.f32 %v165, %v165
    %v170 = vmul.f32 %v166, %v166
    %v171 = vsel %vm46, %v167, 0.0
    %172 = vadd.xlane.f32.xlu0 %v171
    %v173 = vpop.xlane.xlu0 %172
    %v174 = vsel %vm46, %v168, 0.0
    %175 = vadd.xlane.f32.xlu0 %v174
    %v176 = vpop.xlane.xlu0 %175
    %v177 = vsel %vm46, %v169, 0.0
    %178 = vadd.xlane.f32.xlu0 %v177
    %v179 = vpop.xlane.xlu0 %178
    %v180 = vsel %vm46, %v170, 0.0
    %181 = vadd.xlane.f32.xlu0 %v180
    %v182 = vpop.xlane.xlu0 %181
    %v183 = vmul.f32 %v115, %v163
    %v184 = vmul.f32 %v116, %v164
    %v185 = vmul.f32 %v117, %v165
    %v186 = vmul.f32 %v118, %v166
    %v187 = vsel %vm46, %v183, 0.0
    %188 = vadd.xlane.f32.xlu0 %v187
    %v189 = vpop.xlane.xlu0 %188
    %v190 = vsel %vm46, %v184, 0.0
    %191 = vadd.xlane.f32.xlu0 %v190
    %v192 = vpop.xlane.xlu0 %191
    %v193 = vsel %vm46, %v185, 0.0
    %194 = vadd.xlane.f32.xlu0 %v193
    %v195 = vpop.xlane.xlu0 %194
    %v196 = vsel %vm46, %v186, 0.0
    %197 = vadd.xlane.f32.xlu0 %v196
    %v198 = vpop.xlane.xlu0 %197
    %v199 = vmul.f32 %v189, -2.0
    %v200 = vmul.f32 %v192, -2.0
    %v201 = vmul.f32 %v195, -2.0
    %v202 = vmul.f32 %v198, -2.0
    %v203 = vsub.f32 1.0, %v199
    %v204 = vsub.f32 1.0, %v200
    %v205 = vsub.f32 1.0, %v201
    %v206 = vsub.f32 1.0, %v202
    %v207 = vmul.f32 %v173, -1.0
    %v208 = vmul.f32 %v176, -1.0
    %v209 = vmul.f32 %v179, -1.0
    %v210 = vmul.f32 %v182, -1.0
    %v211 = vsub.f32 %v203, %v207
    %v212 = vsub.f32 %v204, %v208
    %v213 = vsub.f32 %v205, %v209
    %v214 = vsub.f32 %v206, %v210
    %v215 = vmul.f32 %v211, %v115
    %v216 = vmul.f32 %v212, %v116
    %v217 = vmul.f32 %v213, %v117
    %v218 = vmul.f32 %v214, %v118
    %v219 = vmul.f32 %v131, %v163
    %v220 = vmul.f32 %v132, %v164
    %v221 = vmul.f32 %v133, %v165
    %v222 = vmul.f32 %v134, %v166
    %v223 = vadd.f32 %v215, %v219
    %v224 = vadd.f32 %v216, %v220
    %v225 = vadd.f32 %v217, %v221
    %v226 = vadd.f32 %v218, %v222
    %v227 = vmul.f32 %v123, %v173
    %v228 = vmul.f32 %v124, %v176
    %v229 = vmul.f32 %v125, %v179
    %v230 = vmul.f32 %v126, %v182
    %v231 = vadd.f32 %v203, %v227
    %v232 = vadd.f32 %v204, %v228
    %v233 = vadd.f32 %v205, %v229
    %v234 = vadd.f32 %v206, %v230
    %v235 = vmax.f32 %v231, 1e-15
    %v236 = vmax.f32 %v232, 1e-15
    %v237 = vmax.f32 %v233, 1e-15
    %v238 = vmax.f32 %v234, 1e-15
    %v239 = vrcp.pop %v235
    %v240 = vmul.f32 %v223, %v239
    %v241 = vrcp.pop %v236
    %v242 = vmul.f32 %v224, %v241
    %v243 = vrcp.pop %v237
    %v244 = vmul.f32 %v225, %v243
    %v245 = vrcp.pop %v238
    %v246 = vmul.f32 %v226, %v245
    %v247 = vmul.f32 %v240, %v240
    %v248 = vmul.f32 %v242, %v242
    %v249 = vmul.f32 %v244, %v244
    %v250 = vmul.f32 %v246, %v246
    %v251 = vsel %vm46, %v247, 0.0
    %252 = vadd.xlane.f32.xlu0 %v251
    %v253 = vpop.xlane.xlu0 %252
    %v254 = vsel %vm46, %v248, 0.0
    %255 = vadd.xlane.f32.xlu0 %v254
    %v256 = vpop.xlane.xlu0 %255
    %v257 = vsel %vm46, %v249, 0.0
    %258 = vadd.xlane.f32.xlu0 %v257
    %v259 = vpop.xlane.xlu0 %258
    %v260 = vsel %vm46, %v250, 0.0
    %261 = vadd.xlane.f32.xlu0 %v260
    %v262 = vpop.xlane.xlu0 %261
    %v263 = vrsqrt.pop %v253
    %v264 = vmul.f32 %v253, %v263
    %vm265 = vcmp.eq.f32.partialorder %v253, inf
    %v266 = vsel %vm265, %v253, %v264
    %vm267 = vcmp.eq.f32.partialorder %v253, 0.0
    %v268 = vand.u32 %v253, 2147483648
    %v269 = vsel %vm267, %v268, %v266
    %v270 = vrsqrt.pop %v256
    %v271 = vmul.f32 %v256, %v270
    %vm272 = vcmp.eq.f32.partialorder %v256, inf
    %v273 = vsel %vm272, %v256, %v271
    %vm274 = vcmp.eq.f32.partialorder %v256, 0.0
    %v275 = vand.u32 %v256, 2147483648
    %v276 = vsel %vm274, %v275, %v273
    %v277 = vrsqrt.pop %v259
    %v278 = vmul.f32 %v259, %v277
    %vm279 = vcmp.eq.f32.partialorder %v259, inf
    %v280 = vsel %vm279, %v259, %v278
    %vm281 = vcmp.eq.f32.partialorder %v259, 0.0
    %v282 = vand.u32 %v259, 2147483648
    %v283 = vsel %vm281, %v282, %v280
    %v284 = vrsqrt.pop %v262
    %v285 = vmul.f32 %v262, %v284
    %vm286 = vcmp.eq.f32.partialorder %v262, inf
    %v287 = vsel %vm286, %v262, %v285
    %vm288 = vcmp.eq.f32.partialorder %v262, 0.0
    %v289 = vand.u32 %v262, 2147483648
    %v290 = vsel %vm288, %v289, %v287
    %v291 = vmax.f32 %v269, 1e-15
    %v292 = vmax.f32 %v276, 1e-15
    %v293 = vmax.f32 %v283, 1e-15
    %v294 = vmax.f32 %v290, 1e-15
    %v295 = vmax.f32 %v291, -0.99999
    %v296 = vmax.f32 %v292, -0.99999
    %v297 = vmax.f32 %v293, -0.99999
    %v298 = vmax.f32 %v294, -0.99999
    %v299 = vmin.f32 %v295, 0.99999
    %v300 = vmin.f32 %v296, 0.99999
    %v301 = vmin.f32 %v297, 0.99999
    %v302 = vmin.f32 %v298, 0.99999
    %v303 = vadd.f32 %v299, 1.0
    %v304 = vadd.f32 %v300, 1.0
    %v305 = vadd.f32 %v301, 1.0
    %v306 = vadd.f32 %v302, 1.0
    %v307 = vsub.f32 1.0, %v299
    %v308 = vsub.f32 1.0, %v300
    %v309 = vsub.f32 1.0, %v301
    %v310 = vsub.f32 1.0, %v302
    %v311 = vrcp.pop %v307
    %v312 = vmul.f32 %v303, %v311
    %v313 = vrcp.pop %v308
    %v314 = vmul.f32 %v304, %v313
    %v315 = vrcp.pop %v309
    %v316 = vmul.f32 %v305, %v315
    %v317 = vrcp.pop %v310
    %v318 = vmul.f32 %v306, %v317
    %v319 = vlog2.pop %v312
    %v320 = vmul.f32 %v319, 0.6931472
    %v321 = vlog2.pop %v314
    %v322 = vmul.f32 %v321, 0.6931472
    %v323 = vlog2.pop %v316
    %v324 = vmul.f32 %v323, 0.6931472
    %v325 = vlog2.pop %v318
    %v326 = vmul.f32 %v325, 0.6931472
    %v327 = vmul.f32 %v320, 0.5
    %v328 = vmul.f32 %v322, 0.5
    %v329 = vmul.f32 %v324, 0.5
    %v330 = vmul.f32 %v326, 0.5
    %v331 = vrcp.pop %v291
    %v332 = vrcp.pop %v292
    %v333 = vrcp.pop %v293
    %v334 = vrcp.pop %v294
    %v335 = vmul.f32 %v327, %v331
    %v336 = vmul.f32 %v328, %v332
    %v337 = vmul.f32 %v329, %v333
    %v338 = vmul.f32 %v330, %v334
    %v339 = vmul.f32 %v240, %v335
    %v340 = vmul.f32 %v242, %v336
    %v341 = vmul.f32 %v244, %v337
    %v342 = vmul.f32 %v246, %v338
    %v343 = vlaneseq
    %v344 = vshrl.u32 %v343, 7
    %v345 = vadd.s32 %v344, 8
    %v346 = vadd.s32 %v344, 16
    %v347 = vadd.s32 %v344, 24
    %v348 = vlaneseq
    %v349 = vand.u32 %v348, 127
    %v350 = vmul.u32 %v349, 8
    %vm351 = vcmp.ge.s32.totalorder %v344, %v350
    %vm352 = vcmp.ge.s32.totalorder %v345, %v350
    %vm353 = vcmp.ge.s32.totalorder %v346, %v350
    %vm354 = vcmp.ge.s32.totalorder %v347, %v350
    %v355 = vadd.s32 %v349, 1
    %v356 = vmul.u32 %v355, 8
    %vm357 = vcmp.lt.s32.totalorder %v344, %v356
    %vm358 = vcmp.lt.s32.totalorder %v345, %v356
    %vm359 = vcmp.lt.s32.totalorder %v346, %v356
    %vm360 = vcmp.lt.s32.totalorder %v347, %v356
    %vm361 = vmand %vm351, %vm357
    %vm362 = vmand %vm352, %vm358
    %vm363 = vmand %vm353, %vm359
    %vm364 = vmand %vm354, %vm360
    %v365 = vsel %vm361, 1.0, 0.0
    %v366 = vsel %vm362, 1.0, 0.0
    %v367 = vsel %vm363, 1.0, 0.0
    %v368 = vsel %vm364, 1.0, 0.0
    %v369 = vmul.u32 %v344, 8
    %vm370 = vcmp.ge.s32.totalorder %v349, %v369
    %v371 = vadd.s32 %v344, 1
    %v372 = vmul.u32 %v371, 8
    %vm373 = vcmp.lt.s32.totalorder %v349, %v372
    %vm374 = vmand %vm370, %vm373
    %v375 = vsel %vm374, 1.0, 0.0
    %v376 = vld [vmem:[%s0] sm:$0xff]
    %v377 = vld [vmem:[%s0 + $0x8] sm:$0xff]
    %v378 = vmul.f32 %v376, %v376
    %v379 = vmul.f32 %v377, %v377
    %v380 = vsel %vm46, %v378, 0.0
    %381 = vadd.xlane.f32.xlu0 %v380
    %v382 = vpop.xlane.xlu0 %381
    %v383 = vsel %vm46, %v379, 0.0
    %384 = vadd.xlane.f32.xlu0 %v383
    %v385 = vpop.xlane.xlu0 %384
    %v386 = vrsqrt.pop %v382
    %v387 = vmul.f32 %v382, %v386
    %vm388 = vcmp.eq.f32.partialorder %v382, inf
    %v389 = vsel %vm388, %v382, %v387
    %vm390 = vcmp.eq.f32.partialorder %v382, 0.0
    %v391 = vand.u32 %v382, 2147483648
    %v392 = vsel %vm390, %v391, %v389
    %v393 = vrsqrt.pop %v385
    %v394 = vmul.f32 %v385, %v393
    %vm395 = vcmp.eq.f32.partialorder %v385, inf
    %v396 = vsel %vm395, %v385, %v394
    %vm397 = vcmp.eq.f32.partialorder %v385, 0.0
    %v398 = vand.u32 %v385, 2147483648
    %v399 = vsel %vm397, %v398, %v396
    %v400 = vadd.f32 %v392, 1e-07
    %v401 = vadd.f32 %v399, 1e-07
    %v402 = vrcp.pop %v400
    %v403 = vmul.f32 %v392, %v402
    %v404 = vrcp.pop %v401
    %v405 = vmul.f32 %v399, %v404
    %v406 = vmax.f32 %v392, 1e-15
    %v407 = vmax.f32 %v399, 1e-15
    %v408 = vrcp.pop %v406
    %v409 = vmul.f32 0.99999, %v408
    %v410 = vrcp.pop %v407
    %v411 = vmul.f32 0.99999, %v410
    %v412 = vmin.f32 %v409, 1.0
    %v413 = vmin.f32 %v411, 1.0
    %v414 = vmul.f32 %v376, %v412
    %v415 = vmul.f32 %v377, %v413
    %v416 = vmul.f32 %v382, %v412
    %v417 = vmul.f32 %v385, %v413
    %v418 = vmul.f32 %v416, %v412
    %v419 = vmul.f32 %v417, %v413
    %v420 = vmul.f32 %v418, -1.0
    %v421 = vmul.f32 %v419, -1.0
    %v422 = vadd.f32 %v420, 1.0
    %v423 = vadd.f32 %v421, 1.0
    %v424 = vmax.f32 %v422, 1e-15
    %v425 = vmax.f32 %v423, 1e-15
    %v426 = vrcp.pop %v424
    %v427 = vmul.f32 2.0, %v426
    %v428 = vrcp.pop %v425
    %v429 = vmul.f32 2.0, %v428
    %v430 = vmul.f32 %v427, 0.5
    %v431 = vmul.f32 %v429, 0.5
    %v432 = vmul.f32 %v430, %v403
    %v433 = vmul.f32 %v431, %v405
    %v434 = vtanh.pop %v432
    %v435 = vtanh.pop %v433
    %v436 = vmul.f32 %v434, %v408
    %v437 = vmul.f32 %v435, %v410
    %v438 = vmul.f32 %v376, %v436
    %v439 = vmul.f32 %v377, %v437
    %v440 = vmul.f32 %v438, %v438
    %v441 = vmul.f32 %v439, %v439
    %v442 = vsel %vm46, %v440, 0.0
    %443 = vadd.xlane.f32.xlu0 %v442
    %v444 = vpop.xlane.xlu0 %443
    %v445 = vsel %vm46, %v441, 0.0
    %446 = vadd.xlane.f32.xlu0 %v445
    %v447 = vpop.xlane.xlu0 %446
    %v448 = vmul.f32 %v414, %v438
    %v449 = vmul.f32 %v415, %v439
    %v450 = vsel %vm46, %v448, 0.0
    %451 = vadd.xlane.f32.xlu0 %v450
    %v452 = vpop.xlane.xlu0 %451
    %v453 = vsel %vm46, %v449, 0.0
    %454 = vadd.xlane.f32.xlu0 %v453
    %v455 = vpop.xlane.xlu0 %454
    %v456 = vmul.f32 %v452, -2.0
    %v457 = vmul.f32 %v455, -2.0
    %v458 = vsub.f32 1.0, %v456
    %v459 = vsub.f32 1.0, %v457
    %v460 = vmul.f32 %v444, -1.0
    %v461 = vmul.f32 %v447, -1.0
    %v462 = vsub.f32 %v458, %v460
    %v463 = vsub.f32 %v459, %v461
    %v464 = vmul.f32 %v462, %v414
    %v465 = vmul.f32 %v463, %v415
    %v466 = vmul.f32 %v422, %v438
    %v467 = vmul.f32 %v423, %v439
    %v468 = vadd.f32 %v464, %v466
    %v469 = vadd.f32 %v465, %v467
    %v470 = vmul.f32 %v418, %v444
    %v471 = vmul.f32 %v419, %v447
    %v472 = vadd.f32 %v458, %v470
    %v473 = vadd.f32 %v459, %v471
    %v474 = vmax.f32 %v472, 1e-15
    %v475 = vmax.f32 %v473, 1e-15
    %v476 = vrcp.pop %v474
    %v477 = vmul.f32 %v468, %v476
    %v478 = vrcp.pop %v475
    %v479 = vmul.f32 %v469, %v478
    %v480 = vmul.f32 %v477, %v477
    %v481 = vmul.f32 %v479, %v479
    %v482 = vsel %vm46, %v480, 0.0
    %483 = vadd.xlane.f32.xlu0 %v482
    %v484 = vpop.xlane.xlu0 %483
    %v485 = vsel %vm46, %v481, 0.0
    %486 = vadd.xlane.f32.xlu0 %v485
    %v487 = vpop.xlane.xlu0 %486
    %v488 = vrsqrt.pop %v484
    %v489 = vmul.f32 %v484, %v488
    %vm490 = vcmp.eq.f32.partialorder %v484, inf
    %v491 = vsel %vm490, %v484, %v489
    %vm492 = vcmp.eq.f32.partialorder %v484, 0.0
    %v493 = vand.u32 %v484, 2147483648
    %v494 = vsel %vm492, %v493, %v491
    %v495 = vrsqrt.pop %v487
    %v496 = vmul.f32 %v487, %v495
    %vm497 = vcmp.eq.f32.partialorder %v487, inf
    %v498 = vsel %vm497, %v487, %v496
    %vm499 = vcmp.eq.f32.partialorder %v487, 0.0
    %v500 = vand.u32 %v487, 2147483648
    %v501 = vsel %vm499, %v500, %v498
    %v502 = vmax.f32 %v494, 1e-15
    %v503 = vmax.f32 %v501, 1e-15
    %v504 = vmax.f32 %v502, -0.99999
    %v505 = vmax.f32 %v503, -0.99999
    %v506 = vmin.f32 %v504, 0.99999
    %v507 = vmin.f32 %v505, 0.99999
    %v508 = vadd.f32 %v506, 1.0
    %v509 = vadd.f32 %v507, 1.0
    %v510 = vsub.f32 1.0, %v506
    %v511 = vsub.f32 1.0, %v507
    %v512 = vrcp.pop %v510
    %v513 = vmul.f32 %v508, %v512
    %v514 = vrcp.pop %v511
    %v515 = vmul.f32 %v509, %v514
    %v516 = vlog2.pop %v513
    %v517 = vmul.f32 %v516, 0.6931472
    %v518 = vlog2.pop %v515
    %v519 = vmul.f32 %v518, 0.6931472
    %v520 = vmul.f32 %v517, 0.5
    %v521 = vmul.f32 %v519, 0.5
    %v522 = vrcp.pop %v502
    %v523 = vrcp.pop %v503
    %v524 = vmul.f32 %v520, %v522
    %v525 = vmul.f32 %v521, %v523
    %v526 = vmul.f32 %v477, %v524
    %v527 = vmul.f32 %v479, %v525
    %v528 = vld [vmem:[%s3] sm:$0xff]
    %v529 = vld [vmem:[%s3 + $0x8] sm:$0xff]
    %v530 = vld [vmem:[%s3 + $0x10] sm:$0xff]
    %v531 = vld [vmem:[%s3 + $0x18] sm:$0xff]
    %v532 = vld [vmem:[%s4] sm:$0x1]
    %v533 = vlaneseq
    %v534 = vshrl.u32 %v533, 7
    %v535 = vsub.s32 0, %v534
    %v536 = vrot.slane %v532, %v535
    %v538 = vsel %vm46, %v526, 0
    %v541 = vsel %vm46, %v527, 0
    %543 = vmatprep.subr.mxu0 0.0
    %544 = vmatpush1.msra.mxu0 0.0
    %545 = vmatprep.subr.mxu0 0.0
    %546 = vmatpush1.msra.mxu0 0.0
    %547 = vmatprep.subr.mxu0 0.0
    %548 = vmatpush1.msra.mxu0 0.0
    %549 = vmatprep.subr.mxu0 0.0
    %550 = vmatpush1.msra.mxu0 0.0
    %551 = vmatprep.subr.mxu0 0.0
    %552 = vmatpush1.msra.mxu0 0.0
    %553 = vmatprep.subr.mxu0 0.0
    %554 = vmatpush1.msra.mxu0 0.0
    %555 = vmatprep.subr.mxu0 0.0
    %556 = vmatpush1.msra.mxu0 0.0
    %557 = vmatprep.subr.mxu0 0.0
    %558 = vmatpush1.msra.mxu0 0.0
    %559 = vmatprep.subr.mxu0 0.0
    %560 = vmatpush1.msra.mxu0 0.0
    %561 = vmatprep.subr.mxu0 0.0
    %562 = vmatpush1.msra.mxu0 0.0
    %563 = vmatprep.subr.mxu0 0.0
    %564 = vmatpush1.msra.mxu0 0.0
    %565 = vmatprep.subr.mxu0 0.0
    %566 = vmatpush1.msra.mxu0 0.0
    %567 = vmatprep.subr.mxu0 0.0
    %568 = vmatpush1.msra.mxu0 %v531
    %569 = vmatprep.subr.mxu0 0.0
    %570 = vmatpush1.msra.mxu0 %v530
    %571 = vmatprep.subr.mxu0 0.0
    %572 = vmatpush1.msra.mxu0 %v529
    %573 = vmatprep.subr.mxu0 0.0
    %574 = vmatpush1.msra.mxu0 %v528
    %575 = vmatprep.subr.mxu0 0.0
    %576 = vmatpush2.msra.mxu0 0.0
    %577 = vmatprep.subr.mxu0 0.0
    %578 = vmatpush2.msra.mxu0 0.0
    %579 = vmatprep.subr.mxu0 0.0
    %580 = vmatpush2.msra.mxu0 0.0
    %581 = vmatprep.subr.mxu0 0.0
    %582 = vmatpush2.msra.mxu0 0.0
    %583 = vmatprep.subr.mxu0 0.0
    %584 = vmatpush2.msra.mxu0 0.0
    %585 = vmatprep.subr.mxu0 0.0
    %586 = vmatpush2.msra.mxu0 0.0
    %587 = vmatprep.subr.mxu0 0.0
    %588 = vmatpush2.msra.mxu0 0.0
    %589 = vmatprep.subr.mxu0 0.0
    %590 = vmatpush2.msra.mxu0 0.0
    %591 = vmatprep.subr.mxu0 0.0
    %592 = vmatpush2.msra.mxu0 0.0
    %593 = vmatprep.subr.mxu0 0.0
    %594 = vmatpush2.msra.mxu0 0.0
    %595 = vmatprep.subr.mxu0 0.0
    %596 = vmatpush2.msra.mxu0 0.0
    %597 = vmatprep.subr.mxu0 0.0
    %598 = vmatpush2.msra.mxu0 0.0
    %599 = vmatprep.subr.mxu0 0.0
    %600 = vmatpush2.msra.mxu0 0.0
    %601 = vmatprep.subr.mxu0 0.0
    %602 = vmatpush2.msra.mxu0 0.0
    %603 = vmatprep.subr.mxu0 0.0
    %604 = vmatpush2.msra.mxu0 0.0
    %605 = vmatprep.subr.mxu0 0.0
    %606 = vmatpush2.msra.mxu0 0.0
    %607 = vmatprep.mubr.f32.mxu0 0.0
    %608 = vmatmul.mubr.f32.gmra.mxu0 %v538
    %v609 = vpop.f32.mrf.mxu0
    %v610 = vadd.f32 %v536, %v609
    %v611 = vpop.f32.mrf.mxu0
    %612 = vmatprep.mubr.f32.mxu0 0.0
    %613 = vmatmul.mubr.f32.gmra.mxu0 %v541
    %v614 = vpop.f32.mrf.mxu0
    %v615 = vadd.f32 %v536, %v614
    %v616 = vpop.f32.mrf.mxu0
    %617 = vdwg.mxu0
    %s618 = scalar_lea.vmem %s3, 32
    %v619 = vld [vmem:[%s618] sm:$0xff]
    %v620 = vld [vmem:[%s618 + $0x8] sm:$0xff]
    %v621 = vld [vmem:[%s618 + $0x10] sm:$0xff]
    %v622 = vld [vmem:[%s618 + $0x18] sm:$0xff]
    %v623 = vld [vmem:[%s4 + $0x1] sm:$0x1]
    %v624 = vlaneseq
    %v625 = vshrl.u32 %v624, 7
    %v626 = vsub.s32 0, %v625
    %v627 = vrot.slane %v623, %v626
    %v629 = vsel %vm46, %v339, 0
    %v632 = vsel %vm46, %v340, 0
    %v635 = vsel %vm46, %v341, 0
    %v638 = vsel %vm46, %v342, 0
    %640 = vmatprep.subr.mxu0 0.0
    %641 = vmatpush1.msra.mxu0 0.0
    %642 = vmatprep.subr.mxu0 0.0
    %643 = vmatpush1.msra.mxu0 0.0
    %644 = vmatprep.subr.mxu0 0.0
    %645 = vmatpush1.msra.mxu0 0.0
    %646 = vmatprep.subr.mxu0 0.0
    %647 = vmatpush1.msra.mxu0 0.0
    %648 = vmatprep.subr.mxu0 0.0
    %649 = vmatpush1.msra.mxu0 0.0
    %650 = vmatprep.subr.mxu0 0.0
    %651 = vmatpush1.msra.mxu0 0.0
    %652 = vmatprep.subr.mxu0 0.0
    %653 = vmatpush1.msra.mxu0 0.0
    %654 = vmatprep.subr.mxu0 0.0
    %655 = vmatpush1.msra.mxu0 0.0
    %656 = vmatprep.subr.mxu0 0.0
    %657 = vmatpush1.msra.mxu0 0.0
    %658 = vmatprep.subr.mxu0 0.0
    %659 = vmatpush1.msra.mxu0 0.0
    %660 = vmatprep.subr.mxu0 0.0
    %661 = vmatpush1.msra.mxu0 0.0
    %662 = vmatprep.subr.mxu0 0.0
    %663 = vmatpush1.msra.mxu0 0.0
    %664 = vmatprep.subr.mxu0 0.0
    %665 = vmatpush1.msra.mxu0 %v622
    %666 = vmatprep.subr.mxu0 0.0
    %667 = vmatpush1.msra.mxu0 %v621
    %668 = vmatprep.subr.mxu0 0.0
    %669 = vmatpush1.msra.mxu0 %v620
    %670 = vmatprep.subr.mxu0 0.0
    %671 = vmatpush1.msra.mxu0 %v619
    %672 = vmatprep.subr.mxu0 0.0
    %673 = vmatpush2.msra.mxu0 0.0
    %674 = vmatprep.subr.mxu0 0.0
    %675 = vmatpush2.msra.mxu0 0.0
    %676 = vmatprep.subr.mxu0 0.0
    %677 = vmatpush2.msra.mxu0 0.0
    %678 = vmatprep.subr.mxu0 0.0
    %679 = vmatpush2.msra.mxu0 0.0
    %680 = vmatprep.subr.mxu0 0.0
    %681 = vmatpush2.msra.mxu0 0.0
    %682 = vmatprep.subr.mxu0 0.0
    %683 = vmatpush2.msra.mxu0 0.0
    %684 = vmatprep.subr.mxu0 0.0
    %685 = vmatpush2.msra.mxu0 0.0
    %686 = vmatprep.subr.mxu0 0.0
    %687 = vmatpush2.msra.mxu0 0.0
    %688 = vmatprep.subr.mxu0 0.0
    %689 = vmatpush2.msra.mxu0 0.0
    %690 = vmatprep.subr.mxu0 0.0
    %691 = vmatpush2.msra.mxu0 0.0
    %692 = vmatprep.subr.mxu0 0.0
    %693 = vmatpush2.msra.mxu0 0.0
    %694 = vmatprep.subr.mxu0 0.0
    %695 = vmatpush2.msra.mxu0 0.0
    %696 = vmatprep.subr.mxu0 0.0
    %697 = vmatpush2.msra.mxu0 0.0
    %698 = vmatprep.subr.mxu0 0.0
    %699 = vmatpush2.msra.mxu0 0.0
    %700 = vmatprep.subr.mxu0 0.0
    %701 = vmatpush2.msra.mxu0 0.0
    %702 = vmatprep.subr.mxu0 0.0
    %703 = vmatpush2.msra.mxu0 0.0
    %704 = vmatprep.mubr.f32.mxu0 0.0
    %705 = vmatmul.mubr.f32.gmra.mxu0 %v629
    %v706 = vpop.f32.mrf.mxu0
    %v707 = vadd.f32 %v627, %v706
    %v708 = vpop.f32.mrf.mxu0
    %709 = vmatprep.mubr.f32.mxu0 0.0
    %710 = vmatmul.mubr.f32.gmra.mxu0 %v632
    %v711 = vpop.f32.mrf.mxu0
    %v712 = vadd.f32 %v627, %v711
    %v713 = vpop.f32.mrf.mxu0
    %714 = vmatprep.mubr.f32.mxu0 0.0
    %715 = vmatmul.mubr.f32.gmra.mxu0 %v635
    %v716 = vpop.f32.mrf.mxu0
    %v717 = vadd.f32 %v627, %v716
    %v718 = vpop.f32.mrf.mxu0
    %719 = vmatprep.mubr.f32.mxu0 0.0
    %720 = vmatmul.mubr.f32.gmra.mxu0 %v638
    %v721 = vpop.f32.mrf.mxu0
    %v722 = vadd.f32 %v627, %v721
    %v723 = vpop.f32.mrf.mxu0
    %724 = vdwg.mxu0
    %s725 = scalar_lea.vmem %s3, 64
    %v726 = vld [vmem:[%s725] sm:$0xff]
    %v727 = vld [vmem:[%s725 + $0x8] sm:$0xff]
    %v728 = vld [vmem:[%s725 + $0x10] sm:$0xff]
    %v729 = vld [vmem:[%s725 + $0x18] sm:$0xff]
    %v730 = vld [vmem:[%s4 + $0x2] sm:$0x1]
    %v731 = vlaneseq
    %v732 = vshrl.u32 %v731, 7
    %v733 = vsub.s32 0, %v732
    %v734 = vrot.slane %v730, %v733
    %v736 = vsel %vm46, %v30, 0
    %v739 = vsel %vm46, %v31, 0
    %v742 = vsel %vm46, %v32, 0
    %v745 = vsel %vm46, %v33, 0
    %747 = vmatprep.subr.mxu0 0.0
    %748 = vmatpush1.msra.mxu0 0.0
    %749 = vmatprep.subr.mxu0 0.0
    %750 = vmatpush1.msra.mxu0 0.0
    %751 = vmatprep.subr.mxu0 0.0
    %752 = vmatpush1.msra.mxu0 0.0
    %753 = vmatprep.subr.mxu0 0.0
    %754 = vmatpush1.msra.mxu0 0.0
    %755 = vmatprep.subr.mxu0 0.0
    %756 = vmatpush1.msra.mxu0 0.0
    %757 = vmatprep.subr.mxu0 0.0
    %758 = vmatpush1.msra.mxu0 0.0
    %759 = vmatprep.subr.mxu0 0.0
    %760 = vmatpush1.msra.mxu0 0.0
    %761 = vmatprep.subr.mxu0 0.0
    %762 = vmatpush1.msra.mxu0 0.0
    %763 = vmatprep.subr.mxu0 0.0
    %764 = vmatpush1.msra.mxu0 0.0
    %765 = vmatprep.subr.mxu0 0.0
    %766 = vmatpush1.msra.mxu0 0.0
    %767 = vmatprep.subr.mxu0 0.0
    %768 = vmatpush1.msra.mxu0 0.0
    %769 = vmatprep.subr.mxu0 0.0
    %770 = vmatpush1.msra.mxu0 0.0
    %771 = vmatprep.subr.mxu0 0.0
    %772 = vmatpush1.msra.mxu0 %v729
    %773 = vmatprep.subr.mxu0 0.0
    %774 = vmatpush1.msra.mxu0 %v728
    %775 = vmatprep.subr.mxu0 0.0
    %776 = vmatpush1.msra.mxu0 %v727
    %777 = vmatprep.subr.mxu0 0.0
    %778 = vmatpush1.msra.mxu0 %v726
    %779 = vmatprep.subr.mxu0 0.0
    %780 = vmatpush2.msra.mxu0 0.0
    %781 = vmatprep.subr.mxu0 0.0
    %782 = vmatpush2.msra.mxu0 0.0
    %783 = vmatprep.subr.mxu0 0.0
    %784 = vmatpush2.msra.mxu0 0.0
    %785 = vmatprep.subr.mxu0 0.0
    %786 = vmatpush2.msra.mxu0 0.0
    %787 = vmatprep.subr.mxu0 0.0
    %788 = vmatpush2.msra.mxu0 0.0
    %789 = vmatprep.subr.mxu0 0.0
    %790 = vmatpush2.msra.mxu0 0.0
    %791 = vmatprep.subr.mxu0 0.0
    %792 = vmatpush2.msra.mxu0 0.0
    %793 = vmatprep.subr.mxu0 0.0
    %794 = vmatpush2.msra.mxu0 0.0
    %795 = vmatprep.subr.mxu0 0.0
    %796 = vmatpush2.msra.mxu0 0.0
    %797 = vmatprep.subr.mxu0 0.0
    %798 = vmatpush2.msra.mxu0 0.0
    %799 = vmatprep.subr.mxu0 0.0
    %800 = vmatpush2.msra.mxu0 0.0
    %801 = vmatprep.subr.mxu0 0.0
    %802 = vmatpush2.msra.mxu0 0.0
    %803 = vmatprep.subr.mxu0 0.0
    %804 = vmatpush2.msra.mxu0 0.0
    %805 = vmatprep.subr.mxu0 0.0
    %806 = vmatpush2.msra.mxu0 0.0
    %807 = vmatprep.subr.mxu0 0.0
    %808 = vmatpush2.msra.mxu0 0.0
    %809 = vmatprep.subr.mxu0 0.0
    %810 = vmatpush2.msra.mxu0 0.0
    %811 = vmatprep.mubr.f32.mxu0 0.0
    %812 = vmatmul.mubr.f32.gmra.mxu0 %v736
    %v813 = vpop.f32.mrf.mxu0
    %v814 = vadd.f32 %v734, %v813
    %v815 = vpop.f32.mrf.mxu0
    %816 = vmatprep.mubr.f32.mxu0 0.0
    %817 = vmatmul.mubr.f32.gmra.mxu0 %v739
    %v818 = vpop.f32.mrf.mxu0
    %v819 = vadd.f32 %v734, %v818
    %v820 = vpop.f32.mrf.mxu0
    %821 = vmatprep.mubr.f32.mxu0 0.0
    %822 = vmatmul.mubr.f32.gmra.mxu0 %v742
    %v823 = vpop.f32.mrf.mxu0
    %v824 = vadd.f32 %v734, %v823
    %v825 = vpop.f32.mrf.mxu0
    %826 = vmatprep.mubr.f32.mxu0 0.0
    %827 = vmatmul.mubr.f32.gmra.mxu0 %v745
    %v828 = vpop.f32.mrf.mxu0
    %v829 = vadd.f32 %v734, %v828
    %v830 = vpop.f32.mrf.mxu0
    %831 = vdwg.mxu0
    %s832 = scalar_lea.vmem %s3, 96
    %v833 = vld [vmem:[%s832] sm:$0xff]
    %v834 = vld [vmem:[%s832 + $0x8] sm:$0xff]
    %v835 = vld [vmem:[%s832 + $0x10] sm:$0xff]
    %v836 = vld [vmem:[%s832 + $0x18] sm:$0xff]
    %v837 = vld [vmem:[%s4 + $0x3] sm:$0x1]
    %v840 = vcombine.high %v610, %v610
    %v842 = vunpack.c.l.s4 1966171168
    %v843 = vunpack.c.0.s8 %v842
    %v844 = vlaneseq
    %v845 = vshrl.u32 %v844, 7
    %v846 = vsub.s32 %v843, %v845
    %v847 = vrot.slane %v610, %v846
    %v849 = vunpack.c.l.s4 1966171168
    %v850 = vunpack.c.0.s8 %v849
    %v851 = vlaneseq
    %v852 = vshrl.u32 %v851, 7
    %v853 = vsub.s32 %v850, %v852
    %v854 = vrot.slane %v840, %v853
    %v855 = vcombine.high %v847, %v847
    %v856 = vcombine.high %v854, %v854
    %v858 = vunpack.c.l.s4 1966171168
    %v859 = vunpack.c.0.s8 %v858
    %v860 = vlaneseq
    %v861 = vshrl.u32 %v860, 7
    %v862 = vsub.s32 %v859, %v861
    %v863 = vrot.slane %v847, %v862
    %v865 = vunpack.c.l.s4 1966171168
    %v866 = vunpack.c.0.s8 %v865
    %v867 = vlaneseq
    %v868 = vshrl.u32 %v867, 7
    %v869 = vsub.s32 %v866, %v868
    %v870 = vrot.slane %v854, %v869
    %v872 = vunpack.c.l.s4 1966171168
    %v873 = vunpack.c.0.s8 %v872
    %v874 = vlaneseq
    %v875 = vshrl.u32 %v874, 7
    %v876 = vsub.s32 %v873, %v875
    %v877 = vrot.slane %v855, %v876
    %v879 = vunpack.c.l.s4 1966171168
    %v880 = vunpack.c.0.s8 %v879
    %v881 = vlaneseq
    %v882 = vshrl.u32 %v881, 7
    %v883 = vsub.s32 %v880, %v882
    %v884 = vrot.slane %v856, %v883
    %v885 = vcombine.high %v863, %v863
    %v886 = vcombine.high %v870, %v870
    %v887 = vcombine.high %v877, %v877
    %v888 = vcombine.high %v884, %v884
    %v889 = vcombine.high %v615, %v615
    %v891 = vunpack.c.l.s4 1966171168
    %v892 = vunpack.c.0.s8 %v891
    %v893 = vlaneseq
    %v894 = vshrl.u32 %v893, 7
    %v895 = vsub.s32 %v892, %v894
    %v896 = vrot.slane %v615, %v895
    %v898 = vunpack.c.l.s4 1966171168
    %v899 = vunpack.c.0.s8 %v898
    %v900 = vlaneseq
    %v901 = vshrl.u32 %v900, 7
    %v902 = vsub.s32 %v899, %v901
    %v903 = vrot.slane %v889, %v902
    %v904 = vcombine.high %v896, %v896
    %v905 = vcombine.high %v903, %v903
    %v907 = vunpack.c.l.s4 1966171168
    %v908 = vunpack.c.0.s8 %v907
    %v909 = vlaneseq
    %v910 = vshrl.u32 %v909, 7
    %v911 = vsub.s32 %v908, %v910
    %v912 = vrot.slane %v896, %v911
    %v914 = vunpack.c.l.s4 1966171168
    %v915 = vunpack.c.0.s8 %v914
    %v916 = vlaneseq
    %v917 = vshrl.u32 %v916, 7
    %v918 = vsub.s32 %v915, %v917
    %v919 = vrot.slane %v903, %v918
    %v921 = vunpack.c.l.s4 1966171168
    %v922 = vunpack.c.0.s8 %v921
    %v923 = vlaneseq
    %v924 = vshrl.u32 %v923, 7
    %v925 = vsub.s32 %v922, %v924
    %v926 = vrot.slane %v904, %v925
    %v928 = vunpack.c.l.s4 1966171168
    %v929 = vunpack.c.0.s8 %v928
    %v930 = vlaneseq
    %v931 = vshrl.u32 %v930, 7
    %v932 = vsub.s32 %v929, %v931
    %v933 = vrot.slane %v905, %v932
    %v934 = vcombine.high %v912, %v912
    %v935 = vcombine.high %v919, %v919
    %v936 = vcombine.high %v926, %v926
    %v937 = vcombine.high %v933, %v933
    %v938 = vlaneseq
    %v939 = vshrl.u32 %v938, 7
    %v940 = vsub.s32 0, %v939
    %v941 = vrot.slane %v863, %v940
    %v942 = vlaneseq
    %v943 = vshrl.u32 %v942, 7
    %v944 = vsub.s32 0, %v943
    %v945 = vrot.slane %v877, %v944
    %v946 = vlaneseq
    %v947 = vshrl.u32 %v946, 7
    %v948 = vsub.s32 0, %v947
    %v949 = vrot.slane %v885, %v948
    %v950 = vlaneseq
    %v951 = vshrl.u32 %v950, 7
    %v952 = vsub.s32 0, %v951
    %v953 = vrot.slane %v887, %v952
    %v954 = vlaneseq
    %v955 = vshrl.u32 %v954, 7
    %v956 = vsub.s32 0, %v955
    %v957 = vrot.slane %v870, %v956
    %v958 = vlaneseq
    %v959 = vshrl.u32 %v958, 7
    %v960 = vsub.s32 0, %v959
    %v961 = vrot.slane %v884, %v960
    %v962 = vlaneseq
    %v963 = vshrl.u32 %v962, 7
    %v964 = vsub.s32 0, %v963
    %v965 = vrot.slane %v886, %v964
    %v966 = vlaneseq
    %v967 = vshrl.u32 %v966, 7
    %v968 = vsub.s32 0, %v967
    %v969 = vrot.slane %v888, %v968
    %v970 = vlaneseq
    %v971 = vshrl.u32 %v970, 7
    %v972 = vsub.s32 0, %v971
    %v973 = vrot.slane %v912, %v972
    %v974 = vlaneseq
    %v975 = vshrl.u32 %v974, 7
    %v976 = vsub.s32 0, %v975
    %v977 = vrot.slane %v926, %v976
    %v978 = vlaneseq
    %v979 = vshrl.u32 %v978, 7
    %v980 = vsub.s32 0, %v979
    %v981 = vrot.slane %v934, %v980
    %v982 = vlaneseq
    %v983 = vshrl.u32 %v982, 7
    %v984 = vsub.s32 0, %v983
    %v985 = vrot.slane %v936, %v984
    %v986 = vlaneseq
    %v987 = vshrl.u32 %v986, 7
    %v988 = vsub.s32 0, %v987
    %v989 = vrot.slane %v919, %v988
    %v990 = vlaneseq
    %v991 = vshrl.u32 %v990, 7
    %v992 = vsub.s32 0, %v991
    %v993 = vrot.slane %v933, %v992
    %v994 = vlaneseq
    %v995 = vshrl.u32 %v994, 7
    %v996 = vsub.s32 0, %v995
    %v997 = vrot.slane %v935, %v996
    %v998 = vlaneseq
    %v999 = vshrl.u32 %v998, 7
    %v1000 = vsub.s32 0, %v999
    %v1001 = vrot.slane %v937, %v1000
    %v1018 = vmul.f32 %v941, %v707
    %v1019 = vmul.f32 %v941, %v712
    %v1020 = vmul.f32 %v945, %v707
    %v1021 = vmul.f32 %v945, %v712
    %v1022 = vmul.f32 %v949, %v707
    %v1023 = vmul.f32 %v949, %v712
    %v1024 = vmul.f32 %v953, %v707
    %v1025 = vmul.f32 %v953, %v712
    %v1026 = vmul.f32 %v957, %v707
    %v1027 = vmul.f32 %v957, %v712
    %v1028 = vmul.f32 %v961, %v707
    %v1029 = vmul.f32 %v961, %v712
    %v1030 = vmul.f32 %v965, %v707
    %v1031 = vmul.f32 %v965, %v712
    %v1032 = vmul.f32 %v969, %v707
    %v1033 = vmul.f32 %v969, %v712
    %v1034 = vmul.f32 %v973, %v717
    %v1035 = vmul.f32 %v973, %v722
    %v1036 = vmul.f32 %v977, %v717
    %v1037 = vmul.f32 %v977, %v722
    %v1038 = vmul.f32 %v981, %v717
    %v1039 = vmul.f32 %v981, %v722
    %v1040 = vmul.f32 %v985, %v717
    %v1041 = vmul.f32 %v985, %v722
    %v1042 = vmul.f32 %v989, %v717
    %v1043 = vmul.f32 %v989, %v722
    %v1044 = vmul.f32 %v993, %v717
    %v1045 = vmul.f32 %v993, %v722
    %v1046 = vmul.f32 %v997, %v717
    %v1047 = vmul.f32 %v997, %v722
    %v1048 = vmul.f32 %v1001, %v717
    %v1049 = vmul.f32 %v1001, %v722
    %v1051 = vsel %vm46, %v1018, 0
    %v1054 = vsel %vm46, %v1019, 0
    %v1057 = vsel %vm46, %v1020, 0
    %v1060 = vsel %vm46, %v1021, 0
    %v1063 = vsel %vm46, %v1022, 0
    %v1066 = vsel %vm46, %v1023, 0
    %v1069 = vsel %vm46, %v1024, 0
    %v1072 = vsel %vm46, %v1025, 0
    %v1075 = vsel %vm46, %v1026, 0
    %v1078 = vsel %vm46, %v1027, 0
    %v1081 = vsel %vm46, %v1028, 0
    %v1084 = vsel %vm46, %v1029, 0
    %v1087 = vsel %vm46, %v1030, 0
    %v1090 = vsel %vm46, %v1031, 0
    %v1093 = vsel %vm46, %v1032, 0
    %v1096 = vsel %vm46, %v1033, 0
    %v1099 = vsel %vm46, %v1034, 0
    %v1102 = vsel %vm46, %v1035, 0
    %v1105 = vsel %vm46, %v1036, 0
    %v1108 = vsel %vm46, %v1037, 0
    %v1111 = vsel %vm46, %v1038, 0
    %v1114 = vsel %vm46, %v1039, 0
    %v1117 = vsel %vm46, %v1040, 0
    %v1120 = vsel %vm46, %v1041, 0
    %v1123 = vsel %vm46, %v1042, 0
    %v1126 = vsel %vm46, %v1043, 0
    %v1129 = vsel %vm46, %v1044, 0
    %v1132 = vsel %vm46, %v1045, 0
    %v1135 = vsel %vm46, %v1046, 0
    %v1138 = vsel %vm46, %v1047, 0
    %v1141 = vsel %vm46, %v1048, 0
    %v1144 = vsel %vm46, %v1049, 0
    %1146 = vmatprep.subr.mxu0 0.0
    %1147 = vmatpush1.msra.mxu0 0.0
    %1148 = vmatprep.subr.mxu0 0.0
    %1149 = vmatpush1.msra.mxu0 0.0
    %1150 = vmatprep.subr.mxu0 0.0
    %1151 = vmatpush1.msra.mxu0 0.0
    %1152 = vmatprep.subr.mxu0 0.0
    %1153 = vmatpush1.msra.mxu0 0.0
    %1154 = vmatprep.subr.mxu0 0.0
    %1155 = vmatpush1.msra.mxu0 0.0
    %1156 = vmatprep.subr.mxu0 0.0
    %1157 = vmatpush1.msra.mxu0 0.0
    %1158 = vmatprep.subr.mxu0 0.0
    %1159 = vmatpush1.msra.mxu0 0.0
    %1160 = vmatprep.subr.mxu0 0.0
    %1161 = vmatpush1.msra.mxu0 0.0
    %1162 = vmatprep.subr.mxu0 0.0
    %1163 = vmatpush1.msra.mxu0 0.0
    %1164 = vmatprep.subr.mxu0 0.0
    %1165 = vmatpush1.msra.mxu0 0.0
    %1166 = vmatprep.subr.mxu0 0.0
    %1167 = vmatpush1.msra.mxu0 0.0
    %1168 = vmatprep.subr.mxu0 0.0
    %1169 = vmatpush1.msra.mxu0 0.0
    %1170 = vmatprep.subr.mxu0 0.0
    %1171 = vmatpush1.msra.mxu0 %v368
    %1172 = vmatprep.subr.mxu0 0.0
    %1173 = vmatpush1.msra.mxu0 %v367
    %1174 = vmatprep.subr.mxu0 0.0
    %1175 = vmatpush1.msra.mxu0 %v366
    %1176 = vmatprep.subr.mxu0 0.0
    %1177 = vmatpush1.msra.mxu0 %v365
    %1178 = vmatprep.subr.mxu0 0.0
    %1179 = vmatpush2.msra.mxu0 0.0
    %1180 = vmatprep.subr.mxu0 0.0
    %1181 = vmatpush2.msra.mxu0 0.0
    %1182 = vmatprep.subr.mxu0 0.0
    %1183 = vmatpush2.msra.mxu0 0.0
    %1184 = vmatprep.subr.mxu0 0.0
    %1185 = vmatpush2.msra.mxu0 0.0
    %1186 = vmatprep.subr.mxu0 0.0
    %1187 = vmatpush2.msra.mxu0 0.0
    %1188 = vmatprep.subr.mxu0 0.0
    %1189 = vmatpush2.msra.mxu0 0.0
    %1190 = vmatprep.subr.mxu0 0.0
    %1191 = vmatpush2.msra.mxu0 0.0
    %1192 = vmatprep.subr.mxu0 0.0
    %1193 = vmatpush2.msra.mxu0 0.0
    %1194 = vmatprep.subr.mxu0 0.0
    %1195 = vmatpush2.msra.mxu0 0.0
    %1196 = vmatprep.subr.mxu0 0.0
    %1197 = vmatpush2.msra.mxu0 0.0
    %1198 = vmatprep.subr.mxu0 0.0
    %1199 = vmatpush2.msra.mxu0 0.0
    %1200 = vmatprep.subr.mxu0 0.0
    %1201 = vmatpush2.msra.mxu0 0.0
    %1202 = vmatprep.subr.mxu0 0.0
    %1203 = vmatpush2.msra.mxu0 0.0
    %1204 = vmatprep.subr.mxu0 0.0
    %1205 = vmatpush2.msra.mxu0 0.0
    %1206 = vmatprep.subr.mxu0 0.0
    %1207 = vmatpush2.msra.mxu0 0.0
    %1208 = vmatprep.subr.mxu0 0.0
    %1209 = vmatpush2.msra.mxu0 0.0
    %1210 = vmatprep.mubr.f32.mxu0 0.0
    %1211 = vmatmul.mubr.f32.gmra.mxu0 %v1051
    %v1212 = vpop.f32.mrf.mxu0
    %v1213 = vadd.f32 0.0, %v1212
    %v1214 = vpop.f32.mrf.mxu0
    %1215 = vmatprep.mubr.f32.mxu0 0.0
    %1216 = vmatmul.mubr.f32.gmra.mxu0 %v1054
    %v1217 = vpop.f32.mrf.mxu0
    %v1218 = vadd.f32 0.0, %v1217
    %v1219 = vpop.f32.mrf.mxu0
    %1220 = vmatprep.mubr.f32.mxu0 0.0
    %1221 = vmatmul.mubr.f32.gmra.mxu0 %v1057
    %v1222 = vpop.f32.mrf.mxu0
    %v1223 = vadd.f32 0.0, %v1222
    %v1224 = vpop.f32.mrf.mxu0
    %1225 = vmatprep.mubr.f32.mxu0 0.0
    %1226 = vmatmul.mubr.f32.gmra.mxu0 %v1060
    %v1227 = vpop.f32.mrf.mxu0
    %v1228 = vadd.f32 0.0, %v1227
    %v1229 = vpop.f32.mrf.mxu0
    %1230 = vmatprep.mubr.f32.mxu0 0.0
    %1231 = vmatmul.mubr.f32.gmra.mxu0 %v1063
    %v1232 = vpop.f32.mrf.mxu0
    %v1233 = vadd.f32 0.0, %v1232
    %v1234 = vpop.f32.mrf.mxu0
    %1235 = vmatprep.mubr.f32.mxu0 0.0
    %1236 = vmatmul.mubr.f32.gmra.mxu0 %v1066
    %v1237 = vpop.f32.mrf.mxu0
    %v1238 = vadd.f32 0.0, %v1237
    %v1239 = vpop.f32.mrf.mxu0
    %1240 = vmatprep.mubr.f32.mxu0 0.0
    %1241 = vmatmul.mubr.f32.gmra.mxu0 %v1069
    %v1242 = vpop.f32.mrf.mxu0
    %v1243 = vadd.f32 0.0, %v1242
    %v1244 = vpop.f32.mrf.mxu0
    %1245 = vmatprep.mubr.f32.mxu0 0.0
    %1246 = vmatmul.mubr.f32.gmra.mxu0 %v1072
    %v1247 = vpop.f32.mrf.mxu0
    %v1248 = vadd.f32 0.0, %v1247
    %v1249 = vpop.f32.mrf.mxu0
    %1250 = vmatprep.mubr.f32.mxu0 0.0
    %1251 = vmatmul.mubr.f32.gmra.mxu0 %v1075
    %v1252 = vpop.f32.mrf.mxu0
    %v1253 = vadd.f32 0.0, %v1252
    %v1254 = vpop.f32.mrf.mxu0
    %1255 = vmatprep.mubr.f32.mxu0 0.0
    %1256 = vmatmul.mubr.f32.gmra.mxu0 %v1078
    %v1257 = vpop.f32.mrf.mxu0
    %v1258 = vadd.f32 0.0, %v1257
    %v1259 = vpop.f32.mrf.mxu0
    %1260 = vmatprep.mubr.f32.mxu0 0.0
    %1261 = vmatmul.mubr.f32.gmra.mxu0 %v1081
    %v1262 = vpop.f32.mrf.mxu0
    %v1263 = vadd.f32 0.0, %v1262
    %v1264 = vpop.f32.mrf.mxu0
    %1265 = vmatprep.mubr.f32.mxu0 0.0
    %1266 = vmatmul.mubr.f32.gmra.mxu0 %v1084
    %v1267 = vpop.f32.mrf.mxu0
    %v1268 = vadd.f32 0.0, %v1267
    %v1269 = vpop.f32.mrf.mxu0
    %1270 = vmatprep.mubr.f32.mxu0 0.0
    %1271 = vmatmul.mubr.f32.gmra.mxu0 %v1087
    %v1272 = vpop.f32.mrf.mxu0
    %v1273 = vadd.f32 0.0, %v1272
    %v1274 = vpop.f32.mrf.mxu0
    %1275 = vmatprep.mubr.f32.mxu0 0.0
    %1276 = vmatmul.mubr.f32.gmra.mxu0 %v1090
    %v1277 = vpop.f32.mrf.mxu0
    %v1278 = vadd.f32 0.0, %v1277
    %v1279 = vpop.f32.mrf.mxu0
    %1280 = vmatprep.mubr.f32.mxu0 0.0
    %1281 = vmatmul.mubr.f32.gmra.mxu0 %v1093
    %v1282 = vpop.f32.mrf.mxu0
    %v1283 = vadd.f32 0.0, %v1282
    %v1284 = vpop.f32.mrf.mxu0
    %1285 = vmatprep.mubr.f32.mxu0 0.0
    %1286 = vmatmul.mubr.f32.gmra.mxu0 %v1096
    %v1287 = vpop.f32.mrf.mxu0
    %v1288 = vadd.f32 0.0, %v1287
    %v1289 = vpop.f32.mrf.mxu0
    %1290 = vmatprep.mubr.f32.mxu0 0.0
    %1291 = vmatmul.mubr.f32.gmra.mxu0 %v1099
    %v1292 = vpop.f32.mrf.mxu0
    %v1293 = vadd.f32 0.0, %v1292
    %v1294 = vpop.f32.mrf.mxu0
    %1295 = vmatprep.mubr.f32.mxu0 0.0
    %1296 = vmatmul.mubr.f32.gmra.mxu0 %v1102
    %v1297 = vpop.f32.mrf.mxu0
    %v1298 = vadd.f32 0.0, %v1297
    %v1299 = vpop.f32.mrf.mxu0
    %1300 = vmatprep.mubr.f32.mxu0 0.0
    %1301 = vmatmul.mubr.f32.gmra.mxu0 %v1105
    %v1302 = vpop.f32.mrf.mxu0
    %v1303 = vadd.f32 0.0, %v1302
    %v1304 = vpop.f32.mrf.mxu0
    %1305 = vmatprep.mubr.f32.mxu0 0.0
    %1306 = vmatmul.mubr.f32.gmra.mxu0 %v1108
    %v1307 = vpop.f32.mrf.mxu0
    %v1308 = vadd.f32 0.0, %v1307
    %v1309 = vpop.f32.mrf.mxu0
    %1310 = vmatprep.mubr.f32.mxu0 0.0
    %1311 = vmatmul.mubr.f32.gmra.mxu0 %v1111
    %v1312 = vpop.f32.mrf.mxu0
    %v1313 = vadd.f32 0.0, %v1312
    %v1314 = vpop.f32.mrf.mxu0
    %1315 = vmatprep.mubr.f32.mxu0 0.0
    %1316 = vmatmul.mubr.f32.gmra.mxu0 %v1114
    %v1317 = vpop.f32.mrf.mxu0
    %v1318 = vadd.f32 0.0, %v1317
    %v1319 = vpop.f32.mrf.mxu0
    %1320 = vmatprep.mubr.f32.mxu0 0.0
    %1321 = vmatmul.mubr.f32.gmra.mxu0 %v1117
    %v1322 = vpop.f32.mrf.mxu0
    %v1323 = vadd.f32 0.0, %v1322
    %v1324 = vpop.f32.mrf.mxu0
    %1325 = vmatprep.mubr.f32.mxu0 0.0
    %1326 = vmatmul.mubr.f32.gmra.mxu0 %v1120
    %v1327 = vpop.f32.mrf.mxu0
    %v1328 = vadd.f32 0.0, %v1327
    %v1329 = vpop.f32.mrf.mxu0
    %1330 = vmatprep.mubr.f32.mxu0 0.0
    %1331 = vmatmul.mubr.f32.gmra.mxu0 %v1123
    %v1332 = vpop.f32.mrf.mxu0
    %v1333 = vadd.f32 0.0, %v1332
    %v1334 = vpop.f32.mrf.mxu0
    %1335 = vmatprep.mubr.f32.mxu0 0.0
    %1336 = vmatmul.mubr.f32.gmra.mxu0 %v1126
    %v1337 = vpop.f32.mrf.mxu0
    %v1338 = vadd.f32 0.0, %v1337
    %v1339 = vpop.f32.mrf.mxu0
    %1340 = vmatprep.mubr.f32.mxu0 0.0
    %1341 = vmatmul.mubr.f32.gmra.mxu0 %v1129
    %v1342 = vpop.f32.mrf.mxu0
    %v1343 = vadd.f32 0.0, %v1342
    %v1344 = vpop.f32.mrf.mxu0
    %1345 = vmatprep.mubr.f32.mxu0 0.0
    %1346 = vmatmul.mubr.f32.gmra.mxu0 %v1132
    %v1347 = vpop.f32.mrf.mxu0
    %v1348 = vadd.f32 0.0, %v1347
    %v1349 = vpop.f32.mrf.mxu0
    %1350 = vmatprep.mubr.f32.mxu0 0.0
    %1351 = vmatmul.mubr.f32.gmra.mxu0 %v1135
    %v1352 = vpop.f32.mrf.mxu0
    %v1353 = vadd.f32 0.0, %v1352
    %v1354 = vpop.f32.mrf.mxu0
    %1355 = vmatprep.mubr.f32.mxu0 0.0
    %1356 = vmatmul.mubr.f32.gmra.mxu0 %v1138
    %v1357 = vpop.f32.mrf.mxu0
    %v1358 = vadd.f32 0.0, %v1357
    %v1359 = vpop.f32.mrf.mxu0
    %1360 = vmatprep.mubr.f32.mxu0 0.0
    %1361 = vmatmul.mubr.f32.gmra.mxu0 %v1141
    %v1362 = vpop.f32.mrf.mxu0
    %v1363 = vadd.f32 0.0, %v1362
    %v1364 = vpop.f32.mrf.mxu0
    %1365 = vmatprep.mubr.f32.mxu0 0.0
    %1366 = vmatmul.mubr.f32.gmra.mxu0 %v1144
    %v1367 = vpop.f32.mrf.mxu0
    %v1368 = vadd.f32 0.0, %v1367
    %v1369 = vpop.f32.mrf.mxu0
    %1370 = vdwg.mxu0
    %vm1371 = vcmask 31744
    %v1372 = vsel %vm1371, %v1213, -inf
    %v1373 = vsel %vm1371, %v1218, -inf
    %v1374 = vmax.f32 %v1372, %v1373
    %v1375 = vrot.slane %v1374, 4
    %v1376 = vmax.f32 %v1374, %v1375
    %v1377 = vrot.slane %v1376, 2
    %v1378 = vmax.f32 %v1376, %v1377
    %v1379 = vrot.slane %v1378, 1
    %v1380 = vmax.f32 %v1378, %v1379
    %v1381 = vsel %vm1371, %v1223, -inf
    %v1382 = vsel %vm1371, %v1228, -inf
    %v1383 = vmax.f32 %v1381, %v1382
    %v1384 = vrot.slane %v1383, 4
    %v1385 = vmax.f32 %v1383, %v1384
    %v1386 = vrot.slane %v1385, 2
    %v1387 = vmax.f32 %v1385, %v1386
    %v1388 = vrot.slane %v1387, 1
    %v1389 = vmax.f32 %v1387, %v1388
    %v1390 = vsel %vm1371, %v1233, -inf
    %v1391 = vsel %vm1371, %v1238, -inf
    %v1392 = vmax.f32 %v1390, %v1391
    %v1393 = vrot.slane %v1392, 4
    %v1394 = vmax.f32 %v1392, %v1393
    %v1395 = vrot.slane %v1394, 2
    %v1396 = vmax.f32 %v1394, %v1395
    %v1397 = vrot.slane %v1396, 1
    %v1398 = vmax.f32 %v1396, %v1397
    %v1399 = vsel %vm1371, %v1243, -inf
    %v1400 = vsel %vm1371, %v1248, -inf
    %v1401 = vmax.f32 %v1399, %v1400
    %v1402 = vrot.slane %v1401, 4
    %v1403 = vmax.f32 %v1401, %v1402
    %v1404 = vrot.slane %v1403, 2
    %v1405 = vmax.f32 %v1403, %v1404
    %v1406 = vrot.slane %v1405, 1
    %v1407 = vmax.f32 %v1405, %v1406
    %v1408 = vsel %vm1371, %v1253, -inf
    %v1409 = vsel %vm1371, %v1258, -inf
    %v1410 = vmax.f32 %v1408, %v1409
    %v1411 = vrot.slane %v1410, 4
    %v1412 = vmax.f32 %v1410, %v1411
    %v1413 = vrot.slane %v1412, 2
    %v1414 = vmax.f32 %v1412, %v1413
    %v1415 = vrot.slane %v1414, 1
    %v1416 = vmax.f32 %v1414, %v1415
    %v1417 = vsel %vm1371, %v1263, -inf
    %v1418 = vsel %vm1371, %v1268, -inf
    %v1419 = vmax.f32 %v1417, %v1418
    %v1420 = vrot.slane %v1419, 4
    %v1421 = vmax.f32 %v1419, %v1420
    %v1422 = vrot.slane %v1421, 2
    %v1423 = vmax.f32 %v1421, %v1422
    %v1424 = vrot.slane %v1423, 1
    %v1425 = vmax.f32 %v1423, %v1424
    %v1426 = vsel %vm1371, %v1273, -inf
    %v1427 = vsel %vm1371, %v1278, -inf
    %v1428 = vmax.f32 %v1426, %v1427
    %v1429 = vrot.slane %v1428, 4
    %v1430 = vmax.f32 %v1428, %v1429
    %v1431 = vrot.slane %v1430, 2
    %v1432 = vmax.f32 %v1430, %v1431
    %v1433 = vrot.slane %v1432, 1
    %v1434 = vmax.f32 %v1432, %v1433
    %v1435 = vsel %vm1371, %v1283, -inf
    %v1436 = vsel %vm1371, %v1288, -inf
    %v1437 = vmax.f32 %v1435, %v1436
    %v1438 = vrot.slane %v1437, 4
    %v1439 = vmax.f32 %v1437, %v1438
    %v1440 = vrot.slane %v1439, 2
    %v1441 = vmax.f32 %v1439, %v1440
    %v1442 = vrot.slane %v1441, 1
    %v1443 = vmax.f32 %v1441, %v1442
    %v1444 = vsel %vm1371, %v1293, -inf
    %v1445 = vsel %vm1371, %v1298, -inf
    %v1446 = vmax.f32 %v1444, %v1445
    %v1447 = vrot.slane %v1446, 4
    %v1448 = vmax.f32 %v1446, %v1447
    %v1449 = vrot.slane %v1448, 2
    %v1450 = vmax.f32 %v1448, %v1449
    %v1451 = vrot.slane %v1450, 1
    %v1452 = vmax.f32 %v1450, %v1451
    %v1453 = vsel %vm1371, %v1303, -inf
    %v1454 = vsel %vm1371, %v1308, -inf
    %v1455 = vmax.f32 %v1453, %v1454
    %v1456 = vrot.slane %v1455, 4
    %v1457 = vmax.f32 %v1455, %v1456
    %v1458 = vrot.slane %v1457, 2
    %v1459 = vmax.f32 %v1457, %v1458
    %v1460 = vrot.slane %v1459, 1
    %v1461 = vmax.f32 %v1459, %v1460
    %v1462 = vsel %vm1371, %v1313, -inf
    %v1463 = vsel %vm1371, %v1318, -inf
    %v1464 = vmax.f32 %v1462, %v1463
    %v1465 = vrot.slane %v1464, 4
    %v1466 = vmax.f32 %v1464, %v1465
    %v1467 = vrot.slane %v1466, 2
    %v1468 = vmax.f32 %v1466, %v1467
    %v1469 = vrot.slane %v1468, 1
    %v1470 = vmax.f32 %v1468, %v1469
    %v1471 = vsel %vm1371, %v1323, -inf
    %v1472 = vsel %vm1371, %v1328, -inf
    %v1473 = vmax.f32 %v1471, %v1472
    %v1474 = vrot.slane %v1473, 4
    %v1475 = vmax.f32 %v1473, %v1474
    %v1476 = vrot.slane %v1475, 2
    %v1477 = vmax.f32 %v1475, %v1476
    %v1478 = vrot.slane %v1477, 1
    %v1479 = vmax.f32 %v1477, %v1478
    %v1480 = vsel %vm1371, %v1333, -inf
    %v1481 = vsel %vm1371, %v1338, -inf
    %v1482 = vmax.f32 %v1480, %v1481
    %v1483 = vrot.slane %v1482, 4
    %v1484 = vmax.f32 %v1482, %v1483
    %v1485 = vrot.slane %v1484, 2
    %v1486 = vmax.f32 %v1484, %v1485
    %v1487 = vrot.slane %v1486, 1
    %v1488 = vmax.f32 %v1486, %v1487
    %v1489 = vsel %vm1371, %v1343, -inf
    %v1490 = vsel %vm1371, %v1348, -inf
    %v1491 = vmax.f32 %v1489, %v1490
    %v1492 = vrot.slane %v1491, 4
    %v1493 = vmax.f32 %v1491, %v1492
    %v1494 = vrot.slane %v1493, 2
    %v1495 = vmax.f32 %v1493, %v1494
    %v1496 = vrot.slane %v1495, 1
    %v1497 = vmax.f32 %v1495, %v1496
    %v1498 = vsel %vm1371, %v1353, -inf
    %v1499 = vsel %vm1371, %v1358, -inf
    %v1500 = vmax.f32 %v1498, %v1499
    %v1501 = vrot.slane %v1500, 4
    %v1502 = vmax.f32 %v1500, %v1501
    %v1503 = vrot.slane %v1502, 2
    %v1504 = vmax.f32 %v1502, %v1503
    %v1505 = vrot.slane %v1504, 1
    %v1506 = vmax.f32 %v1504, %v1505
    %v1507 = vsel %vm1371, %v1363, -inf
    %v1508 = vsel %vm1371, %v1368, -inf
    %v1509 = vmax.f32 %v1507, %v1508
    %v1510 = vrot.slane %v1509, 4
    %v1511 = vmax.f32 %v1509, %v1510
    %v1512 = vrot.slane %v1511, 2
    %v1513 = vmax.f32 %v1511, %v1512
    %v1514 = vrot.slane %v1513, 1
    %v1515 = vmax.f32 %v1513, %v1514
    %v1516 = vsub.f32 %v1213, %v1380
    %v1517 = vsub.f32 %v1218, %v1380
    %v1518 = vsub.f32 %v1223, %v1389
    %v1519 = vsub.f32 %v1228, %v1389
    %v1520 = vsub.f32 %v1233, %v1398
    %v1521 = vsub.f32 %v1238, %v1398
    %v1522 = vsub.f32 %v1243, %v1407
    %v1523 = vsub.f32 %v1248, %v1407
    %v1524 = vsub.f32 %v1253, %v1416
    %v1525 = vsub.f32 %v1258, %v1416
    %v1526 = vsub.f32 %v1263, %v1425
    %v1527 = vsub.f32 %v1268, %v1425
    %v1528 = vsub.f32 %v1273, %v1434
    %v1529 = vsub.f32 %v1278, %v1434
    %v1530 = vsub.f32 %v1283, %v1443
    %v1531 = vsub.f32 %v1288, %v1443
    %v1532 = vsub.f32 %v1293, %v1452
    %v1533 = vsub.f32 %v1298, %v1452
    %v1534 = vsub.f32 %v1303, %v1461
    %v1535 = vsub.f32 %v1308, %v1461
    %v1536 = vsub.f32 %v1313, %v1470
    %v1537 = vsub.f32 %v1318, %v1470
    %v1538 = vsub.f32 %v1323, %v1479
    %v1539 = vsub.f32 %v1328, %v1479
    %v1540 = vsub.f32 %v1333, %v1488
    %v1541 = vsub.f32 %v1338, %v1488
    %v1542 = vsub.f32 %v1343, %v1497
    %v1543 = vsub.f32 %v1348, %v1497
    %v1544 = vsub.f32 %v1353, %v1506
    %v1545 = vsub.f32 %v1358, %v1506
    %v1546 = vsub.f32 %v1363, %v1515
    %v1547 = vsub.f32 %v1368, %v1515
    %v1548 = vmul.f32 %v1516, 1.442695
    %v1549 = vpow.pop %v1548
    %v1550 = vmul.f32 %v1517, 1.442695
    %v1551 = vpow.pop %v1550
    %v1552 = vmul.f32 %v1518, 1.442695
    %v1553 = vpow.pop %v1552
    %v1554 = vmul.f32 %v1519, 1.442695
    %v1555 = vpow.pop %v1554
    %v1556 = vmul.f32 %v1520, 1.442695
    %v1557 = vpow.pop %v1556
    %v1558 = vmul.f32 %v1521, 1.442695
    %v1559 = vpow.pop %v1558
    %v1560 = vmul.f32 %v1522, 1.442695
    %v1561 = vpow.pop %v1560
    %v1562 = vmul.f32 %v1523, 1.442695
    %v1563 = vpow.pop %v1562
    %v1564 = vmul.f32 %v1524, 1.442695
    %v1565 = vpow.pop %v1564
    %v1566 = vmul.f32 %v1525, 1.442695
    %v1567 = vpow.pop %v1566
    %v1568 = vmul.f32 %v1526, 1.442695
    %v1569 = vpow.pop %v1568
    %v1570 = vmul.f32 %v1527, 1.442695
    %v1571 = vpow.pop %v1570
    %v1572 = vmul.f32 %v1528, 1.442695
    %v1573 = vpow.pop %v1572
    %v1574 = vmul.f32 %v1529, 1.442695
    %v1575 = vpow.pop %v1574
    %v1576 = vmul.f32 %v1530, 1.442695
    %v1577 = vpow.pop %v1576
    %v1578 = vmul.f32 %v1531, 1.442695
    %v1579 = vpow.pop %v1578
    %v1580 = vmul.f32 %v1532, 1.442695
    %v1581 = vpow.pop %v1580
    %v1582 = vmul.f32 %v1533, 1.442695
    %v1583 = vpow.pop %v1582
    %v1584 = vmul.f32 %v1534, 1.442695
    %v1585 = vpow.pop %v1584
    %v1586 = vmul.f32 %v1535, 1.442695
    %v1587 = vpow.pop %v1586
    %v1588 = vmul.f32 %v1536, 1.442695
    %v1589 = vpow.pop %v1588
    %v1590 = vmul.f32 %v1537, 1.442695
    %v1591 = vpow.pop %v1590
    %v1592 = vmul.f32 %v1538, 1.442695
    %v1593 = vpow.pop %v1592
    %v1594 = vmul.f32 %v1539, 1.442695
    %v1595 = vpow.pop %v1594
    %v1596 = vmul.f32 %v1540, 1.442695
    %v1597 = vpow.pop %v1596
    %v1598 = vmul.f32 %v1541, 1.442695
    %v1599 = vpow.pop %v1598
    %v1600 = vmul.f32 %v1542, 1.442695
    %v1601 = vpow.pop %v1600
    %v1602 = vmul.f32 %v1543, 1.442695
    %v1603 = vpow.pop %v1602
    %v1604 = vmul.f32 %v1544, 1.442695
    %v1605 = vpow.pop %v1604
    %v1606 = vmul.f32 %v1545, 1.442695
    %v1607 = vpow.pop %v1606
    %v1608 = vmul.f32 %v1546, 1.442695
    %v1609 = vpow.pop %v1608
    %v1610 = vmul.f32 %v1547, 1.442695
    %v1611 = vpow.pop %v1610
    %v1612 = vsel %vm1371, %v1549, 0.0
    %v1613 = vsel %vm1371, %v1551, 0.0
    %v1614 = vadd.f32 %v1612, %v1613
    %v1615 = vrot.slane %v1614, 4
    %v1616 = vadd.f32 %v1614, %v1615
    %v1617 = vrot.slane %v1616, 2
    %v1618 = vadd.f32 %v1616, %v1617
    %v1619 = vrot.slane %v1618, 1
    %v1620 = vadd.f32 %v1618, %v1619
    %v1621 = vsel %vm1371, %v1553, 0.0
    %v1622 = vsel %vm1371, %v1555, 0.0
    %v1623 = vadd.f32 %v1621, %v1622
    %v1624 = vrot.slane %v1623, 4
    %v1625 = vadd.f32 %v1623, %v1624
    %v1626 = vrot.slane %v1625, 2
    %v1627 = vadd.f32 %v1625, %v1626
    %v1628 = vrot.slane %v1627, 1
    %v1629 = vadd.f32 %v1627, %v1628
    %v1630 = vsel %vm1371, %v1557, 0.0
    %v1631 = vsel %vm1371, %v1559, 0.0
    %v1632 = vadd.f32 %v1630, %v1631
    %v1633 = vrot.slane %v1632, 4
    %v1634 = vadd.f32 %v1632, %v1633
    %v1635 = vrot.slane %v1634, 2
    %v1636 = vadd.f32 %v1634, %v1635
    %v1637 = vrot.slane %v1636, 1
    %v1638 = vadd.f32 %v1636, %v1637
    %v1639 = vsel %vm1371, %v1561, 0.0
    %v1640 = vsel %vm1371, %v1563, 0.0
    %v1641 = vadd.f32 %v1639, %v1640
    %v1642 = vrot.slane %v1641, 4
    %v1643 = vadd.f32 %v1641, %v1642
    %v1644 = vrot.slane %v1643, 2
    %v1645 = vadd.f32 %v1643, %v1644
    %v1646 = vrot.slane %v1645, 1
    %v1647 = vadd.f32 %v1645, %v1646
    %v1648 = vsel %vm1371, %v1565, 0.0
    %v1649 = vsel %vm1371, %v1567, 0.0
    %v1650 = vadd.f32 %v1648, %v1649
    %v1651 = vrot.slane %v1650, 4
    %v1652 = vadd.f32 %v1650, %v1651
    %v1653 = vrot.slane %v1652, 2
    %v1654 = vadd.f32 %v1652, %v1653
    %v1655 = vrot.slane %v1654, 1
    %v1656 = vadd.f32 %v1654, %v1655
    %v1657 = vsel %vm1371, %v1569, 0.0
    %v1658 = vsel %vm1371, %v1571, 0.0
    %v1659 = vadd.f32 %v1657, %v1658
    %v1660 = vrot.slane %v1659, 4
    %v1661 = vadd.f32 %v1659, %v1660
    %v1662 = vrot.slane %v1661, 2
    %v1663 = vadd.f32 %v1661, %v1662
    %v1664 = vrot.slane %v1663, 1
    %v1665 = vadd.f32 %v1663, %v1664
    %v1666 = vsel %vm1371, %v1573, 0.0
    %v1667 = vsel %vm1371, %v1575, 0.0
    %v1668 = vadd.f32 %v1666, %v1667
    %v1669 = vrot.slane %v1668, 4
    %v1670 = vadd.f32 %v1668, %v1669
    %v1671 = vrot.slane %v1670, 2
    %v1672 = vadd.f32 %v1670, %v1671
    %v1673 = vrot.slane %v1672, 1
    %v1674 = vadd.f32 %v1672, %v1673
    %v1675 = vsel %vm1371, %v1577, 0.0
    %v1676 = vsel %vm1371, %v1579, 0.0
    %v1677 = vadd.f32 %v1675, %v1676
    %v1678 = vrot.slane %v1677, 4
    %v1679 = vadd.f32 %v1677, %v1678
    %v1680 = vrot.slane %v1679, 2
    %v1681 = vadd.f32 %v1679, %v1680
    %v1682 = vrot.slane %v1681, 1
    %v1683 = vadd.f32 %v1681, %v1682
    %v1684 = vsel %vm1371, %v1581, 0.0
    %v1685 = vsel %vm1371, %v1583, 0.0
    %v1686 = vadd.f32 %v1684, %v1685
    %v1687 = vrot.slane %v1686, 4
    %v1688 = vadd.f32 %v1686, %v1687
    %v1689 = vrot.slane %v1688, 2
    %v1690 = vadd.f32 %v1688, %v1689
    %v1691 = vrot.slane %v1690, 1
    %v1692 = vadd.f32 %v1690, %v1691
    %v1693 = vsel %vm1371, %v1585, 0.0
    %v1694 = vsel %vm1371, %v1587, 0.0
    %v1695 = vadd.f32 %v1693, %v1694
    %v1696 = vrot.slane %v1695, 4
    %v1697 = vadd.f32 %v1695, %v1696
    %v1698 = vrot.slane %v1697, 2
    %v1699 = vadd.f32 %v1697, %v1698
    %v1700 = vrot.slane %v1699, 1
    %v1701 = vadd.f32 %v1699, %v1700
    %v1702 = vsel %vm1371, %v1589, 0.0
    %v1703 = vsel %vm1371, %v1591, 0.0
    %v1704 = vadd.f32 %v1702, %v1703
    %v1705 = vrot.slane %v1704, 4
    %v1706 = vadd.f32 %v1704, %v1705
    %v1707 = vrot.slane %v1706, 2
    %v1708 = vadd.f32 %v1706, %v1707
    %v1709 = vrot.slane %v1708, 1
    %v1710 = vadd.f32 %v1708, %v1709
    %v1711 = vsel %vm1371, %v1593, 0.0
    %v1712 = vsel %vm1371, %v1595, 0.0
    %v1713 = vadd.f32 %v1711, %v1712
    %v1714 = vrot.slane %v1713, 4
    %v1715 = vadd.f32 %v1713, %v1714
    %v1716 = vrot.slane %v1715, 2
    %v1717 = vadd.f32 %v1715, %v1716
    %v1718 = vrot.slane %v1717, 1
    %v1719 = vadd.f32 %v1717, %v1718
    %v1720 = vsel %vm1371, %v1597, 0.0
    %v1721 = vsel %vm1371, %v1599, 0.0
    %v1722 = vadd.f32 %v1720, %v1721
    %v1723 = vrot.slane %v1722, 4
    %v1724 = vadd.f32 %v1722, %v1723
    %v1725 = vrot.slane %v1724, 2
    %v1726 = vadd.f32 %v1724, %v1725
    %v1727 = vrot.slane %v1726, 1
    %v1728 = vadd.f32 %v1726, %v1727
    %v1729 = vsel %vm1371, %v1601, 0.0
    %v1730 = vsel %vm1371, %v1603, 0.0
    %v1731 = vadd.f32 %v1729, %v1730
    %v1732 = vrot.slane %v1731, 4
    %v1733 = vadd.f32 %v1731, %v1732
    %v1734 = vrot.slane %v1733, 2
    %v1735 = vadd.f32 %v1733, %v1734
    %v1736 = vrot.slane %v1735, 1
    %v1737 = vadd.f32 %v1735, %v1736
    %v1738 = vsel %vm1371, %v1605, 0.0
    %v1739 = vsel %vm1371, %v1607, 0.0
    %v1740 = vadd.f32 %v1738, %v1739
    %v1741 = vrot.slane %v1740, 4
    %v1742 = vadd.f32 %v1740, %v1741
    %v1743 = vrot.slane %v1742, 2
    %v1744 = vadd.f32 %v1742, %v1743
    %v1745 = vrot.slane %v1744, 1
    %v1746 = vadd.f32 %v1744, %v1745
    %v1747 = vsel %vm1371, %v1609, 0.0
    %v1748 = vsel %vm1371, %v1611, 0.0
    %v1749 = vadd.f32 %v1747, %v1748
    %v1750 = vrot.slane %v1749, 4
    %v1751 = vadd.f32 %v1749, %v1750
    %v1752 = vrot.slane %v1751, 2
    %v1753 = vadd.f32 %v1751, %v1752
    %v1754 = vrot.slane %v1753, 1
    %v1755 = vadd.f32 %v1753, %v1754
    %v1756 = vrcp.pop %v1620
    %v1757 = vmul.f32 %v1549, %v1756
    %v1758 = vmul.f32 %v1551, %v1756
    %v1759 = vrcp.pop %v1629
    %v1760 = vmul.f32 %v1553, %v1759
    %v1761 = vmul.f32 %v1555, %v1759
    %v1762 = vrcp.pop %v1638
    %v1763 = vmul.f32 %v1557, %v1762
    %v1764 = vmul.f32 %v1559, %v1762
    %v1765 = vrcp.pop %v1647
    %v1766 = vmul.f32 %v1561, %v1765
    %v1767 = vmul.f32 %v1563, %v1765
    %v1768 = vrcp.pop %v1656
    %v1769 = vmul.f32 %v1565, %v1768
    %v1770 = vmul.f32 %v1567, %v1768
    %v1771 = vrcp.pop %v1665
    %v1772 = vmul.f32 %v1569, %v1771
    %v1773 = vmul.f32 %v1571, %v1771
    %v1774 = vrcp.pop %v1674
    %v1775 = vmul.f32 %v1573, %v1774
    %v1776 = vmul.f32 %v1575, %v1774
    %v1777 = vrcp.pop %v1683
    %v1778 = vmul.f32 %v1577, %v1777
    %v1779 = vmul.f32 %v1579, %v1777
    %v1780 = vrcp.pop %v1692
    %v1781 = vmul.f32 %v1581, %v1780
    %v1782 = vmul.f32 %v1583, %v1780
    %v1783 = vrcp.pop %v1701
    %v1784 = vmul.f32 %v1585, %v1783
    %v1785 = vmul.f32 %v1587, %v1783
    %v1786 = vrcp.pop %v1710
    %v1787 = vmul.f32 %v1589, %v1786
    %v1788 = vmul.f32 %v1591, %v1786
    %v1789 = vrcp.pop %v1719
    %v1790 = vmul.f32 %v1593, %v1789
    %v1791 = vmul.f32 %v1595, %v1789
    %v1792 = vrcp.pop %v1728
    %v1793 = vmul.f32 %v1597, %v1792
    %v1794 = vmul.f32 %v1599, %v1792
    %v1795 = vrcp.pop %v1737
    %v1796 = vmul.f32 %v1601, %v1795
    %v1797 = vmul.f32 %v1603, %v1795
    %v1798 = vrcp.pop %v1746
    %v1799 = vmul.f32 %v1605, %v1798
    %v1800 = vmul.f32 %v1607, %v1798
    %v1801 = vrcp.pop %v1755
    %v1802 = vmul.f32 %v1609, %v1801
    %v1803 = vmul.f32 %v1611, %v1801
    %v1805 = vsel %vm1371, %v1757, 0
    %v1808 = vsel %vm1371, %v1758, 0
    %v1811 = vsel %vm1371, %v1760, 0
    %v1814 = vsel %vm1371, %v1761, 0
    %v1817 = vsel %vm1371, %v1763, 0
    %v1820 = vsel %vm1371, %v1764, 0
    %v1823 = vsel %vm1371, %v1766, 0
    %v1826 = vsel %vm1371, %v1767, 0
    %v1829 = vsel %vm1371, %v1769, 0
    %v1832 = vsel %vm1371, %v1770, 0
    %v1835 = vsel %vm1371, %v1772, 0
    %v1838 = vsel %vm1371, %v1773, 0
    %v1841 = vsel %vm1371, %v1775, 0
    %v1844 = vsel %vm1371, %v1776, 0
    %v1847 = vsel %vm1371, %v1778, 0
    %v1850 = vsel %vm1371, %v1779, 0
    %v1853 = vsel %vm1371, %v1781, 0
    %v1856 = vsel %vm1371, %v1782, 0
    %v1859 = vsel %vm1371, %v1784, 0
    %v1862 = vsel %vm1371, %v1785, 0
    %v1865 = vsel %vm1371, %v1787, 0
    %v1868 = vsel %vm1371, %v1788, 0
    %v1871 = vsel %vm1371, %v1790, 0
    %v1874 = vsel %vm1371, %v1791, 0
    %v1877 = vsel %vm1371, %v1793, 0
    %v1880 = vsel %vm1371, %v1794, 0
    %v1883 = vsel %vm1371, %v1796, 0
    %v1886 = vsel %vm1371, %v1797, 0
    %v1889 = vsel %vm1371, %v1799, 0
    %v1892 = vsel %vm1371, %v1800, 0
    %v1895 = vsel %vm1371, %v1802, 0
    %v1898 = vsel %vm1371, %v1803, 0
    %vm1900 = vcmask 1043456
    %v1902 = vsel %vm1900, %v375, 0
    %1904 = vmatprep.subr.mxu0 0.0
    %1905 = vmatpush1.msra.mxu0 0.0
    %1906 = vmatprep.subr.mxu0 0.0
    %1907 = vmatpush1.msra.mxu0 0.0
    %1908 = vmatprep.subr.mxu0 0.0
    %1909 = vmatpush1.msra.mxu0 0.0
    %1910 = vmatprep.subr.mxu0 0.0
    %1911 = vmatpush1.msra.mxu0 0.0
    %1912 = vmatprep.subr.mxu0 0.0
    %1913 = vmatpush1.msra.mxu0 0.0
    %1914 = vmatprep.subr.mxu0 0.0
    %1915 = vmatpush1.msra.mxu0 0.0
    %1916 = vmatprep.subr.mxu0 0.0
    %1917 = vmatpush1.msra.mxu0 0.0
    %1918 = vmatprep.subr.mxu0 0.0
    %1919 = vmatpush1.msra.mxu0 0.0
    %1920 = vmatprep.subr.mxu0 0.0
    %1921 = vmatpush1.msra.mxu0 0.0
    %1922 = vmatprep.subr.mxu0 0.0
    %1923 = vmatpush1.msra.mxu0 0.0
    %1924 = vmatprep.subr.mxu0 0.0
    %1925 = vmatpush1.msra.mxu0 0.0
    %1926 = vmatprep.subr.mxu0 0.0
    %1927 = vmatpush1.msra.mxu0 0.0
    %1928 = vmatprep.subr.mxu0 0.0
    %1929 = vmatpush1.msra.mxu0 0.0
    %1930 = vmatprep.subr.mxu0 0.0
    %1931 = vmatpush1.msra.mxu0 0.0
    %1932 = vmatprep.subr.mxu0 0.0
    %1933 = vmatpush1.msra.mxu0 0.0
    %1934 = vmatprep.subr.mxu0 0.0
    %1935 = vmatpush1.msra.mxu0 %v1902
    %1936 = vmatprep.subr.mxu0 0.0
    %1937 = vmatpush2.msra.mxu0 0.0
    %1938 = vmatprep.subr.mxu0 0.0
    %1939 = vmatpush2.msra.mxu0 0.0
    %1940 = vmatprep.subr.mxu0 0.0
    %1941 = vmatpush2.msra.mxu0 0.0
    %1942 = vmatprep.subr.mxu0 0.0
    %1943 = vmatpush2.msra.mxu0 0.0
    %1944 = vmatprep.subr.mxu0 0.0
    %1945 = vmatpush2.msra.mxu0 0.0
    %1946 = vmatprep.subr.mxu0 0.0
    %1947 = vmatpush2.msra.mxu0 0.0
    %1948 = vmatprep.subr.mxu0 0.0
    %1949 = vmatpush2.msra.mxu0 0.0
    %1950 = vmatprep.subr.mxu0 0.0
    %1951 = vmatpush2.msra.mxu0 0.0
    %1952 = vmatprep.subr.mxu0 0.0
    %1953 = vmatpush2.msra.mxu0 0.0
    %1954 = vmatprep.subr.mxu0 0.0
    %1955 = vmatpush2.msra.mxu0 0.0
    %1956 = vmatprep.subr.mxu0 0.0
    %1957 = vmatpush2.msra.mxu0 0.0
    %1958 = vmatprep.subr.mxu0 0.0
    %1959 = vmatpush2.msra.mxu0 0.0
    %1960 = vmatprep.subr.mxu0 0.0
    %1961 = vmatpush2.msra.mxu0 0.0
    %1962 = vmatprep.subr.mxu0 0.0
    %1963 = vmatpush2.msra.mxu0 0.0
    %1964 = vmatprep.subr.mxu0 0.0
    %1965 = vmatpush2.msra.mxu0 0.0
    %1966 = vmatprep.subr.mxu0 0.0
    %1967 = vmatpush2.msra.mxu0 0.0
    %1968 = vmatprep.mubr.f32.mxu0 0.0
    %1969 = vmatmul.mubr.f32.gmra.mxu0 %v1805
    %v1970 = vpop.f32.mrf.mxu0
    %v1971 = vadd.f32 0.0, %v1970
    %v1972 = vpop.f32.mrf.mxu0
    %1973 = vmatprep.mubr.f32.mxu0 0.0
    %1974 = vmatmul.mubr.f32.gmra.mxu0 %v1808
    %v1975 = vpop.f32.mrf.mxu0
    %v1976 = vadd.f32 0.0, %v1975
    %v1977 = vpop.f32.mrf.mxu0
    %1978 = vmatprep.mubr.f32.mxu0 0.0
    %1979 = vmatmul.mubr.f32.gmra.mxu0 %v1811
    %v1980 = vpop.f32.mrf.mxu0
    %v1981 = vadd.f32 0.0, %v1980
    %v1982 = vpop.f32.mrf.mxu0
    %1983 = vmatprep.mubr.f32.mxu0 0.0
    %1984 = vmatmul.mubr.f32.gmra.mxu0 %v1814
    %v1985 = vpop.f32.mrf.mxu0
    %v1986 = vadd.f32 0.0, %v1985
    %v1987 = vpop.f32.mrf.mxu0
    %1988 = vmatprep.mubr.f32.mxu0 0.0
    %1989 = vmatmul.mubr.f32.gmra.mxu0 %v1817
    %v1990 = vpop.f32.mrf.mxu0
    %v1991 = vadd.f32 0.0, %v1990
    %v1992 = vpop.f32.mrf.mxu0
    %1993 = vmatprep.mubr.f32.mxu0 0.0
    %1994 = vmatmul.mubr.f32.gmra.mxu0 %v1820
    %v1995 = vpop.f32.mrf.mxu0
    %v1996 = vadd.f32 0.0, %v1995
    %v1997 = vpop.f32.mrf.mxu0
    %1998 = vmatprep.mubr.f32.mxu0 0.0
    %1999 = vmatmul.mubr.f32.gmra.mxu0 %v1823
    %v2000 = vpop.f32.mrf.mxu0
    %v2001 = vadd.f32 0.0, %v2000
    %v2002 = vpop.f32.mrf.mxu0
    %2003 = vmatprep.mubr.f32.mxu0 0.0
    %2004 = vmatmul.mubr.f32.gmra.mxu0 %v1826
    %v2005 = vpop.f32.mrf.mxu0
    %v2006 = vadd.f32 0.0, %v2005
    %v2007 = vpop.f32.mrf.mxu0
    %2008 = vmatprep.mubr.f32.mxu0 0.0
    %2009 = vmatmul.mubr.f32.gmra.mxu0 %v1829
    %v2010 = vpop.f32.mrf.mxu0
    %v2011 = vadd.f32 0.0, %v2010
    %v2012 = vpop.f32.mrf.mxu0
    %2013 = vmatprep.mubr.f32.mxu0 0.0
    %2014 = vmatmul.mubr.f32.gmra.mxu0 %v1832
    %v2015 = vpop.f32.mrf.mxu0
    %v2016 = vadd.f32 0.0, %v2015
    %v2017 = vpop.f32.mrf.mxu0
    %2018 = vmatprep.mubr.f32.mxu0 0.0
    %2019 = vmatmul.mubr.f32.gmra.mxu0 %v1835
    %v2020 = vpop.f32.mrf.mxu0
    %v2021 = vadd.f32 0.0, %v2020
    %v2022 = vpop.f32.mrf.mxu0
    %2023 = vmatprep.mubr.f32.mxu0 0.0
    %2024 = vmatmul.mubr.f32.gmra.mxu0 %v1838
    %v2025 = vpop.f32.mrf.mxu0
    %v2026 = vadd.f32 0.0, %v2025
    %v2027 = vpop.f32.mrf.mxu0
    %2028 = vmatprep.mubr.f32.mxu0 0.0
    %2029 = vmatmul.mubr.f32.gmra.mxu0 %v1841
    %v2030 = vpop.f32.mrf.mxu0
    %v2031 = vadd.f32 0.0, %v2030
    %v2032 = vpop.f32.mrf.mxu0
    %2033 = vmatprep.mubr.f32.mxu0 0.0
    %2034 = vmatmul.mubr.f32.gmra.mxu0 %v1844
    %v2035 = vpop.f32.mrf.mxu0
    %v2036 = vadd.f32 0.0, %v2035
    %v2037 = vpop.f32.mrf.mxu0
    %2038 = vmatprep.mubr.f32.mxu0 0.0
    %2039 = vmatmul.mubr.f32.gmra.mxu0 %v1847
    %v2040 = vpop.f32.mrf.mxu0
    %v2041 = vadd.f32 0.0, %v2040
    %v2042 = vpop.f32.mrf.mxu0
    %2043 = vmatprep.mubr.f32.mxu0 0.0
    %2044 = vmatmul.mubr.f32.gmra.mxu0 %v1850
    %v2045 = vpop.f32.mrf.mxu0
    %v2046 = vadd.f32 0.0, %v2045
    %v2047 = vpop.f32.mrf.mxu0
    %2048 = vmatprep.mubr.f32.mxu0 0.0
    %2049 = vmatmul.mubr.f32.gmra.mxu0 %v1853
    %v2050 = vpop.f32.mrf.mxu0
    %v2051 = vadd.f32 0.0, %v2050
    %v2052 = vpop.f32.mrf.mxu0
    %2053 = vmatprep.mubr.f32.mxu0 0.0
    %2054 = vmatmul.mubr.f32.gmra.mxu0 %v1856
    %v2055 = vpop.f32.mrf.mxu0
    %v2056 = vadd.f32 0.0, %v2055
    %v2057 = vpop.f32.mrf.mxu0
    %2058 = vmatprep.mubr.f32.mxu0 0.0
    %2059 = vmatmul.mubr.f32.gmra.mxu0 %v1859
    %v2060 = vpop.f32.mrf.mxu0
    %v2061 = vadd.f32 0.0, %v2060
    %v2062 = vpop.f32.mrf.mxu0
    %2063 = vmatprep.mubr.f32.mxu0 0.0
    %2064 = vmatmul.mubr.f32.gmra.mxu0 %v1862
    %v2065 = vpop.f32.mrf.mxu0
    %v2066 = vadd.f32 0.0, %v2065
    %v2067 = vpop.f32.mrf.mxu0
    %2068 = vmatprep.mubr.f32.mxu0 0.0
    %2069 = vmatmul.mubr.f32.gmra.mxu0 %v1865
    %v2070 = vpop.f32.mrf.mxu0
    %v2071 = vadd.f32 0.0, %v2070
    %v2072 = vpop.f32.mrf.mxu0
    %2073 = vmatprep.mubr.f32.mxu0 0.0
    %2074 = vmatmul.mubr.f32.gmra.mxu0 %v1868
    %v2075 = vpop.f32.mrf.mxu0
    %v2076 = vadd.f32 0.0, %v2075
    %v2077 = vpop.f32.mrf.mxu0
    %2078 = vmatprep.mubr.f32.mxu0 0.0
    %2079 = vmatmul.mubr.f32.gmra.mxu0 %v1871
    %v2080 = vpop.f32.mrf.mxu0
    %v2081 = vadd.f32 0.0, %v2080
    %v2082 = vpop.f32.mrf.mxu0
    %2083 = vmatprep.mubr.f32.mxu0 0.0
    %2084 = vmatmul.mubr.f32.gmra.mxu0 %v1874
    %v2085 = vpop.f32.mrf.mxu0
    %v2086 = vadd.f32 0.0, %v2085
    %v2087 = vpop.f32.mrf.mxu0
    %2088 = vmatprep.mubr.f32.mxu0 0.0
    %2089 = vmatmul.mubr.f32.gmra.mxu0 %v1877
    %v2090 = vpop.f32.mrf.mxu0
    %v2091 = vadd.f32 0.0, %v2090
    %v2092 = vpop.f32.mrf.mxu0
    %2093 = vmatprep.mubr.f32.mxu0 0.0
    %2094 = vmatmul.mubr.f32.gmra.mxu0 %v1880
    %v2095 = vpop.f32.mrf.mxu0
    %v2096 = vadd.f32 0.0, %v2095
    %v2097 = vpop.f32.mrf.mxu0
    %2098 = vmatprep.mubr.f32.mxu0 0.0
    %2099 = vmatmul.mubr.f32.gmra.mxu0 %v1883
    %v2100 = vpop.f32.mrf.mxu0
    %v2101 = vadd.f32 0.0, %v2100
    %v2102 = vpop.f32.mrf.mxu0
    %2103 = vmatprep.mubr.f32.mxu0 0.0
    %2104 = vmatmul.mubr.f32.gmra.mxu0 %v1886
    %v2105 = vpop.f32.mrf.mxu0
    %v2106 = vadd.f32 0.0, %v2105
    %v2107 = vpop.f32.mrf.mxu0
    %2108 = vmatprep.mubr.f32.mxu0 0.0
    %2109 = vmatmul.mubr.f32.gmra.mxu0 %v1889
    %v2110 = vpop.f32.mrf.mxu0
    %v2111 = vadd.f32 0.0, %v2110
    %v2112 = vpop.f32.mrf.mxu0
    %2113 = vmatprep.mubr.f32.mxu0 0.0
    %2114 = vmatmul.mubr.f32.gmra.mxu0 %v1892
    %v2115 = vpop.f32.mrf.mxu0
    %v2116 = vadd.f32 0.0, %v2115
    %v2117 = vpop.f32.mrf.mxu0
    %2118 = vmatprep.mubr.f32.mxu0 0.0
    %2119 = vmatmul.mubr.f32.gmra.mxu0 %v1895
    %v2120 = vpop.f32.mrf.mxu0
    %v2121 = vadd.f32 0.0, %v2120
    %v2122 = vpop.f32.mrf.mxu0
    %2123 = vmatprep.mubr.f32.mxu0 0.0
    %2124 = vmatmul.mubr.f32.gmra.mxu0 %v1898
    %v2125 = vpop.f32.mrf.mxu0
    %v2126 = vadd.f32 0.0, %v2125
    %v2127 = vpop.f32.mrf.mxu0
    %2128 = vdwg.mxu0
    %v2129 = vmul.f32 %v1971, %v814
    %v2130 = vmul.f32 %v1976, %v819
    %v2131 = vmul.f32 %v1981, %v814
    %v2132 = vmul.f32 %v1986, %v819
    %v2133 = vmul.f32 %v1991, %v814
    %v2134 = vmul.f32 %v1996, %v819
    %v2135 = vmul.f32 %v2001, %v814
    %v2136 = vmul.f32 %v2006, %v819
    %v2137 = vmul.f32 %v2011, %v814
    %v2138 = vmul.f32 %v2016, %v819
    %v2139 = vmul.f32 %v2021, %v814
    %v2140 = vmul.f32 %v2026, %v819
    %v2141 = vmul.f32 %v2031, %v814
    %v2142 = vmul.f32 %v2036, %v819
    %v2143 = vmul.f32 %v2041, %v814
    %v2144 = vmul.f32 %v2046, %v819
    %v2145 = vmul.f32 %v2051, %v824
    %v2146 = vmul.f32 %v2056, %v829
    %v2147 = vmul.f32 %v2061, %v824
    %v2148 = vmul.f32 %v2066, %v829
    %v2149 = vmul.f32 %v2071, %v824
    %v2150 = vmul.f32 %v2076, %v829
    %v2151 = vmul.f32 %v2081, %v824
    %v2152 = vmul.f32 %v2086, %v829
    %v2153 = vmul.f32 %v2091, %v824
    %v2154 = vmul.f32 %v2096, %v829
    %v2155 = vmul.f32 %v2101, %v824
    %v2156 = vmul.f32 %v2106, %v829
    %v2157 = vmul.f32 %v2111, %v824
    %v2158 = vmul.f32 %v2116, %v829
    %v2159 = vmul.f32 %v2121, %v824
    %v2160 = vmul.f32 %v2126, %v829
    %v2161 = vsel %vm46, %v2129, 0.0
    %v2162 = vsel %vm46, %v2130, 0.0
    %v2163 = vadd.f32 %v2161, %v2162
    %v2164 = vrot.slane %v2163, 4
    %v2165 = vadd.f32 %v2163, %v2164
    %v2166 = vrot.slane %v2165, 2
    %v2167 = vadd.f32 %v2165, %v2166
    %v2168 = vrot.slane %v2167, 1
    %v2169 = vadd.f32 %v2167, %v2168
    %v2170 = vsel %vm46, %v2131, 0.0
    %v2171 = vsel %vm46, %v2132, 0.0
    %v2172 = vadd.f32 %v2170, %v2171
    %v2173 = vrot.slane %v2172, 4
    %v2174 = vadd.f32 %v2172, %v2173
    %v2175 = vrot.slane %v2174, 2
    %v2176 = vadd.f32 %v2174, %v2175
    %v2177 = vrot.slane %v2176, 1
    %v2178 = vadd.f32 %v2176, %v2177
    %v2179 = vsel %vm46, %v2133, 0.0
    %v2180 = vsel %vm46, %v2134, 0.0
    %v2181 = vadd.f32 %v2179, %v2180
    %v2182 = vrot.slane %v2181, 4
    %v2183 = vadd.f32 %v2181, %v2182
    %v2184 = vrot.slane %v2183, 2
    %v2185 = vadd.f32 %v2183, %v2184
    %v2186 = vrot.slane %v2185, 1
    %v2187 = vadd.f32 %v2185, %v2186
    %v2188 = vsel %vm46, %v2135, 0.0
    %v2189 = vsel %vm46, %v2136, 0.0
    %v2190 = vadd.f32 %v2188, %v2189
    %v2191 = vrot.slane %v2190, 4
    %v2192 = vadd.f32 %v2190, %v2191
    %v2193 = vrot.slane %v2192, 2
    %v2194 = vadd.f32 %v2192, %v2193
    %v2195 = vrot.slane %v2194, 1
    %v2196 = vadd.f32 %v2194, %v2195
    %v2197 = vsel %vm46, %v2137, 0.0
    %v2198 = vsel %vm46, %v2138, 0.0
    %v2199 = vadd.f32 %v2197, %v2198
    %v2200 = vrot.slane %v2199, 4
    %v2201 = vadd.f32 %v2199, %v2200
    %v2202 = vrot.slane %v2201, 2
    %v2203 = vadd.f32 %v2201, %v2202
    %v2204 = vrot.slane %v2203, 1
    %v2205 = vadd.f32 %v2203, %v2204
    %v2206 = vsel %vm46, %v2139, 0.0
    %v2207 = vsel %vm46, %v2140, 0.0
    %v2208 = vadd.f32 %v2206, %v2207
    %v2209 = vrot.slane %v2208, 4
    %v2210 = vadd.f32 %v2208, %v2209
    %v2211 = vrot.slane %v2210, 2
    %v2212 = vadd.f32 %v2210, %v2211
    %v2213 = vrot.slane %v2212, 1
    %v2214 = vadd.f32 %v2212, %v2213
    %v2215 = vsel %vm46, %v2141, 0.0
    %v2216 = vsel %vm46, %v2142, 0.0
    %v2217 = vadd.f32 %v2215, %v2216
    %v2218 = vrot.slane %v2217, 4
    %v2219 = vadd.f32 %v2217, %v2218
    %v2220 = vrot.slane %v2219, 2
    %v2221 = vadd.f32 %v2219, %v2220
    %v2222 = vrot.slane %v2221, 1
    %v2223 = vadd.f32 %v2221, %v2222
    %v2224 = vsel %vm46, %v2143, 0.0
    %v2225 = vsel %vm46, %v2144, 0.0
    %v2226 = vadd.f32 %v2224, %v2225
    %v2227 = vrot.slane %v2226, 4
    %v2228 = vadd.f32 %v2226, %v2227
    %v2229 = vrot.slane %v2228, 2
    %v2230 = vadd.f32 %v2228, %v2229
    %v2231 = vrot.slane %v2230, 1
    %v2232 = vadd.f32 %v2230, %v2231
    %v2233 = vsel %vm46, %v2145, 0.0
    %v2234 = vsel %vm46, %v2146, 0.0
    %v2235 = vadd.f32 %v2233, %v2234
    %v2236 = vrot.slane %v2235, 4
    %v2237 = vadd.f32 %v2235, %v2236
    %v2238 = vrot.slane %v2237, 2
    %v2239 = vadd.f32 %v2237, %v2238
    %v2240 = vrot.slane %v2239, 1
    %v2241 = vadd.f32 %v2239, %v2240
    %v2242 = vsel %vm46, %v2147, 0.0
    %v2243 = vsel %vm46, %v2148, 0.0
    %v2244 = vadd.f32 %v2242, %v2243
    %v2245 = vrot.slane %v2244, 4
    %v2246 = vadd.f32 %v2244, %v2245
    %v2247 = vrot.slane %v2246, 2
    %v2248 = vadd.f32 %v2246, %v2247
    %v2249 = vrot.slane %v2248, 1
    %v2250 = vadd.f32 %v2248, %v2249
    %v2251 = vsel %vm46, %v2149, 0.0
    %v2252 = vsel %vm46, %v2150, 0.0
    %v2253 = vadd.f32 %v2251, %v2252
    %v2254 = vrot.slane %v2253, 4
    %v2255 = vadd.f32 %v2253, %v2254
    %v2256 = vrot.slane %v2255, 2
    %v2257 = vadd.f32 %v2255, %v2256
    %v2258 = vrot.slane %v2257, 1
    %v2259 = vadd.f32 %v2257, %v2258
    %v2260 = vsel %vm46, %v2151, 0.0
    %v2261 = vsel %vm46, %v2152, 0.0
    %v2262 = vadd.f32 %v2260, %v2261
    %v2263 = vrot.slane %v2262, 4
    %v2264 = vadd.f32 %v2262, %v2263
    %v2265 = vrot.slane %v2264, 2
    %v2266 = vadd.f32 %v2264, %v2265
    %v2267 = vrot.slane %v2266, 1
    %v2268 = vadd.f32 %v2266, %v2267
    %v2269 = vsel %vm46, %v2153, 0.0
    %v2270 = vsel %vm46, %v2154, 0.0
    %v2271 = vadd.f32 %v2269, %v2270
    %v2272 = vrot.slane %v2271, 4
    %v2273 = vadd.f32 %v2271, %v2272
    %v2274 = vrot.slane %v2273, 2
    %v2275 = vadd.f32 %v2273, %v2274
    %v2276 = vrot.slane %v2275, 1
    %v2277 = vadd.f32 %v2275, %v2276
    %v2278 = vsel %vm46, %v2155, 0.0
    %v2279 = vsel %vm46, %v2156, 0.0
    %v2280 = vadd.f32 %v2278, %v2279
    %v2281 = vrot.slane %v2280, 4
    %v2282 = vadd.f32 %v2280, %v2281
    %v2283 = vrot.slane %v2282, 2
    %v2284 = vadd.f32 %v2282, %v2283
    %v2285 = vrot.slane %v2284, 1
    %v2286 = vadd.f32 %v2284, %v2285
    %v2287 = vsel %vm46, %v2157, 0.0
    %v2288 = vsel %vm46, %v2158, 0.0
    %v2289 = vadd.f32 %v2287, %v2288
    %v2290 = vrot.slane %v2289, 4
    %v2291 = vadd.f32 %v2289, %v2290
    %v2292 = vrot.slane %v2291, 2
    %v2293 = vadd.f32 %v2291, %v2292
    %v2294 = vrot.slane %v2293, 1
    %v2295 = vadd.f32 %v2293, %v2294
    %v2296 = vsel %vm46, %v2159, 0.0
    %v2297 = vsel %vm46, %v2160, 0.0
    %v2298 = vadd.f32 %v2296, %v2297
    %v2299 = vrot.slane %v2298, 4
    %v2300 = vadd.f32 %v2298, %v2299
    %v2301 = vrot.slane %v2300, 2
    %v2302 = vadd.f32 %v2300, %v2301
    %v2303 = vrot.slane %v2302, 1
    %v2304 = vadd.f32 %v2302, %v2303
    %v2305 = vlaneseq
    %v2306 = vshrl.u32 %v2305, 7
    %v2307 = vsub.s32 0, %v2306
    %v2308 = vrot.slane %v837, %v2307
    %vm2325 = vcmask 1041409
    %v2326 = vsel %vm2325, %v2178, %v2169
    %vm2327 = vcmask 1042434
    %v2328 = vsel %vm2327, %v2187, %v2326
    %vm2329 = vcmask 1043459
    %v2330 = vsel %vm2329, %v2196, %v2328
    %vm2331 = vcmask 1044484
    %v2332 = vsel %vm2331, %v2205, %v2330
    %vm2333 = vcmask 1045509
    %v2334 = vsel %vm2333, %v2214, %v2332
    %vm2335 = vcmask 1046534
    %v2336 = vsel %vm2335, %v2223, %v2334
    %vm2337 = vcmask 1047559
    %v2338 = vsel %vm2337, %v2232, %v2336
    %v2339 = vsel %vm2325, %v2250, %v2241
    %v2340 = vsel %vm2327, %v2259, %v2339
    %v2341 = vsel %vm2329, %v2268, %v2340
    %v2342 = vsel %vm2331, %v2277, %v2341
    %v2343 = vsel %vm2333, %v2286, %v2342
    %v2344 = vsel %vm2335, %v2295, %v2343
    %v2345 = vsel %vm2337, %v2304, %v2344
    %v2346 = vsel %vm46, %v2338, 0
    %v2348 = vsel %vm46, %v2345, 0
    %2350 = vmatprep.subr.mxu0 0.0
    %2351 = vmatpush1.msra.mxu0 0.0
    %2352 = vmatprep.subr.mxu0 0.0
    %2353 = vmatpush1.msra.mxu0 0.0
    %2354 = vmatprep.subr.mxu0 0.0
    %2355 = vmatpush1.msra.mxu0 0.0
    %2356 = vmatprep.subr.mxu0 0.0
    %2357 = vmatpush1.msra.mxu0 0.0
    %2358 = vmatprep.subr.mxu0 0.0
    %2359 = vmatpush1.msra.mxu0 0.0
    %2360 = vmatprep.subr.mxu0 0.0
    %2361 = vmatpush1.msra.mxu0 0.0
    %2362 = vmatprep.subr.mxu0 0.0
    %2363 = vmatpush1.msra.mxu0 0.0
    %2364 = vmatprep.subr.mxu0 0.0
    %2365 = vmatpush1.msra.mxu0 0.0
    %2366 = vmatprep.subr.mxu0 0.0
    %2367 = vmatpush1.msra.mxu0 0.0
    %2368 = vmatprep.subr.mxu0 0.0
    %2369 = vmatpush1.msra.mxu0 0.0
    %2370 = vmatprep.subr.mxu0 0.0
    %2371 = vmatpush1.msra.mxu0 0.0
    %2372 = vmatprep.subr.mxu0 0.0
    %2373 = vmatpush1.msra.mxu0 0.0
    %2374 = vmatprep.subr.mxu0 0.0
    %2375 = vmatpush1.msra.mxu0 %v836
    %2376 = vmatprep.subr.mxu0 0.0
    %2377 = vmatpush1.msra.mxu0 %v835
    %2378 = vmatprep.subr.mxu0 0.0
    %2379 = vmatpush1.msra.mxu0 %v834
    %2380 = vmatprep.subr.mxu0 0.0
    %2381 = vmatpush1.msra.mxu0 %v833
    %2382 = vmatprep.subr.mxu0 0.0
    %2383 = vmatpush2.msra.mxu0 0.0
    %2384 = vmatprep.subr.mxu0 0.0
    %2385 = vmatpush2.msra.mxu0 0.0
    %2386 = vmatprep.subr.mxu0 0.0
    %2387 = vmatpush2.msra.mxu0 0.0
    %2388 = vmatprep.subr.mxu0 0.0
    %2389 = vmatpush2.msra.mxu0 0.0
    %2390 = vmatprep.subr.mxu0 0.0
    %2391 = vmatpush2.msra.mxu0 0.0
    %2392 = vmatprep.subr.mxu0 0.0
    %2393 = vmatpush2.msra.mxu0 0.0
    %2394 = vmatprep.subr.mxu0 0.0
    %2395 = vmatpush2.msra.mxu0 0.0
    %2396 = vmatprep.subr.mxu0 0.0
    %2397 = vmatpush2.msra.mxu0 0.0
    %2398 = vmatprep.subr.mxu0 0.0
    %2399 = vmatpush2.msra.mxu0 0.0
    %2400 = vmatprep.subr.mxu0 0.0
    %2401 = vmatpush2.msra.mxu0 0.0
    %2402 = vmatprep.subr.mxu0 0.0
    %2403 = vmatpush2.msra.mxu0 0.0
    %2404 = vmatprep.subr.mxu0 0.0
    %2405 = vmatpush2.msra.mxu0 0.0
    %2406 = vmatprep.subr.mxu0 0.0
    %2407 = vmatpush2.msra.mxu0 0.0
    %2408 = vmatprep.subr.mxu0 0.0
    %2409 = vmatpush2.msra.mxu0 0.0
    %2410 = vmatprep.subr.mxu0 0.0
    %2411 = vmatpush2.msra.mxu0 0.0
    %2412 = vmatprep.subr.mxu0 0.0
    %2413 = vmatpush2.msra.mxu0 0.0
    %2414 = vmatprep.mubr.f32.mxu0 0.0
    %2415 = vmatmul.mubr.f32.gmra.mxu0 %v2346
    %v2416 = vpop.f32.mrf.mxu0
    %v2417 = vadd.f32 %v2308, %v2416
    %v2418 = vpop.f32.mrf.mxu0
    %2419 = vmatprep.mubr.f32.mxu0 0.0
    %2420 = vmatmul.mubr.f32.gmra.mxu0 %v2348
    %v2421 = vpop.f32.mrf.mxu0
    %v2422 = vadd.f32 %v2308, %v2421
    %v2423 = vpop.f32.mrf.mxu0
    %2424 = vdwg.mxu0
    %v2425 = vadd.f32 %v376, %v2417
    %v2426 = vadd.f32 %v377, %v2422
    %v2427 = vld [vmem:[%s4 + $0x4] sm:$0x1]
    %v2428 = vld [vmem:[%s4 + $0x5] sm:$0x1]
    %v2429 = vsel %vm46, %v2425, 0.0
    %2430 = vadd.xlane.f32.xlu0 %v2429
    %v2431 = vpop.xlane.xlu0 %2430
    %v2432 = vsel %vm46, %v2426, 0.0
    %2433 = vadd.xlane.f32.xlu0 %v2432
    %v2434 = vpop.xlane.xlu0 %2433
    %v2435 = vrcp.pop 32.0
    %v2436 = vmul.f32 %v2431, %v2435
    %v2437 = vmul.f32 %v2434, %v2435
    %v2438 = vsub.f32 %v2425, %v2436
    %v2439 = vsub.f32 %v2426, %v2437
    %v2440 = vmul.f32 %v2438, %v2438
    %v2441 = vmul.f32 %v2439, %v2439
    %v2442 = vsel %vm46, %v2440, 0.0
    %2443 = vadd.xlane.f32.xlu0 %v2442
    %v2444 = vpop.xlane.xlu0 %2443
    %v2445 = vsel %vm46, %v2441, 0.0
    %2446 = vadd.xlane.f32.xlu0 %v2445
    %v2447 = vpop.xlane.xlu0 %2446
    %v2448 = vmul.f32 %v2444, %v2435
    %v2449 = vmul.f32 %v2447, %v2435
    %v2450 = vadd.f32 %v2448, 1e-05
    %v2451 = vadd.f32 %v2449, 1e-05
    %v2452 = vrsqrt.pop %v2450
    %v2453 = vrsqrt.pop %v2451
    %v2454 = vmul.f32 %v2438, %v2452
    %v2455 = vmul.f32 %v2439, %v2453
    %v2456 = vlaneseq
    %v2457 = vshrl.u32 %v2456, 7
    %v2458 = vsub.s32 0, %v2457
    %v2459 = vrot.slane %v2427, %v2458
    %v2460 = vmul.f32 %v2454, %v2459
    %v2461 = vmul.f32 %v2455, %v2459
    %v2462 = vlaneseq
    %v2463 = vshrl.u32 %v2462, 7
    %v2464 = vsub.s32 0, %v2463
    %v2465 = vrot.slane %v2428, %v2464
    %v2466 = vadd.f32 %v2460, %v2465
    %v2467 = vadd.f32 %v2461, %v2465
    %s2468 = scalar_lea.vmem %s3, 128
    %v2469 = vld [vmem:[%s2468] sm:$0xff]
    %v2470 = vld [vmem:[%s2468 + $0x8] sm:$0xff]
    %v2471 = vld [vmem:[%s2468 + $0x10] sm:$0xff]
    %v2472 = vld [vmem:[%s2468 + $0x18] sm:$0xff]
    %v2473 = vld [vmem:[%s4 + $0x6] sm:$0x1]
    %v2474 = vlaneseq
    %v2475 = vshrl.u32 %v2474, 7
    %v2476 = vsub.s32 0, %v2475
    %v2477 = vrot.slane %v2473, %v2476
    %v2479 = vsel %vm46, %v2466, 0
    %v2482 = vsel %vm46, %v2467, 0
    %2484 = vmatprep.subr.mxu0 0.0
    %2485 = vmatpush1.msra.mxu0 0.0
    %2486 = vmatprep.subr.mxu0 0.0
    %2487 = vmatpush1.msra.mxu0 0.0
    %2488 = vmatprep.subr.mxu0 0.0
    %2489 = vmatpush1.msra.mxu0 0.0
    %2490 = vmatprep.subr.mxu0 0.0
    %2491 = vmatpush1.msra.mxu0 0.0
    %2492 = vmatprep.subr.mxu0 0.0
    %2493 = vmatpush1.msra.mxu0 0.0
    %2494 = vmatprep.subr.mxu0 0.0
    %2495 = vmatpush1.msra.mxu0 0.0
    %2496 = vmatprep.subr.mxu0 0.0
    %2497 = vmatpush1.msra.mxu0 0.0
    %2498 = vmatprep.subr.mxu0 0.0
    %2499 = vmatpush1.msra.mxu0 0.0
    %2500 = vmatprep.subr.mxu0 0.0
    %2501 = vmatpush1.msra.mxu0 0.0
    %2502 = vmatprep.subr.mxu0 0.0
    %2503 = vmatpush1.msra.mxu0 0.0
    %2504 = vmatprep.subr.mxu0 0.0
    %2505 = vmatpush1.msra.mxu0 0.0
    %2506 = vmatprep.subr.mxu0 0.0
    %2507 = vmatpush1.msra.mxu0 0.0
    %2508 = vmatprep.subr.mxu0 0.0
    %2509 = vmatpush1.msra.mxu0 %v2472
    %2510 = vmatprep.subr.mxu0 0.0
    %2511 = vmatpush1.msra.mxu0 %v2471
    %2512 = vmatprep.subr.mxu0 0.0
    %2513 = vmatpush1.msra.mxu0 %v2470
    %2514 = vmatprep.subr.mxu0 0.0
    %2515 = vmatpush1.msra.mxu0 %v2469
    %2516 = vmatprep.subr.mxu0 0.0
    %2517 = vmatpush2.msra.mxu0 0.0
    %2518 = vmatprep.subr.mxu0 0.0
    %2519 = vmatpush2.msra.mxu0 0.0
    %2520 = vmatprep.subr.mxu0 0.0
    %2521 = vmatpush2.msra.mxu0 0.0
    %2522 = vmatprep.subr.mxu0 0.0
    %2523 = vmatpush2.msra.mxu0 0.0
    %2524 = vmatprep.subr.mxu0 0.0
    %2525 = vmatpush2.msra.mxu0 0.0
    %2526 = vmatprep.subr.mxu0 0.0
    %2527 = vmatpush2.msra.mxu0 0.0
    %2528 = vmatprep.subr.mxu0 0.0
    %2529 = vmatpush2.msra.mxu0 0.0
    %2530 = vmatprep.subr.mxu0 0.0
    %2531 = vmatpush2.msra.mxu0 0.0
    %2532 = vmatprep.subr.mxu0 0.0
    %2533 = vmatpush2.msra.mxu0 0.0
    %2534 = vmatprep.subr.mxu0 0.0
    %2535 = vmatpush2.msra.mxu0 0.0
    %2536 = vmatprep.subr.mxu0 0.0
    %2537 = vmatpush2.msra.mxu0 0.0
    %2538 = vmatprep.subr.mxu0 0.0
    %2539 = vmatpush2.msra.mxu0 0.0
    %2540 = vmatprep.subr.mxu0 0.0
    %2541 = vmatpush2.msra.mxu0 0.0
    %2542 = vmatprep.subr.mxu0 0.0
    %2543 = vmatpush2.msra.mxu0 0.0
    %2544 = vmatprep.subr.mxu0 0.0
    %2545 = vmatpush2.msra.mxu0 0.0
    %2546 = vmatprep.subr.mxu0 0.0
    %2547 = vmatpush2.msra.mxu0 0.0
    %2548 = vmatprep.mubr.f32.mxu0 0.0
    %2549 = vmatmul.mubr.f32.gmra.mxu0 %v2479
    %v2550 = vpop.f32.mrf.mxu0
    %v2551 = vadd.f32 %v2477, %v2550
    %v2552 = vpop.f32.mrf.mxu0
    %2553 = vmatprep.mubr.f32.mxu0 0.0
    %2554 = vmatmul.mubr.f32.gmra.mxu0 %v2482
    %v2555 = vpop.f32.mrf.mxu0
    %v2556 = vadd.f32 %v2477, %v2555
    %v2557 = vpop.f32.mrf.mxu0
    %2558 = vdwg.mxu0
    %s2559 = scalar_lea.vmem %s3, 160
    %v2560 = vld [vmem:[%s2559] sm:$0xff]
    %v2561 = vld [vmem:[%s2559 + $0x8] sm:$0xff]
    %v2562 = vld [vmem:[%s2559 + $0x10] sm:$0xff]
    %v2563 = vld [vmem:[%s2559 + $0x18] sm:$0xff]
    %v2564 = vld [vmem:[%s4 + $0x7] sm:$0x1]
    %v2565 = vlaneseq
    %v2566 = vshrl.u32 %v2565, 7
    %v2567 = vsub.s32 0, %v2566
    %v2568 = vrot.slane %v2564, %v2567
    %2569 = vmatprep.subr.mxu0 0.0
    %2570 = vmatpush1.msra.mxu0 0.0
    %2571 = vmatprep.subr.mxu0 0.0
    %2572 = vmatpush1.msra.mxu0 0.0
    %2573 = vmatprep.subr.mxu0 0.0
    %2574 = vmatpush1.msra.mxu0 0.0
    %2575 = vmatprep.subr.mxu0 0.0
    %2576 = vmatpush1.msra.mxu0 0.0
    %2577 = vmatprep.subr.mxu0 0.0
    %2578 = vmatpush1.msra.mxu0 0.0
    %2579 = vmatprep.subr.mxu0 0.0
    %2580 = vmatpush1.msra.mxu0 0.0
    %2581 = vmatprep.subr.mxu0 0.0
    %2582 = vmatpush1.msra.mxu0 0.0
    %2583 = vmatprep.subr.mxu0 0.0
    %2584 = vmatpush1.msra.mxu0 0.0
    %2585 = vmatprep.subr.mxu0 0.0
    %2586 = vmatpush1.msra.mxu0 0.0
    %2587 = vmatprep.subr.mxu0 0.0
    %2588 = vmatpush1.msra.mxu0 0.0
    %2589 = vmatprep.subr.mxu0 0.0
    %2590 = vmatpush1.msra.mxu0 0.0
    %2591 = vmatprep.subr.mxu0 0.0
    %2592 = vmatpush1.msra.mxu0 0.0
    %2593 = vmatprep.subr.mxu0 0.0
    %2594 = vmatpush1.msra.mxu0 %v2563
    %2595 = vmatprep.subr.mxu0 0.0
    %2596 = vmatpush1.msra.mxu0 %v2562
    %2597 = vmatprep.subr.mxu0 0.0
    %2598 = vmatpush1.msra.mxu0 %v2561
    %2599 = vmatprep.subr.mxu0 0.0
    %2600 = vmatpush1.msra.mxu0 %v2560
    %2601 = vmatprep.subr.mxu0 0.0
    %2602 = vmatpush2.msra.mxu0 0.0
    %2603 = vmatprep.subr.mxu0 0.0
    %2604 = vmatpush2.msra.mxu0 0.0
    %2605 = vmatprep.subr.mxu0 0.0
    %2606 = vmatpush2.msra.mxu0 0.0
    %2607 = vmatprep.subr.mxu0 0.0
    %2608 = vmatpush2.msra.mxu0 0.0
    %2609 = vmatprep.subr.mxu0 0.0
    %2610 = vmatpush2.msra.mxu0 0.0
    %2611 = vmatprep.subr.mxu0 0.0
    %2612 = vmatpush2.msra.mxu0 0.0
    %2613 = vmatprep.subr.mxu0 0.0
    %2614 = vmatpush2.msra.mxu0 0.0
    %2615 = vmatprep.subr.mxu0 0.0
    %2616 = vmatpush2.msra.mxu0 0.0
    %2617 = vmatprep.subr.mxu0 0.0
    %2618 = vmatpush2.msra.mxu0 0.0
    %2619 = vmatprep.subr.mxu0 0.0
    %2620 = vmatpush2.msra.mxu0 0.0
    %2621 = vmatprep.subr.mxu0 0.0
    %2622 = vmatpush2.msra.mxu0 0.0
    %2623 = vmatprep.subr.mxu0 0.0
    %2624 = vmatpush2.msra.mxu0 0.0
    %2625 = vmatprep.subr.mxu0 0.0
    %2626 = vmatpush2.msra.mxu0 0.0
    %2627 = vmatprep.subr.mxu0 0.0
    %2628 = vmatpush2.msra.mxu0 0.0
    %2629 = vmatprep.subr.mxu0 0.0
    %2630 = vmatpush2.msra.mxu0 0.0
    %2631 = vmatprep.subr.mxu0 0.0
    %2632 = vmatpush2.msra.mxu0 0.0
    %2633 = vmatprep.mubr.f32.mxu0 0.0
    %2634 = vmatmul.mubr.f32.gmra.mxu0 %v2479
    %v2635 = vpop.f32.mrf.mxu0
    %v2636 = vadd.f32 %v2568, %v2635
    %v2637 = vpop.f32.mrf.mxu0
    %2638 = vmatprep.mubr.f32.mxu0 0.0
    %2639 = vmatmul.mubr.f32.gmra.mxu0 %v2482
    %v2640 = vpop.f32.mrf.mxu0
    %v2641 = vadd.f32 %v2568, %v2640
    %v2642 = vpop.f32.mrf.mxu0
    %2643 = vdwg.mxu0
    %s2644 = scalar_lea.vmem %s3, 192
    %v2645 = vld [vmem:[%s2644] sm:$0xff]
    %v2646 = vld [vmem:[%s2644 + $0x8] sm:$0xff]
    %v2647 = vld [vmem:[%s2644 + $0x10] sm:$0xff]
    %v2648 = vld [vmem:[%s2644 + $0x18] sm:$0xff]
    %v2649 = vld [vmem:[%s4 + $0x8] sm:$0x1]
    %v2650 = vlaneseq
    %v2651 = vshrl.u32 %v2650, 7
    %v2652 = vsub.s32 0, %v2651
    %v2653 = vrot.slane %v2649, %v2652
    %2654 = vmatprep.subr.mxu0 0.0
    %2655 = vmatpush1.msra.mxu0 0.0
    %2656 = vmatprep.subr.mxu0 0.0
    %2657 = vmatpush1.msra.mxu0 0.0
    %2658 = vmatprep.subr.mxu0 0.0
    %2659 = vmatpush1.msra.mxu0 0.0
    %2660 = vmatprep.subr.mxu0 0.0
    %2661 = vmatpush1.msra.mxu0 0.0
    %2662 = vmatprep.subr.mxu0 0.0
    %2663 = vmatpush1.msra.mxu0 0.0
    %2664 = vmatprep.subr.mxu0 0.0
    %2665 = vmatpush1.msra.mxu0 0.0
    %2666 = vmatprep.subr.mxu0 0.0
    %2667 = vmatpush1.msra.mxu0 0.0
    %2668 = vmatprep.subr.mxu0 0.0
    %2669 = vmatpush1.msra.mxu0 0.0
    %2670 = vmatprep.subr.mxu0 0.0
    %2671 = vmatpush1.msra.mxu0 0.0
    %2672 = vmatprep.subr.mxu0 0.0
    %2673 = vmatpush1.msra.mxu0 0.0
    %2674 = vmatprep.subr.mxu0 0.0
    %2675 = vmatpush1.msra.mxu0 0.0
    %2676 = vmatprep.subr.mxu0 0.0
    %2677 = vmatpush1.msra.mxu0 0.0
    %2678 = vmatprep.subr.mxu0 0.0
    %2679 = vmatpush1.msra.mxu0 %v2648
    %2680 = vmatprep.subr.mxu0 0.0
    %2681 = vmatpush1.msra.mxu0 %v2647
    %2682 = vmatprep.subr.mxu0 0.0
    %2683 = vmatpush1.msra.mxu0 %v2646
    %2684 = vmatprep.subr.mxu0 0.0
    %2685 = vmatpush1.msra.mxu0 %v2645
    %2686 = vmatprep.subr.mxu0 0.0
    %2687 = vmatpush2.msra.mxu0 0.0
    %2688 = vmatprep.subr.mxu0 0.0
    %2689 = vmatpush2.msra.mxu0 0.0
    %2690 = vmatprep.subr.mxu0 0.0
    %2691 = vmatpush2.msra.mxu0 0.0
    %2692 = vmatprep.subr.mxu0 0.0
    %2693 = vmatpush2.msra.mxu0 0.0
    %2694 = vmatprep.subr.mxu0 0.0
    %2695 = vmatpush2.msra.mxu0 0.0
    %2696 = vmatprep.subr.mxu0 0.0
    %2697 = vmatpush2.msra.mxu0 0.0
    %2698 = vmatprep.subr.mxu0 0.0
    %2699 = vmatpush2.msra.mxu0 0.0
    %2700 = vmatprep.subr.mxu0 0.0
    %2701 = vmatpush2.msra.mxu0 0.0
    %2702 = vmatprep.subr.mxu0 0.0
    %2703 = vmatpush2.msra.mxu0 0.0
    %2704 = vmatprep.subr.mxu0 0.0
    %2705 = vmatpush2.msra.mxu0 0.0
    %2706 = vmatprep.subr.mxu0 0.0
    %2707 = vmatpush2.msra.mxu0 0.0
    %2708 = vmatprep.subr.mxu0 0.0
    %2709 = vmatpush2.msra.mxu0 0.0
    %2710 = vmatprep.subr.mxu0 0.0
    %2711 = vmatpush2.msra.mxu0 0.0
    %2712 = vmatprep.subr.mxu0 0.0
    %2713 = vmatpush2.msra.mxu0 0.0
    %2714 = vmatprep.subr.mxu0 0.0
    %2715 = vmatpush2.msra.mxu0 0.0
    %2716 = vmatprep.subr.mxu0 0.0
    %2717 = vmatpush2.msra.mxu0 0.0
    %2718 = vmatprep.mubr.f32.mxu0 0.0
    %2719 = vmatmul.mubr.f32.gmra.mxu0 %v2479
    %v2720 = vpop.f32.mrf.mxu0
    %v2721 = vadd.f32 %v2653, %v2720
    %v2722 = vpop.f32.mrf.mxu0
    %2723 = vmatprep.mubr.f32.mxu0 0.0
    %2724 = vmatmul.mubr.f32.gmra.mxu0 %v2482
    %v2725 = vpop.f32.mrf.mxu0
    %v2726 = vadd.f32 %v2653, %v2725
    %v2727 = vpop.f32.mrf.mxu0
    %2728 = vdwg.mxu0
    %s2729 = scalar_lea.vmem %s3, 224
    %v2730 = vld [vmem:[%s2729] sm:$0xff]
    %v2731 = vld [vmem:[%s2729 + $0x8] sm:$0xff]
    %v2732 = vld [vmem:[%s2729 + $0x10] sm:$0xff]
    %v2733 = vld [vmem:[%s2729 + $0x18] sm:$0xff]
    %v2734 = vld [vmem:[%s4 + $0x9] sm:$0x1]
    %v2737 = vcombine.high %v2551, %v2551
    %v2739 = vunpack.c.l.s4 1966171168
    %v2740 = vunpack.c.0.s8 %v2739
    %v2741 = vlaneseq
    %v2742 = vshrl.u32 %v2741, 7
    %v2743 = vsub.s32 %v2740, %v2742
    %v2744 = vrot.slane %v2551, %v2743
    %v2746 = vunpack.c.l.s4 1966171168
    %v2747 = vunpack.c.0.s8 %v2746
    %v2748 = vlaneseq
    %v2749 = vshrl.u32 %v2748, 7
    %v2750 = vsub.s32 %v2747, %v2749
    %v2751 = vrot.slane %v2737, %v2750
    %v2752 = vcombine.high %v2744, %v2744
    %v2753 = vcombine.high %v2751, %v2751
    %v2755 = vunpack.c.l.s4 1966171168
    %v2756 = vunpack.c.0.s8 %v2755
    %v2757 = vlaneseq
    %v2758 = vshrl.u32 %v2757, 7
    %v2759 = vsub.s32 %v2756, %v2758
    %v2760 = vrot.slane %v2744, %v2759
    %v2762 = vunpack.c.l.s4 1966171168
    %v2763 = vunpack.c.0.s8 %v2762
    %v2764 = vlaneseq
    %v2765 = vshrl.u32 %v2764, 7
    %v2766 = vsub.s32 %v2763, %v2765
    %v2767 = vrot.slane %v2751, %v2766
    %v2769 = vunpack.c.l.s4 1966171168
    %v2770 = vunpack.c.0.s8 %v2769
    %v2771 = vlaneseq
    %v2772 = vshrl.u32 %v2771, 7
    %v2773 = vsub.s32 %v2770, %v2772
    %v2774 = vrot.slane %v2752, %v2773
    %v2776 = vunpack.c.l.s4 1966171168
    %v2777 = vunpack.c.0.s8 %v2776
    %v2778 = vlaneseq
    %v2779 = vshrl.u32 %v2778, 7
    %v2780 = vsub.s32 %v2777, %v2779
    %v2781 = vrot.slane %v2753, %v2780
    %v2782 = vcombine.high %v2760, %v2760
    %v2783 = vcombine.high %v2767, %v2767
    %v2784 = vcombine.high %v2774, %v2774
    %v2785 = vcombine.high %v2781, %v2781
    %v2786 = vcombine.high %v2556, %v2556
    %v2788 = vunpack.c.l.s4 1966171168
    %v2789 = vunpack.c.0.s8 %v2788
    %v2790 = vlaneseq
    %v2791 = vshrl.u32 %v2790, 7
    %v2792 = vsub.s32 %v2789, %v2791
    %v2793 = vrot.slane %v2556, %v2792
    %v2795 = vunpack.c.l.s4 1966171168
    %v2796 = vunpack.c.0.s8 %v2795
    %v2797 = vlaneseq
    %v2798 = vshrl.u32 %v2797, 7
    %v2799 = vsub.s32 %v2796, %v2798
    %v2800 = vrot.slane %v2786, %v2799
    %v2801 = vcombine.high %v2793, %v2793
    %v2802 = vcombine.high %v2800, %v2800
    %v2804 = vunpack.c.l.s4 1966171168
    %v2805 = vunpack.c.0.s8 %v2804
    %v2806 = vlaneseq
    %v2807 = vshrl.u32 %v2806, 7
    %v2808 = vsub.s32 %v2805, %v2807
    %v2809 = vrot.slane %v2793, %v2808
    %v2811 = vunpack.c.l.s4 1966171168
    %v2812 = vunpack.c.0.s8 %v2811
    %v2813 = vlaneseq
    %v2814 = vshrl.u32 %v2813, 7
    %v2815 = vsub.s32 %v2812, %v2814
    %v2816 = vrot.slane %v2800, %v2815
    %v2818 = vunpack.c.l.s4 1966171168
    %v2819 = vunpack.c.0.s8 %v2818
    %v2820 = vlaneseq
    %v2821 = vshrl.u32 %v2820, 7
    %v2822 = vsub.s32 %v2819, %v2821
    %v2823 = vrot.slane %v2801, %v2822
    %v2825 = vunpack.c.l.s4 1966171168
    %v2826 = vunpack.c.0.s8 %v2825
    %v2827 = vlaneseq
    %v2828 = vshrl.u32 %v2827, 7
    %v2829 = vsub.s32 %v2826, %v2828
    %v2830 = vrot.slane %v2802, %v2829
    %v2831 = vcombine.high %v2809, %v2809
    %v2832 = vcombine.high %v2816, %v2816
    %v2833 = vcombine.high %v2823, %v2823
    %v2834 = vcombine.high %v2830, %v2830
    %v2835 = vlaneseq
    %v2836 = vshrl.u32 %v2835, 7
    %v2837 = vsub.s32 0, %v2836
    %v2838 = vrot.slane %v2760, %v2837
    %v2839 = vlaneseq
    %v2840 = vshrl.u32 %v2839, 7
    %v2841 = vsub.s32 0, %v2840
    %v2842 = vrot.slane %v2774, %v2841
    %v2843 = vlaneseq
    %v2844 = vshrl.u32 %v2843, 7
    %v2845 = vsub.s32 0, %v2844
    %v2846 = vrot.slane %v2782, %v2845
    %v2847 = vlaneseq
    %v2848 = vshrl.u32 %v2847, 7
    %v2849 = vsub.s32 0, %v2848
    %v2850 = vrot.slane %v2784, %v2849
    %v2851 = vlaneseq
    %v2852 = vshrl.u32 %v2851, 7
    %v2853 = vsub.s32 0, %v2852
    %v2854 = vrot.slane %v2767, %v2853
    %v2855 = vlaneseq
    %v2856 = vshrl.u32 %v2855, 7
    %v2857 = vsub.s32 0, %v2856
    %v2858 = vrot.slane %v2781, %v2857
    %v2859 = vlaneseq
    %v2860 = vshrl.u32 %v2859, 7
    %v2861 = vsub.s32 0, %v2860
    %v2862 = vrot.slane %v2783, %v2861
    %v2863 = vlaneseq
    %v2864 = vshrl.u32 %v2863, 7
    %v2865 = vsub.s32 0, %v2864
    %v2866 = vrot.slane %v2785, %v2865
    %v2867 = vlaneseq
    %v2868 = vshrl.u32 %v2867, 7
    %v2869 = vsub.s32 0, %v2868
    %v2870 = vrot.slane %v2809, %v2869
    %v2871 = vlaneseq
    %v2872 = vshrl.u32 %v2871, 7
    %v2873 = vsub.s32 0, %v2872
    %v2874 = vrot.slane %v2823, %v2873
    %v2875 = vlaneseq
    %v2876 = vshrl.u32 %v2875, 7
    %v2877 = vsub.s32 0, %v2876
    %v2878 = vrot.slane %v2831, %v2877
    %v2879 = vlaneseq
    %v2880 = vshrl.u32 %v2879, 7
    %v2881 = vsub.s32 0, %v2880
    %v2882 = vrot.slane %v2833, %v2881
    %v2883 = vlaneseq
    %v2884 = vshrl.u32 %v2883, 7
    %v2885 = vsub.s32 0, %v2884
    %v2886 = vrot.slane %v2816, %v2885
    %v2887 = vlaneseq
    %v2888 = vshrl.u32 %v2887, 7
    %v2889 = vsub.s32 0, %v2888
    %v2890 = vrot.slane %v2830, %v2889
    %v2891 = vlaneseq
    %v2892 = vshrl.u32 %v2891, 7
    %v2893 = vsub.s32 0, %v2892
    %v2894 = vrot.slane %v2832, %v2893
    %v2895 = vlaneseq
    %v2896 = vshrl.u32 %v2895, 7
    %v2897 = vsub.s32 0, %v2896
    %v2898 = vrot.slane %v2834, %v2897
    %v2915 = vmul.f32 %v2838, %v2636
    %v2916 = vmul.f32 %v2842, %v2636
    %v2917 = vmul.f32 %v2846, %v2636
    %v2918 = vmul.f32 %v2850, %v2636
    %v2919 = vmul.f32 %v2854, %v2636
    %v2920 = vmul.f32 %v2858, %v2636
    %v2921 = vmul.f32 %v2862, %v2636
    %v2922 = vmul.f32 %v2866, %v2636
    %v2923 = vmul.f32 %v2870, %v2641
    %v2924 = vmul.f32 %v2874, %v2641
    %v2925 = vmul.f32 %v2878, %v2641
    %v2926 = vmul.f32 %v2882, %v2641
    %v2927 = vmul.f32 %v2886, %v2641
    %v2928 = vmul.f32 %v2890, %v2641
    %v2929 = vmul.f32 %v2894, %v2641
    %v2930 = vmul.f32 %v2898, %v2641
    %v2932 = vsel %vm46, %v2915, 0
    %v2935 = vsel %vm46, %v2916, 0
    %v2938 = vsel %vm46, %v2917, 0
    %v2941 = vsel %vm46, %v2918, 0
    %v2944 = vsel %vm46, %v2919, 0
    %v2947 = vsel %vm46, %v2920, 0
    %v2950 = vsel %vm46, %v2921, 0
    %v2953 = vsel %vm46, %v2922, 0
    %v2956 = vsel %vm46, %v2923, 0
    %v2959 = vsel %vm46, %v2924, 0
    %v2962 = vsel %vm46, %v2925, 0
    %v2965 = vsel %vm46, %v2926, 0
    %v2968 = vsel %vm46, %v2927, 0
    %v2971 = vsel %vm46, %v2928, 0
    %v2974 = vsel %vm46, %v2929, 0
    %v2977 = vsel %vm46, %v2930, 0
    %2979 = vmatprep.subr.mxu0 0.0
    %2980 = vmatpush1.msra.mxu0 0.0
    %2981 = vmatprep.subr.mxu0 0.0
    %2982 = vmatpush1.msra.mxu0 0.0
    %2983 = vmatprep.subr.mxu0 0.0
    %2984 = vmatpush1.msra.mxu0 0.0
    %2985 = vmatprep.subr.mxu0 0.0
    %2986 = vmatpush1.msra.mxu0 0.0
    %2987 = vmatprep.subr.mxu0 0.0
    %2988 = vmatpush1.msra.mxu0 0.0
    %2989 = vmatprep.subr.mxu0 0.0
    %2990 = vmatpush1.msra.mxu0 0.0
    %2991 = vmatprep.subr.mxu0 0.0
    %2992 = vmatpush1.msra.mxu0 0.0
    %2993 = vmatprep.subr.mxu0 0.0
    %2994 = vmatpush1.msra.mxu0 0.0
    %2995 = vmatprep.subr.mxu0 0.0
    %2996 = vmatpush1.msra.mxu0 0.0
    %2997 = vmatprep.subr.mxu0 0.0
    %2998 = vmatpush1.msra.mxu0 0.0
    %2999 = vmatprep.subr.mxu0 0.0
    %3000 = vmatpush1.msra.mxu0 0.0
    %3001 = vmatprep.subr.mxu0 0.0
    %3002 = vmatpush1.msra.mxu0 0.0
    %3003 = vmatprep.subr.mxu0 0.0
    %3004 = vmatpush1.msra.mxu0 %v368
    %3005 = vmatprep.subr.mxu0 0.0
    %3006 = vmatpush1.msra.mxu0 %v367
    %3007 = vmatprep.subr.mxu0 0.0
    %3008 = vmatpush1.msra.mxu0 %v366
    %3009 = vmatprep.subr.mxu0 0.0
    %3010 = vmatpush1.msra.mxu0 %v365
    %3011 = vmatprep.subr.mxu0 0.0
    %3012 = vmatpush2.msra.mxu0 0.0
    %3013 = vmatprep.subr.mxu0 0.0
    %3014 = vmatpush2.msra.mxu0 0.0
    %3015 = vmatprep.subr.mxu0 0.0
    %3016 = vmatpush2.msra.mxu0 0.0
    %3017 = vmatprep.subr.mxu0 0.0
    %3018 = vmatpush2.msra.mxu0 0.0
    %3019 = vmatprep.subr.mxu0 0.0
    %3020 = vmatpush2.msra.mxu0 0.0
    %3021 = vmatprep.subr.mxu0 0.0
    %3022 = vmatpush2.msra.mxu0 0.0
    %3023 = vmatprep.subr.mxu0 0.0
    %3024 = vmatpush2.msra.mxu0 0.0
    %3025 = vmatprep.subr.mxu0 0.0
    %3026 = vmatpush2.msra.mxu0 0.0
    %3027 = vmatprep.subr.mxu0 0.0
    %3028 = vmatpush2.msra.mxu0 0.0
    %3029 = vmatprep.subr.mxu0 0.0
    %3030 = vmatpush2.msra.mxu0 0.0
    %3031 = vmatprep.subr.mxu0 0.0
    %3032 = vmatpush2.msra.mxu0 0.0
    %3033 = vmatprep.subr.mxu0 0.0
    %3034 = vmatpush2.msra.mxu0 0.0
    %3035 = vmatprep.subr.mxu0 0.0
    %3036 = vmatpush2.msra.mxu0 0.0
    %3037 = vmatprep.subr.mxu0 0.0
    %3038 = vmatpush2.msra.mxu0 0.0
    %3039 = vmatprep.subr.mxu0 0.0
    %3040 = vmatpush2.msra.mxu0 0.0
    %3041 = vmatprep.subr.mxu0 0.0
    %3042 = vmatpush2.msra.mxu0 0.0
    %3043 = vmatprep.mubr.f32.mxu0 0.0
    %3044 = vmatmul.mubr.f32.gmra.mxu0 %v2932
    %v3045 = vpop.f32.mrf.mxu0
    %v3046 = vadd.f32 0.0, %v3045
    %v3047 = vpop.f32.mrf.mxu0
    %3048 = vmatprep.mubr.f32.mxu0 0.0
    %3049 = vmatmul.mubr.f32.gmra.mxu0 %v2935
    %v3050 = vpop.f32.mrf.mxu0
    %v3051 = vadd.f32 0.0, %v3050
    %v3052 = vpop.f32.mrf.mxu0
    %3053 = vmatprep.mubr.f32.mxu0 0.0
    %3054 = vmatmul.mubr.f32.gmra.mxu0 %v2938
    %v3055 = vpop.f32.mrf.mxu0
    %v3056 = vadd.f32 0.0, %v3055
    %v3057 = vpop.f32.mrf.mxu0
    %3058 = vmatprep.mubr.f32.mxu0 0.0
    %3059 = vmatmul.mubr.f32.gmra.mxu0 %v2941
    %v3060 = vpop.f32.mrf.mxu0
    %v3061 = vadd.f32 0.0, %v3060
    %v3062 = vpop.f32.mrf.mxu0
    %3063 = vmatprep.mubr.f32.mxu0 0.0
    %3064 = vmatmul.mubr.f32.gmra.mxu0 %v2944
    %v3065 = vpop.f32.mrf.mxu0
    %v3066 = vadd.f32 0.0, %v3065
    %v3067 = vpop.f32.mrf.mxu0
    %3068 = vmatprep.mubr.f32.mxu0 0.0
    %3069 = vmatmul.mubr.f32.gmra.mxu0 %v2947
    %v3070 = vpop.f32.mrf.mxu0
    %v3071 = vadd.f32 0.0, %v3070
    %v3072 = vpop.f32.mrf.mxu0
    %3073 = vmatprep.mubr.f32.mxu0 0.0
    %3074 = vmatmul.mubr.f32.gmra.mxu0 %v2950
    %v3075 = vpop.f32.mrf.mxu0
    %v3076 = vadd.f32 0.0, %v3075
    %v3077 = vpop.f32.mrf.mxu0
    %3078 = vmatprep.mubr.f32.mxu0 0.0
    %3079 = vmatmul.mubr.f32.gmra.mxu0 %v2953
    %v3080 = vpop.f32.mrf.mxu0
    %v3081 = vadd.f32 0.0, %v3080
    %v3082 = vpop.f32.mrf.mxu0
    %3083 = vmatprep.mubr.f32.mxu0 0.0
    %3084 = vmatmul.mubr.f32.gmra.mxu0 %v2956
    %v3085 = vpop.f32.mrf.mxu0
    %v3086 = vadd.f32 0.0, %v3085
    %v3087 = vpop.f32.mrf.mxu0
    %3088 = vmatprep.mubr.f32.mxu0 0.0
    %3089 = vmatmul.mubr.f32.gmra.mxu0 %v2959
    %v3090 = vpop.f32.mrf.mxu0
    %v3091 = vadd.f32 0.0, %v3090
    %v3092 = vpop.f32.mrf.mxu0
    %3093 = vmatprep.mubr.f32.mxu0 0.0
    %3094 = vmatmul.mubr.f32.gmra.mxu0 %v2962
    %v3095 = vpop.f32.mrf.mxu0
    %v3096 = vadd.f32 0.0, %v3095
    %v3097 = vpop.f32.mrf.mxu0
    %3098 = vmatprep.mubr.f32.mxu0 0.0
    %3099 = vmatmul.mubr.f32.gmra.mxu0 %v2965
    %v3100 = vpop.f32.mrf.mxu0
    %v3101 = vadd.f32 0.0, %v3100
    %v3102 = vpop.f32.mrf.mxu0
    %3103 = vmatprep.mubr.f32.mxu0 0.0
    %3104 = vmatmul.mubr.f32.gmra.mxu0 %v2968
    %v3105 = vpop.f32.mrf.mxu0
    %v3106 = vadd.f32 0.0, %v3105
    %v3107 = vpop.f32.mrf.mxu0
    %3108 = vmatprep.mubr.f32.mxu0 0.0
    %3109 = vmatmul.mubr.f32.gmra.mxu0 %v2971
    %v3110 = vpop.f32.mrf.mxu0
    %v3111 = vadd.f32 0.0, %v3110
    %v3112 = vpop.f32.mrf.mxu0
    %3113 = vmatprep.mubr.f32.mxu0 0.0
    %3114 = vmatmul.mubr.f32.gmra.mxu0 %v2974
    %v3115 = vpop.f32.mrf.mxu0
    %v3116 = vadd.f32 0.0, %v3115
    %v3117 = vpop.f32.mrf.mxu0
    %3118 = vmatprep.mubr.f32.mxu0 0.0
    %3119 = vmatmul.mubr.f32.gmra.mxu0 %v2977
    %v3120 = vpop.f32.mrf.mxu0
    %v3121 = vadd.f32 0.0, %v3120
    %v3122 = vpop.f32.mrf.mxu0
    %3123 = vdwg.mxu0
    %v3124 = vsel %vm1371, %v3046, -inf
    %v3125 = vrot.slane %v3124, 4
    %v3126 = vmax.f32 %v3124, %v3125
    %v3127 = vrot.slane %v3126, 2
    %v3128 = vmax.f32 %v3126, %v3127
    %v3129 = vrot.slane %v3128, 1
    %v3130 = vmax.f32 %v3128, %v3129
    %v3131 = vsel %vm1371, %v3051, -inf
    %v3132 = vrot.slane %v3131, 4
    %v3133 = vmax.f32 %v3131, %v3132
    %v3134 = vrot.slane %v3133, 2
    %v3135 = vmax.f32 %v3133, %v3134
    %v3136 = vrot.slane %v3135, 1
    %v3137 = vmax.f32 %v3135, %v3136
    %v3138 = vsel %vm1371, %v3056, -inf
    %v3139 = vrot.slane %v3138, 4
    %v3140 = vmax.f32 %v3138, %v3139
    %v3141 = vrot.slane %v3140, 2
    %v3142 = vmax.f32 %v3140, %v3141
    %v3143 = vrot.slane %v3142, 1
    %v3144 = vmax.f32 %v3142, %v3143
    %v3145 = vsel %vm1371, %v3061, -inf
    %v3146 = vrot.slane %v3145, 4
    %v3147 = vmax.f32 %v3145, %v3146
    %v3148 = vrot.slane %v3147, 2
    %v3149 = vmax.f32 %v3147, %v3148
    %v3150 = vrot.slane %v3149, 1
    %v3151 = vmax.f32 %v3149, %v3150
    %v3152 = vsel %vm1371, %v3066, -inf
    %v3153 = vrot.slane %v3152, 4
    %v3154 = vmax.f32 %v3152, %v3153
    %v3155 = vrot.slane %v3154, 2
    %v3156 = vmax.f32 %v3154, %v3155
    %v3157 = vrot.slane %v3156, 1
    %v3158 = vmax.f32 %v3156, %v3157
    %v3159 = vsel %vm1371, %v3071, -inf
    %v3160 = vrot.slane %v3159, 4
    %v3161 = vmax.f32 %v3159, %v3160
    %v3162 = vrot.slane %v3161, 2
    %v3163 = vmax.f32 %v3161, %v3162
    %v3164 = vrot.slane %v3163, 1
    %v3165 = vmax.f32 %v3163, %v3164
    %v3166 = vsel %vm1371, %v3076, -inf
    %v3167 = vrot.slane %v3166, 4
    %v3168 = vmax.f32 %v3166, %v3167
    %v3169 = vrot.slane %v3168, 2
    %v3170 = vmax.f32 %v3168, %v3169
    %v3171 = vrot.slane %v3170, 1
    %v3172 = vmax.f32 %v3170, %v3171
    %v3173 = vsel %vm1371, %v3081, -inf
    %v3174 = vrot.slane %v3173, 4
    %v3175 = vmax.f32 %v3173, %v3174
    %v3176 = vrot.slane %v3175, 2
    %v3177 = vmax.f32 %v3175, %v3176
    %v3178 = vrot.slane %v3177, 1
    %v3179 = vmax.f32 %v3177, %v3178
    %v3180 = vsel %vm1371, %v3086, -inf
    %v3181 = vrot.slane %v3180, 4
    %v3182 = vmax.f32 %v3180, %v3181
    %v3183 = vrot.slane %v3182, 2
    %v3184 = vmax.f32 %v3182, %v3183
    %v3185 = vrot.slane %v3184, 1
    %v3186 = vmax.f32 %v3184, %v3185
    %v3187 = vsel %vm1371, %v3091, -inf
    %v3188 = vrot.slane %v3187, 4
    %v3189 = vmax.f32 %v3187, %v3188
    %v3190 = vrot.slane %v3189, 2
    %v3191 = vmax.f32 %v3189, %v3190
    %v3192 = vrot.slane %v3191, 1
    %v3193 = vmax.f32 %v3191, %v3192
    %v3194 = vsel %vm1371, %v3096, -inf
    %v3195 = vrot.slane %v3194, 4
    %v3196 = vmax.f32 %v3194, %v3195
    %v3197 = vrot.slane %v3196, 2
    %v3198 = vmax.f32 %v3196, %v3197
    %v3199 = vrot.slane %v3198, 1
    %v3200 = vmax.f32 %v3198, %v3199
    %v3201 = vsel %vm1371, %v3101, -inf
    %v3202 = vrot.slane %v3201, 4
    %v3203 = vmax.f32 %v3201, %v3202
    %v3204 = vrot.slane %v3203, 2
    %v3205 = vmax.f32 %v3203, %v3204
    %v3206 = vrot.slane %v3205, 1
    %v3207 = vmax.f32 %v3205, %v3206
    %v3208 = vsel %vm1371, %v3106, -inf
    %v3209 = vrot.slane %v3208, 4
    %v3210 = vmax.f32 %v3208, %v3209
    %v3211 = vrot.slane %v3210, 2
    %v3212 = vmax.f32 %v3210, %v3211
    %v3213 = vrot.slane %v3212, 1
    %v3214 = vmax.f32 %v3212, %v3213
    %v3215 = vsel %vm1371, %v3111, -inf
    %v3216 = vrot.slane %v3215, 4
    %v3217 = vmax.f32 %v3215, %v3216
    %v3218 = vrot.slane %v3217, 2
    %v3219 = vmax.f32 %v3217, %v3218
    %v3220 = vrot.slane %v3219, 1
    %v3221 = vmax.f32 %v3219, %v3220
    %v3222 = vsel %vm1371, %v3116, -inf
    %v3223 = vrot.slane %v3222, 4
    %v3224 = vmax.f32 %v3222, %v3223
    %v3225 = vrot.slane %v3224, 2
    %v3226 = vmax.f32 %v3224, %v3225
    %v3227 = vrot.slane %v3226, 1
    %v3228 = vmax.f32 %v3226, %v3227
    %v3229 = vsel %vm1371, %v3121, -inf
    %v3230 = vrot.slane %v3229, 4
    %v3231 = vmax.f32 %v3229, %v3230
    %v3232 = vrot.slane %v3231, 2
    %v3233 = vmax.f32 %v3231, %v3232
    %v3234 = vrot.slane %v3233, 1
    %v3235 = vmax.f32 %v3233, %v3234
    %v3236 = vsub.f32 %v3046, %v3130
    %v3237 = vsub.f32 %v3051, %v3137
    %v3238 = vsub.f32 %v3056, %v3144
    %v3239 = vsub.f32 %v3061, %v3151
    %v3240 = vsub.f32 %v3066, %v3158
    %v3241 = vsub.f32 %v3071, %v3165
    %v3242 = vsub.f32 %v3076, %v3172
    %v3243 = vsub.f32 %v3081, %v3179
    %v3244 = vsub.f32 %v3086, %v3186
    %v3245 = vsub.f32 %v3091, %v3193
    %v3246 = vsub.f32 %v3096, %v3200
    %v3247 = vsub.f32 %v3101, %v3207
    %v3248 = vsub.f32 %v3106, %v3214
    %v3249 = vsub.f32 %v3111, %v3221
    %v3250 = vsub.f32 %v3116, %v3228
    %v3251 = vsub.f32 %v3121, %v3235
    %v3252 = vmul.f32 %v3236, 1.442695
    %v3253 = vpow.pop %v3252
    %v3254 = vmul.f32 %v3237, 1.442695
    %v3255 = vpow.pop %v3254
    %v3256 = vmul.f32 %v3238, 1.442695
    %v3257 = vpow.pop %v3256
    %v3258 = vmul.f32 %v3239, 1.442695
    %v3259 = vpow.pop %v3258
    %v3260 = vmul.f32 %v3240, 1.442695
    %v3261 = vpow.pop %v3260
    %v3262 = vmul.f32 %v3241, 1.442695
    %v3263 = vpow.pop %v3262
    %v3264 = vmul.f32 %v3242, 1.442695
    %v3265 = vpow.pop %v3264
    %v3266 = vmul.f32 %v3243, 1.442695
    %v3267 = vpow.pop %v3266
    %v3268 = vmul.f32 %v3244, 1.442695
    %v3269 = vpow.pop %v3268
    %v3270 = vmul.f32 %v3245, 1.442695
    %v3271 = vpow.pop %v3270
    %v3272 = vmul.f32 %v3246, 1.442695
    %v3273 = vpow.pop %v3272
    %v3274 = vmul.f32 %v3247, 1.442695
    %v3275 = vpow.pop %v3274
    %v3276 = vmul.f32 %v3248, 1.442695
    %v3277 = vpow.pop %v3276
    %v3278 = vmul.f32 %v3249, 1.442695
    %v3279 = vpow.pop %v3278
    %v3280 = vmul.f32 %v3250, 1.442695
    %v3281 = vpow.pop %v3280
    %v3282 = vmul.f32 %v3251, 1.442695
    %v3283 = vpow.pop %v3282
    %v3284 = vsel %vm1371, %v3253, 0.0
    %v3285 = vrot.slane %v3284, 4
    %v3286 = vadd.f32 %v3284, %v3285
    %v3287 = vrot.slane %v3286, 2
    %v3288 = vadd.f32 %v3286, %v3287
    %v3289 = vrot.slane %v3288, 1
    %v3290 = vadd.f32 %v3288, %v3289
    %v3291 = vsel %vm1371, %v3255, 0.0
    %v3292 = vrot.slane %v3291, 4
    %v3293 = vadd.f32 %v3291, %v3292
    %v3294 = vrot.slane %v3293, 2
    %v3295 = vadd.f32 %v3293, %v3294
    %v3296 = vrot.slane %v3295, 1
    %v3297 = vadd.f32 %v3295, %v3296
    %v3298 = vsel %vm1371, %v3257, 0.0
    %v3299 = vrot.slane %v3298, 4
    %v3300 = vadd.f32 %v3298, %v3299
    %v3301 = vrot.slane %v3300, 2
    %v3302 = vadd.f32 %v3300, %v3301
    %v3303 = vrot.slane %v3302, 1
    %v3304 = vadd.f32 %v3302, %v3303
    %v3305 = vsel %vm1371, %v3259, 0.0
    %v3306 = vrot.slane %v3305, 4
    %v3307 = vadd.f32 %v3305, %v3306
    %v3308 = vrot.slane %v3307, 2
    %v3309 = vadd.f32 %v3307, %v3308
    %v3310 = vrot.slane %v3309, 1
    %v3311 = vadd.f32 %v3309, %v3310
    %v3312 = vsel %vm1371, %v3261, 0.0
    %v3313 = vrot.slane %v3312, 4
    %v3314 = vadd.f32 %v3312, %v3313
    %v3315 = vrot.slane %v3314, 2
    %v3316 = vadd.f32 %v3314, %v3315
    %v3317 = vrot.slane %v3316, 1
    %v3318 = vadd.f32 %v3316, %v3317
    %v3319 = vsel %vm1371, %v3263, 0.0
    %v3320 = vrot.slane %v3319, 4
    %v3321 = vadd.f32 %v3319, %v3320
    %v3322 = vrot.slane %v3321, 2
    %v3323 = vadd.f32 %v3321, %v3322
    %v3324 = vrot.slane %v3323, 1
    %v3325 = vadd.f32 %v3323, %v3324
    %v3326 = vsel %vm1371, %v3265, 0.0
    %v3327 = vrot.slane %v3326, 4
    %v3328 = vadd.f32 %v3326, %v3327
    %v3329 = vrot.slane %v3328, 2
    %v3330 = vadd.f32 %v3328, %v3329
    %v3331 = vrot.slane %v3330, 1
    %v3332 = vadd.f32 %v3330, %v3331
    %v3333 = vsel %vm1371, %v3267, 0.0
    %v3334 = vrot.slane %v3333, 4
    %v3335 = vadd.f32 %v3333, %v3334
    %v3336 = vrot.slane %v3335, 2
    %v3337 = vadd.f32 %v3335, %v3336
    %v3338 = vrot.slane %v3337, 1
    %v3339 = vadd.f32 %v3337, %v3338
    %v3340 = vsel %vm1371, %v3269, 0.0
    %v3341 = vrot.slane %v3340, 4
    %v3342 = vadd.f32 %v3340, %v3341
    %v3343 = vrot.slane %v3342, 2
    %v3344 = vadd.f32 %v3342, %v3343
    %v3345 = vrot.slane %v3344, 1
    %v3346 = vadd.f32 %v3344, %v3345
    %v3347 = vsel %vm1371, %v3271, 0.0
    %v3348 = vrot.slane %v3347, 4
    %v3349 = vadd.f32 %v3347, %v3348
    %v3350 = vrot.slane %v3349, 2
    %v3351 = vadd.f32 %v3349, %v3350
    %v3352 = vrot.slane %v3351, 1
    %v3353 = vadd.f32 %v3351, %v3352
    %v3354 = vsel %vm1371, %v3273, 0.0
    %v3355 = vrot.slane %v3354, 4
    %v3356 = vadd.f32 %v3354, %v3355
    %v3357 = vrot.slane %v3356, 2
    %v3358 = vadd.f32 %v3356, %v3357
    %v3359 = vrot.slane %v3358, 1
    %v3360 = vadd.f32 %v3358, %v3359
    %v3361 = vsel %vm1371, %v3275, 0.0
    %v3362 = vrot.slane %v3361, 4
    %v3363 = vadd.f32 %v3361, %v3362
    %v3364 = vrot.slane %v3363, 2
    %v3365 = vadd.f32 %v3363, %v3364
    %v3366 = vrot.slane %v3365, 1
    %v3367 = vadd.f32 %v3365, %v3366
    %v3368 = vsel %vm1371, %v3277, 0.0
    %v3369 = vrot.slane %v3368, 4
    %v3370 = vadd.f32 %v3368, %v3369
    %v3371 = vrot.slane %v3370, 2
    %v3372 = vadd.f32 %v3370, %v3371
    %v3373 = vrot.slane %v3372, 1
    %v3374 = vadd.f32 %v3372, %v3373
    %v3375 = vsel %vm1371, %v3279, 0.0
    %v3376 = vrot.slane %v3375, 4
    %v3377 = vadd.f32 %v3375, %v3376
    %v3378 = vrot.slane %v3377, 2
    %v3379 = vadd.f32 %v3377, %v3378
    %v3380 = vrot.slane %v3379, 1
    %v3381 = vadd.f32 %v3379, %v3380
    %v3382 = vsel %vm1371, %v3281, 0.0
    %v3383 = vrot.slane %v3382, 4
    %v3384 = vadd.f32 %v3382, %v3383
    %v3385 = vrot.slane %v3384, 2
    %v3386 = vadd.f32 %v3384, %v3385
    %v3387 = vrot.slane %v3386, 1
    %v3388 = vadd.f32 %v3386, %v3387
    %v3389 = vsel %vm1371, %v3283, 0.0
    %v3390 = vrot.slane %v3389, 4
    %v3391 = vadd.f32 %v3389, %v3390
    %v3392 = vrot.slane %v3391, 2
    %v3393 = vadd.f32 %v3391, %v3392
    %v3394 = vrot.slane %v3393, 1
    %v3395 = vadd.f32 %v3393, %v3394
    %v3396 = vrcp.pop %v3290
    %v3397 = vmul.f32 %v3253, %v3396
    %v3398 = vrcp.pop %v3297
    %v3399 = vmul.f32 %v3255, %v3398
    %v3400 = vrcp.pop %v3304
    %v3401 = vmul.f32 %v3257, %v3400
    %v3402 = vrcp.pop %v3311
    %v3403 = vmul.f32 %v3259, %v3402
    %v3404 = vrcp.pop %v3318
    %v3405 = vmul.f32 %v3261, %v3404
    %v3406 = vrcp.pop %v3325
    %v3407 = vmul.f32 %v3263, %v3406
    %v3408 = vrcp.pop %v3332
    %v3409 = vmul.f32 %v3265, %v3408
    %v3410 = vrcp.pop %v3339
    %v3411 = vmul.f32 %v3267, %v3410
    %v3412 = vrcp.pop %v3346
    %v3413 = vmul.f32 %v3269, %v3412
    %v3414 = vrcp.pop %v3353
    %v3415 = vmul.f32 %v3271, %v3414
    %v3416 = vrcp.pop %v3360
    %v3417 = vmul.f32 %v3273, %v3416
    %v3418 = vrcp.pop %v3367
    %v3419 = vmul.f32 %v3275, %v3418
    %v3420 = vrcp.pop %v3374
    %v3421 = vmul.f32 %v3277, %v3420
    %v3422 = vrcp.pop %v3381
    %v3423 = vmul.f32 %v3279, %v3422
    %v3424 = vrcp.pop %v3388
    %v3425 = vmul.f32 %v3281, %v3424
    %v3426 = vrcp.pop %v3395
    %v3427 = vmul.f32 %v3283, %v3426
    %v3429 = vsel %vm1371, %v3397, 0
    %v3432 = vsel %vm1371, %v3399, 0
    %v3435 = vsel %vm1371, %v3401, 0
    %v3438 = vsel %vm1371, %v3403, 0
    %v3441 = vsel %vm1371, %v3405, 0
    %v3444 = vsel %vm1371, %v3407, 0
    %v3447 = vsel %vm1371, %v3409, 0
    %v3450 = vsel %vm1371, %v3411, 0
    %v3453 = vsel %vm1371, %v3413, 0
    %v3456 = vsel %vm1371, %v3415, 0
    %v3459 = vsel %vm1371, %v3417, 0
    %v3462 = vsel %vm1371, %v3419, 0
    %v3465 = vsel %vm1371, %v3421, 0
    %v3468 = vsel %vm1371, %v3423, 0
    %v3471 = vsel %vm1371, %v3425, 0
    %v3474 = vsel %vm1371, %v3427, 0
    %3476 = vmatprep.subr.mxu0 0.0
    %3477 = vmatpush1.msra.mxu0 0.0
    %3478 = vmatprep.subr.mxu0 0.0
    %3479 = vmatpush1.msra.mxu0 0.0
    %3480 = vmatprep.subr.mxu0 0.0
    %3481 = vmatpush1.msra.mxu0 0.0
    %3482 = vmatprep.subr.mxu0 0.0
    %3483 = vmatpush1.msra.mxu0 0.0
    %3484 = vmatprep.subr.mxu0 0.0
    %3485 = vmatpush1.msra.mxu0 0.0
    %3486 = vmatprep.subr.mxu0 0.0
    %3487 = vmatpush1.msra.mxu0 0.0
    %3488 = vmatprep.subr.mxu0 0.0
    %3489 = vmatpush1.msra.mxu0 0.0
    %3490 = vmatprep.subr.mxu0 0.0
    %3491 = vmatpush1.msra.mxu0 0.0
    %3492 = vmatprep.subr.mxu0 0.0
    %3493 = vmatpush1.msra.mxu0 0.0
    %3494 = vmatprep.subr.mxu0 0.0
    %3495 = vmatpush1.msra.mxu0 0.0
    %3496 = vmatprep.subr.mxu0 0.0
    %3497 = vmatpush1.msra.mxu0 0.0
    %3498 = vmatprep.subr.mxu0 0.0
    %3499 = vmatpush1.msra.mxu0 0.0
    %3500 = vmatprep.subr.mxu0 0.0
    %3501 = vmatpush1.msra.mxu0 0.0
    %3502 = vmatprep.subr.mxu0 0.0
    %3503 = vmatpush1.msra.mxu0 0.0
    %3504 = vmatprep.subr.mxu0 0.0
    %3505 = vmatpush1.msra.mxu0 0.0
    %3506 = vmatprep.subr.mxu0 0.0
    %3507 = vmatpush1.msra.mxu0 %v1902
    %3508 = vmatprep.subr.mxu0 0.0
    %3509 = vmatpush2.msra.mxu0 0.0
    %3510 = vmatprep.subr.mxu0 0.0
    %3511 = vmatpush2.msra.mxu0 0.0
    %3512 = vmatprep.subr.mxu0 0.0
    %3513 = vmatpush2.msra.mxu0 0.0
    %3514 = vmatprep.subr.mxu0 0.0
    %3515 = vmatpush2.msra.mxu0 0.0
    %3516 = vmatprep.subr.mxu0 0.0
    %3517 = vmatpush2.msra.mxu0 0.0
    %3518 = vmatprep.subr.mxu0 0.0
    %3519 = vmatpush2.msra.mxu0 0.0
    %3520 = vmatprep.subr.mxu0 0.0
    %3521 = vmatpush2.msra.mxu0 0.0
    %3522 = vmatprep.subr.mxu0 0.0
    %3523 = vmatpush2.msra.mxu0 0.0
    %3524 = vmatprep.subr.mxu0 0.0
    %3525 = vmatpush2.msra.mxu0 0.0
    %3526 = vmatprep.subr.mxu0 0.0
    %3527 = vmatpush2.msra.mxu0 0.0
    %3528 = vmatprep.subr.mxu0 0.0
    %3529 = vmatpush2.msra.mxu0 0.0
    %3530 = vmatprep.subr.mxu0 0.0
    %3531 = vmatpush2.msra.mxu0 0.0
    %3532 = vmatprep.subr.mxu0 0.0
    %3533 = vmatpush2.msra.mxu0 0.0
    %3534 = vmatprep.subr.mxu0 0.0
    %3535 = vmatpush2.msra.mxu0 0.0
    %3536 = vmatprep.subr.mxu0 0.0
    %3537 = vmatpush2.msra.mxu0 0.0
    %3538 = vmatprep.subr.mxu0 0.0
    %3539 = vmatpush2.msra.mxu0 0.0
    %3540 = vmatprep.mubr.f32.mxu0 0.0
    %3541 = vmatmul.mubr.f32.gmra.mxu0 %v3429
    %v3542 = vpop.f32.mrf.mxu0
    %v3543 = vadd.f32 0.0, %v3542
    %v3544 = vpop.f32.mrf.mxu0
    %3545 = vmatprep.mubr.f32.mxu0 0.0
    %3546 = vmatmul.mubr.f32.gmra.mxu0 %v3432
    %v3547 = vpop.f32.mrf.mxu0
    %v3548 = vadd.f32 0.0, %v3547
    %v3549 = vpop.f32.mrf.mxu0
    %3550 = vmatprep.mubr.f32.mxu0 0.0
    %3551 = vmatmul.mubr.f32.gmra.mxu0 %v3435
    %v3552 = vpop.f32.mrf.mxu0
    %v3553 = vadd.f32 0.0, %v3552
    %v3554 = vpop.f32.mrf.mxu0
    %3555 = vmatprep.mubr.f32.mxu0 0.0
    %3556 = vmatmul.mubr.f32.gmra.mxu0 %v3438
    %v3557 = vpop.f32.mrf.mxu0
    %v3558 = vadd.f32 0.0, %v3557
    %v3559 = vpop.f32.mrf.mxu0
    %3560 = vmatprep.mubr.f32.mxu0 0.0
    %3561 = vmatmul.mubr.f32.gmra.mxu0 %v3441
    %v3562 = vpop.f32.mrf.mxu0
    %v3563 = vadd.f32 0.0, %v3562
    %v3564 = vpop.f32.mrf.mxu0
    %3565 = vmatprep.mubr.f32.mxu0 0.0
    %3566 = vmatmul.mubr.f32.gmra.mxu0 %v3444
    %v3567 = vpop.f32.mrf.mxu0
    %v3568 = vadd.f32 0.0, %v3567
    %v3569 = vpop.f32.mrf.mxu0
    %3570 = vmatprep.mubr.f32.mxu0 0.0
    %3571 = vmatmul.mubr.f32.gmra.mxu0 %v3447
    %v3572 = vpop.f32.mrf.mxu0
    %v3573 = vadd.f32 0.0, %v3572
    %v3574 = vpop.f32.mrf.mxu0
    %3575 = vmatprep.mubr.f32.mxu0 0.0
    %3576 = vmatmul.mubr.f32.gmra.mxu0 %v3450
    %v3577 = vpop.f32.mrf.mxu0
    %v3578 = vadd.f32 0.0, %v3577
    %v3579 = vpop.f32.mrf.mxu0
    %3580 = vmatprep.mubr.f32.mxu0 0.0
    %3581 = vmatmul.mubr.f32.gmra.mxu0 %v3453
    %v3582 = vpop.f32.mrf.mxu0
    %v3583 = vadd.f32 0.0, %v3582
    %v3584 = vpop.f32.mrf.mxu0
    %3585 = vmatprep.mubr.f32.mxu0 0.0
    %3586 = vmatmul.mubr.f32.gmra.mxu0 %v3456
    %v3587 = vpop.f32.mrf.mxu0
    %v3588 = vadd.f32 0.0, %v3587
    %v3589 = vpop.f32.mrf.mxu0
    %3590 = vmatprep.mubr.f32.mxu0 0.0
    %3591 = vmatmul.mubr.f32.gmra.mxu0 %v3459
    %v3592 = vpop.f32.mrf.mxu0
    %v3593 = vadd.f32 0.0, %v3592
    %v3594 = vpop.f32.mrf.mxu0
    %3595 = vmatprep.mubr.f32.mxu0 0.0
    %3596 = vmatmul.mubr.f32.gmra.mxu0 %v3462
    %v3597 = vpop.f32.mrf.mxu0
    %v3598 = vadd.f32 0.0, %v3597
    %v3599 = vpop.f32.mrf.mxu0
    %3600 = vmatprep.mubr.f32.mxu0 0.0
    %3601 = vmatmul.mubr.f32.gmra.mxu0 %v3465
    %v3602 = vpop.f32.mrf.mxu0
    %v3603 = vadd.f32 0.0, %v3602
    %v3604 = vpop.f32.mrf.mxu0
    %3605 = vmatprep.mubr.f32.mxu0 0.0
    %3606 = vmatmul.mubr.f32.gmra.mxu0 %v3468
    %v3607 = vpop.f32.mrf.mxu0
    %v3608 = vadd.f32 0.0, %v3607
    %v3609 = vpop.f32.mrf.mxu0
    %3610 = vmatprep.mubr.f32.mxu0 0.0
    %3611 = vmatmul.mubr.f32.gmra.mxu0 %v3471
    %v3612 = vpop.f32.mrf.mxu0
    %v3613 = vadd.f32 0.0, %v3612
    %v3614 = vpop.f32.mrf.mxu0
    %3615 = vmatprep.mubr.f32.mxu0 0.0
    %3616 = vmatmul.mubr.f32.gmra.mxu0 %v3474
    %v3617 = vpop.f32.mrf.mxu0
    %v3618 = vadd.f32 0.0, %v3617
    %v3619 = vpop.f32.mrf.mxu0
    %3620 = vdwg.mxu0
    %v3621 = vmul.f32 %v3543, %v2721
    %v3622 = vmul.f32 %v3548, %v2721
    %v3623 = vmul.f32 %v3553, %v2721
    %v3624 = vmul.f32 %v3558, %v2721
    %v3625 = vmul.f32 %v3563, %v2721
    %v3626 = vmul.f32 %v3568, %v2721
    %v3627 = vmul.f32 %v3573, %v2721
    %v3628 = vmul.f32 %v3578, %v2721
    %v3629 = vmul.f32 %v3583, %v2726
    %v3630 = vmul.f32 %v3588, %v2726
    %v3631 = vmul.f32 %v3593, %v2726
    %v3632 = vmul.f32 %v3598, %v2726
    %v3633 = vmul.f32 %v3603, %v2726
    %v3634 = vmul.f32 %v3608, %v2726
    %v3635 = vmul.f32 %v3613, %v2726
    %v3636 = vmul.f32 %v3618, %v2726
    %v3637 = vsel %vm46, %v3621, 0.0
    %v3638 = vrot.slane %v3637, 4
    %v3639 = vadd.f32 %v3637, %v3638
    %v3640 = vrot.slane %v3639, 2
    %v3641 = vadd.f32 %v3639, %v3640
    %v3642 = vrot.slane %v3641, 1
    %v3643 = vadd.f32 %v3641, %v3642
    %v3644 = vsel %vm46, %v3622, 0.0
    %v3645 = vrot.slane %v3644, 4
    %v3646 = vadd.f32 %v3644, %v3645
    %v3647 = vrot.slane %v3646, 2
    %v3648 = vadd.f32 %v3646, %v3647
    %v3649 = vrot.slane %v3648, 1
    %v3650 = vadd.f32 %v3648, %v3649
    %v3651 = vsel %vm46, %v3623, 0.0
    %v3652 = vrot.slane %v3651, 4
    %v3653 = vadd.f32 %v3651, %v3652
    %v3654 = vrot.slane %v3653, 2
    %v3655 = vadd.f32 %v3653, %v3654
    %v3656 = vrot.slane %v3655, 1
    %v3657 = vadd.f32 %v3655, %v3656
    %v3658 = vsel %vm46, %v3624, 0.0
    %v3659 = vrot.slane %v3658, 4
    %v3660 = vadd.f32 %v3658, %v3659
    %v3661 = vrot.slane %v3660, 2
    %v3662 = vadd.f32 %v3660, %v3661
    %v3663 = vrot.slane %v3662, 1
    %v3664 = vadd.f32 %v3662, %v3663
    %v3665 = vsel %vm46, %v3625, 0.0
    %v3666 = vrot.slane %v3665, 4
    %v3667 = vadd.f32 %v3665, %v3666
    %v3668 = vrot.slane %v3667, 2
    %v3669 = vadd.f32 %v3667, %v3668
    %v3670 = vrot.slane %v3669, 1
    %v3671 = vadd.f32 %v3669, %v3670
    %v3672 = vsel %vm46, %v3626, 0.0
    %v3673 = vrot.slane %v3672, 4
    %v3674 = vadd.f32 %v3672, %v3673
    %v3675 = vrot.slane %v3674, 2
    %v3676 = vadd.f32 %v3674, %v3675
    %v3677 = vrot.slane %v3676, 1
    %v3678 = vadd.f32 %v3676, %v3677
    %v3679 = vsel %vm46, %v3627, 0.0
    %v3680 = vrot.slane %v3679, 4
    %v3681 = vadd.f32 %v3679, %v3680
    %v3682 = vrot.slane %v3681, 2
    %v3683 = vadd.f32 %v3681, %v3682
    %v3684 = vrot.slane %v3683, 1
    %v3685 = vadd.f32 %v3683, %v3684
    %v3686 = vsel %vm46, %v3628, 0.0
    %v3687 = vrot.slane %v3686, 4
    %v3688 = vadd.f32 %v3686, %v3687
    %v3689 = vrot.slane %v3688, 2
    %v3690 = vadd.f32 %v3688, %v3689
    %v3691 = vrot.slane %v3690, 1
    %v3692 = vadd.f32 %v3690, %v3691
    %v3693 = vsel %vm46, %v3629, 0.0
    %v3694 = vrot.slane %v3693, 4
    %v3695 = vadd.f32 %v3693, %v3694
    %v3696 = vrot.slane %v3695, 2
    %v3697 = vadd.f32 %v3695, %v3696
    %v3698 = vrot.slane %v3697, 1
    %v3699 = vadd.f32 %v3697, %v3698
    %v3700 = vsel %vm46, %v3630, 0.0
    %v3701 = vrot.slane %v3700, 4
    %v3702 = vadd.f32 %v3700, %v3701
    %v3703 = vrot.slane %v3702, 2
    %v3704 = vadd.f32 %v3702, %v3703
    %v3705 = vrot.slane %v3704, 1
    %v3706 = vadd.f32 %v3704, %v3705
    %v3707 = vsel %vm46, %v3631, 0.0
    %v3708 = vrot.slane %v3707, 4
    %v3709 = vadd.f32 %v3707, %v3708
    %v3710 = vrot.slane %v3709, 2
    %v3711 = vadd.f32 %v3709, %v3710
    %v3712 = vrot.slane %v3711, 1
    %v3713 = vadd.f32 %v3711, %v3712
    %v3714 = vsel %vm46, %v3632, 0.0
    %v3715 = vrot.slane %v3714, 4
    %v3716 = vadd.f32 %v3714, %v3715
    %v3717 = vrot.slane %v3716, 2
    %v3718 = vadd.f32 %v3716, %v3717
    %v3719 = vrot.slane %v3718, 1
    %v3720 = vadd.f32 %v3718, %v3719
    %v3721 = vsel %vm46, %v3633, 0.0
    %v3722 = vrot.slane %v3721, 4
    %v3723 = vadd.f32 %v3721, %v3722
    %v3724 = vrot.slane %v3723, 2
    %v3725 = vadd.f32 %v3723, %v3724
    %v3726 = vrot.slane %v3725, 1
    %v3727 = vadd.f32 %v3725, %v3726
    %v3728 = vsel %vm46, %v3634, 0.0
    %v3729 = vrot.slane %v3728, 4
    %v3730 = vadd.f32 %v3728, %v3729
    %v3731 = vrot.slane %v3730, 2
    %v3732 = vadd.f32 %v3730, %v3731
    %v3733 = vrot.slane %v3732, 1
    %v3734 = vadd.f32 %v3732, %v3733
    %v3735 = vsel %vm46, %v3635, 0.0
    %v3736 = vrot.slane %v3735, 4
    %v3737 = vadd.f32 %v3735, %v3736
    %v3738 = vrot.slane %v3737, 2
    %v3739 = vadd.f32 %v3737, %v3738
    %v3740 = vrot.slane %v3739, 1
    %v3741 = vadd.f32 %v3739, %v3740
    %v3742 = vsel %vm46, %v3636, 0.0
    %v3743 = vrot.slane %v3742, 4
    %v3744 = vadd.f32 %v3742, %v3743
    %v3745 = vrot.slane %v3744, 2
    %v3746 = vadd.f32 %v3744, %v3745
    %v3747 = vrot.slane %v3746, 1
    %v3748 = vadd.f32 %v3746, %v3747
    %v3749 = vlaneseq
    %v3750 = vshrl.u32 %v3749, 7
    %v3751 = vsub.s32 0, %v3750
    %v3752 = vrot.slane %v2734, %v3751
    %v3769 = vsel %vm2325, %v3650, %v3643
    %v3770 = vsel %vm2327, %v3657, %v3769
    %v3771 = vsel %vm2329, %v3664, %v3770
    %v3772 = vsel %vm2331, %v3671, %v3771
    %v3773 = vsel %vm2333, %v3678, %v3772
    %v3774 = vsel %vm2335, %v3685, %v3773
    %v3775 = vsel %vm2337, %v3692, %v3774
    %v3776 = vsel %vm2325, %v3706, %v3699
    %v3777 = vsel %vm2327, %v3713, %v3776
    %v3778 = vsel %vm2329, %v3720, %v3777
    %v3779 = vsel %vm2331, %v3727, %v3778
    %v3780 = vsel %vm2333, %v3734, %v3779
    %v3781 = vsel %vm2335, %v3741, %v3780
    %v3782 = vsel %vm2337, %v3748, %v3781
    %v3783 = vsel %vm46, %v3775, 0
    %v3785 = vsel %vm46, %v3782, 0
    %3787 = vmatprep.subr.mxu0 0.0
    %3788 = vmatpush1.msra.mxu0 0.0
    %3789 = vmatprep.subr.mxu0 0.0
    %3790 = vmatpush1.msra.mxu0 0.0
    %3791 = vmatprep.subr.mxu0 0.0
    %3792 = vmatpush1.msra.mxu0 0.0
    %3793 = vmatprep.subr.mxu0 0.0
    %3794 = vmatpush1.msra.mxu0 0.0
    %3795 = vmatprep.subr.mxu0 0.0
    %3796 = vmatpush1.msra.mxu0 0.0
    %3797 = vmatprep.subr.mxu0 0.0
    %3798 = vmatpush1.msra.mxu0 0.0
    %3799 = vmatprep.subr.mxu0 0.0
    %3800 = vmatpush1.msra.mxu0 0.0
    %3801 = vmatprep.subr.mxu0 0.0
    %3802 = vmatpush1.msra.mxu0 0.0
    %3803 = vmatprep.subr.mxu0 0.0
    %3804 = vmatpush1.msra.mxu0 0.0
    %3805 = vmatprep.subr.mxu0 0.0
    %3806 = vmatpush1.msra.mxu0 0.0
    %3807 = vmatprep.subr.mxu0 0.0
    %3808 = vmatpush1.msra.mxu0 0.0
    %3809 = vmatprep.subr.mxu0 0.0
    %3810 = vmatpush1.msra.mxu0 0.0
    %3811 = vmatprep.subr.mxu0 0.0
    %3812 = vmatpush1.msra.mxu0 %v2733
    %3813 = vmatprep.subr.mxu0 0.0
    %3814 = vmatpush1.msra.mxu0 %v2732
    %3815 = vmatprep.subr.mxu0 0.0
    %3816 = vmatpush1.msra.mxu0 %v2731
    %3817 = vmatprep.subr.mxu0 0.0
    %3818 = vmatpush1.msra.mxu0 %v2730
    %3819 = vmatprep.subr.mxu0 0.0
    %3820 = vmatpush2.msra.mxu0 0.0
    %3821 = vmatprep.subr.mxu0 0.0
    %3822 = vmatpush2.msra.mxu0 0.0
    %3823 = vmatprep.subr.mxu0 0.0
    %3824 = vmatpush2.msra.mxu0 0.0
    %3825 = vmatprep.subr.mxu0 0.0
    %3826 = vmatpush2.msra.mxu0 0.0
    %3827 = vmatprep.subr.mxu0 0.0
    %3828 = vmatpush2.msra.mxu0 0.0
    %3829 = vmatprep.subr.mxu0 0.0
    %3830 = vmatpush2.msra.mxu0 0.0
    %3831 = vmatprep.subr.mxu0 0.0
    %3832 = vmatpush2.msra.mxu0 0.0
    %3833 = vmatprep.subr.mxu0 0.0
    %3834 = vmatpush2.msra.mxu0 0.0
    %3835 = vmatprep.subr.mxu0 0.0
    %3836 = vmatpush2.msra.mxu0 0.0
    %3837 = vmatprep.subr.mxu0 0.0
    %3838 = vmatpush2.msra.mxu0 0.0
    %3839 = vmatprep.subr.mxu0 0.0
    %3840 = vmatpush2.msra.mxu0 0.0
    %3841 = vmatprep.subr.mxu0 0.0
    %3842 = vmatpush2.msra.mxu0 0.0
    %3843 = vmatprep.subr.mxu0 0.0
    %3844 = vmatpush2.msra.mxu0 0.0
    %3845 = vmatprep.subr.mxu0 0.0
    %3846 = vmatpush2.msra.mxu0 0.0
    %3847 = vmatprep.subr.mxu0 0.0
    %3848 = vmatpush2.msra.mxu0 0.0
    %3849 = vmatprep.subr.mxu0 0.0
    %3850 = vmatpush2.msra.mxu0 0.0
    %3851 = vmatprep.mubr.f32.mxu0 0.0
    %3852 = vmatmul.mubr.f32.gmra.mxu0 %v3783
    %v3853 = vpop.f32.mrf.mxu0
    %v3854 = vadd.f32 %v3752, %v3853
    %v3855 = vpop.f32.mrf.mxu0
    %3856 = vmatprep.mubr.f32.mxu0 0.0
    %3857 = vmatmul.mubr.f32.gmra.mxu0 %v3785
    %v3858 = vpop.f32.mrf.mxu0
    %v3859 = vadd.f32 %v3752, %v3858
    %v3860 = vpop.f32.mrf.mxu0
    %3861 = vdwg.mxu0
    %v3862 = vadd.f32 %v2466, %v3854
    %v3863 = vadd.f32 %v2467, %v3859
    %v3864 = vld [vmem:[%s4 + $0xa] sm:$0x1]
    %v3865 = vld [vmem:[%s4 + $0xb] sm:$0x1]
    %v3866 = vsel %vm46, %v3862, 0.0
    %3867 = vadd.xlane.f32.xlu0 %v3866
    %v3868 = vpop.xlane.xlu0 %3867
    %v3869 = vsel %vm46, %v3863, 0.0
    %3870 = vadd.xlane.f32.xlu0 %v3869
    %v3871 = vpop.xlane.xlu0 %3870
    %v3872 = vmul.f32 %v3868, %v2435
    %v3873 = vmul.f32 %v3871, %v2435
    %v3874 = vsub.f32 %v3862, %v3872
    %v3875 = vsub.f32 %v3863, %v3873
    %v3876 = vmul.f32 %v3874, %v3874
    %v3877 = vmul.f32 %v3875, %v3875
    %v3878 = vsel %vm46, %v3876, 0.0
    %3879 = vadd.xlane.f32.xlu0 %v3878
    %v3880 = vpop.xlane.xlu0 %3879
    %v3881 = vsel %vm46, %v3877, 0.0
    %3882 = vadd.xlane.f32.xlu0 %v3881
    %v3883 = vpop.xlane.xlu0 %3882
    %v3884 = vmul.f32 %v3880, %v2435
    %v3885 = vmul.f32 %v3883, %v2435
    %v3886 = vadd.f32 %v3884, 1e-05
    %v3887 = vadd.f32 %v3885, 1e-05
    %v3888 = vrsqrt.pop %v3886
    %v3889 = vrsqrt.pop %v3887
    %v3890 = vmul.f32 %v3874, %v3888
    %v3891 = vmul.f32 %v3875, %v3889
    %v3892 = vlaneseq
    %v3893 = vshrl.u32 %v3892, 7
    %v3894 = vsub.s32 0, %v3893
    %v3895 = vrot.slane %v3864, %v3894
    %v3896 = vmul.f32 %v3890, %v3895
    %v3897 = vmul.f32 %v3891, %v3895
    %v3898 = vlaneseq
    %v3899 = vshrl.u32 %v3898, 7
    %v3900 = vsub.s32 0, %v3899
    %v3901 = vrot.slane %v3865, %v3900
    %v3902 = vadd.f32 %v3896, %v3901
    %v3903 = vadd.f32 %v3897, %v3901
    %v3904 = vld [vmem:[%s5] sm:$0xff]
    %v3905 = vld [vmem:[%s5 + $0x8] sm:$0xff]
    %v3906 = vld [vmem:[%s5 + $0x10] sm:$0xff]
    %v3907 = vld [vmem:[%s5 + $0x18] sm:$0xff]
    %v3908 = vld [vmem:[%s5 + $0x20] sm:$0xff]
    %v3909 = vld [vmem:[%s5 + $0x28] sm:$0xff]
    %v3910 = vld [vmem:[%s5 + $0x30] sm:$0xff]
    %v3911 = vld [vmem:[%s5 + $0x38] sm:$0xff]
    %v3912 = vld [vmem:[%s5 + $0x40] sm:$0xff]
    %v3913 = vld [vmem:[%s5 + $0x48] sm:$0xff]
    %v3914 = vld [vmem:[%s5 + $0x50] sm:$0xff]
    %v3915 = vld [vmem:[%s5 + $0x58] sm:$0xff]
    %v3916 = vld [vmem:[%s5 + $0x60] sm:$0xff]
    %v3917 = vld [vmem:[%s5 + $0x68] sm:$0xff]
    %v3918 = vld [vmem:[%s5 + $0x70] sm:$0xff]
    %v3919 = vld [vmem:[%s5 + $0x78] sm:$0xff]
    %v3920 = vld [vmem:[%s5 + $0x80] sm:$0xff]
    %v3921 = vld [vmem:[%s5 + $0x88] sm:$0xff]
    %v3922 = vld [vmem:[%s5 + $0x90] sm:$0xff]
    %v3923 = vld [vmem:[%s5 + $0x98] sm:$0xff]
    %v3924 = vld [vmem:[%s5 + $0xa0] sm:$0xff]
    %v3925 = vld [vmem:[%s5 + $0xa8] sm:$0xff]
    %v3926 = vld [vmem:[%s5 + $0xb0] sm:$0xff]
    %v3927 = vld [vmem:[%s5 + $0xb8] sm:$0xff]
    %v3928 = vld [vmem:[%s5 + $0xc0] sm:$0xff]
    %v3929 = vld [vmem:[%s5 + $0xc8] sm:$0xff]
    %v3930 = vld [vmem:[%s5 + $0xd0] sm:$0xff]
    %v3931 = vld [vmem:[%s5 + $0xd8] sm:$0xff]
    %v3932 = vld [vmem:[%s5 + $0xe0] sm:$0xff]
    %v3933 = vld [vmem:[%s5 + $0xe8] sm:$0xff]
    %v3934 = vld [vmem:[%s5 + $0xf0] sm:$0xff]
    %v3935 = vld [vmem:[%s5 + $0xf8] sm:$0xff]
    %v3936 = vld [vmem:[%s6] sm:$0xff]
    %v3938 = vlaneseq
    %v3939 = vshrl.u32 %v3938, 7
    %v3940 = vsub.s32 0, %v3939
    %v3941 = vrot.slane %v3936, %v3940
    %v3942 = vlaneseq
    %v3943 = vshrl.u32 %v3942, 7
    %v3944 = vsub.s32 1, %v3943
    %v3945 = vrot.slane %v3936, %v3944
    %v3946 = vlaneseq
    %v3947 = vshrl.u32 %v3946, 7
    %v3948 = vsub.s32 2, %v3947
    %v3949 = vrot.slane %v3936, %v3948
    %v3950 = vlaneseq
    %v3951 = vshrl.u32 %v3950, 7
    %v3952 = vsub.s32 3, %v3951
    %v3953 = vrot.slane %v3936, %v3952
    %v3954 = vlaneseq
    %v3955 = vshrl.u32 %v3954, 7
    %v3956 = vsub.s32 4, %v3955
    %v3957 = vrot.slane %v3936, %v3956
    %v3958 = vlaneseq
    %v3959 = vshrl.u32 %v3958, 7
    %v3960 = vsub.s32 5, %v3959
    %v3961 = vrot.slane %v3936, %v3960
    %v3962 = vlaneseq
    %v3963 = vshrl.u32 %v3962, 7
    %v3964 = vsub.s32 6, %v3963
    %v3965 = vrot.slane %v3936, %v3964
    %v3966 = vlaneseq
    %v3967 = vshrl.u32 %v3966, 7
    %v3968 = vsub.s32 7, %v3967
    %v3969 = vrot.slane %v3936, %v3968
    %v3979 = vsel %vm46, %v3902, 0
    %v3982 = vsel %vm46, %v3903, 0
    %3984 = vmatprep.subr.mxu0 0.0
    %3985 = vmatpush1.msra.mxu0 0.0
    %3986 = vmatprep.subr.mxu0 0.0
    %3987 = vmatpush1.msra.mxu0 0.0
    %3988 = vmatprep.subr.mxu0 0.0
    %3989 = vmatpush1.msra.mxu0 0.0
    %3990 = vmatprep.subr.mxu0 0.0
    %3991 = vmatpush1.msra.mxu0 0.0
    %3992 = vmatprep.subr.mxu0 0.0
    %3993 = vmatpush1.msra.mxu0 0.0
    %3994 = vmatprep.subr.mxu0 0.0
    %3995 = vmatpush1.msra.mxu0 0.0
    %3996 = vmatprep.subr.mxu0 0.0
    %3997 = vmatpush1.msra.mxu0 0.0
    %3998 = vmatprep.subr.mxu0 0.0
    %3999 = vmatpush1.msra.mxu0 0.0
    %4000 = vmatprep.subr.mxu0 0.0
    %4001 = vmatpush1.msra.mxu0 0.0
    %4002 = vmatprep.subr.mxu0 0.0
    %4003 = vmatpush1.msra.mxu0 0.0
    %4004 = vmatprep.subr.mxu0 0.0
    %4005 = vmatpush1.msra.mxu0 0.0
    %4006 = vmatprep.subr.mxu0 0.0
    %4007 = vmatpush1.msra.mxu0 0.0
    %4008 = vmatprep.subr.mxu0 %v3929
    %4009 = vmatpush1.msra.mxu0 %v3928
    %4010 = vmatprep.subr.mxu0 %v3921
    %4011 = vmatpush1.msra.mxu0 %v3920
    %4012 = vmatprep.subr.mxu0 %v3913
    %4013 = vmatpush1.msra.mxu0 %v3912
    %4014 = vmatprep.subr.mxu0 %v3905
    %4015 = vmatpush1.msra.mxu0 %v3904
    %4016 = vmatprep.subr.mxu0 0.0
    %4017 = vmatpush2.msra.mxu0 0.0
    %4018 = vmatprep.subr.mxu0 0.0
    %4019 = vmatpush2.msra.mxu0 0.0
    %4020 = vmatprep.subr.mxu0 0.0
    %4021 = vmatpush2.msra.mxu0 0.0
    %4022 = vmatprep.subr.mxu0 0.0
    %4023 = vmatpush2.msra.mxu0 0.0
    %4024 = vmatprep.subr.mxu0 0.0
    %4025 = vmatpush2.msra.mxu0 0.0
    %4026 = vmatprep.subr.mxu0 0.0
    %4027 = vmatpush2.msra.mxu0 0.0
    %4028 = vmatprep.subr.mxu0 0.0
    %4029 = vmatpush2.msra.mxu0 0.0
    %4030 = vmatprep.subr.mxu0 0.0
    %4031 = vmatpush2.msra.mxu0 0.0
    %4032 = vmatprep.subr.mxu0 0.0
    %4033 = vmatpush2.msra.mxu0 0.0
    %4034 = vmatprep.subr.mxu0 0.0
    %4035 = vmatpush2.msra.mxu0 0.0
    %4036 = vmatprep.subr.mxu0 0.0
    %4037 = vmatpush2.msra.mxu0 0.0
    %4038 = vmatprep.subr.mxu0 0.0
    %4039 = vmatpush2.msra.mxu0 0.0
    %4040 = vmatprep.subr.mxu0 0.0
    %4041 = vmatpush2.msra.mxu0 0.0
    %4042 = vmatprep.subr.mxu0 0.0
    %4043 = vmatpush2.msra.mxu0 0.0
    %4044 = vmatprep.subr.mxu0 0.0
    %4045 = vmatpush2.msra.mxu0 0.0
    %4046 = vmatprep.subr.mxu0 0.0
    %4047 = vmatpush2.msra.mxu0 0.0
    %4048 = vmatprep.mubr.f32.mxu0 0.0
    %4049 = vmatmul.mubr.f32.gmra.mxu0 %v3979
    %v4050 = vpop.f32.mrf.mxu0
    %v4051 = vadd.f32 %v3941, %v4050
    %v4052 = vpop.f32.mrf.mxu0
    %v4053 = vadd.f32 %v3945, %v4052
    %4054 = vmatprep.mubr.f32.mxu0 0.0
    %4055 = vmatmul.mubr.f32.gmra.mxu0 %v3982
    %v4056 = vpop.f32.mrf.mxu0
    %v4057 = vadd.f32 %v3941, %v4056
    %v4058 = vpop.f32.mrf.mxu0
    %v4059 = vadd.f32 %v3945, %v4058
    %4060 = vdwg.mxu0
    %4061 = vmatprep.subr.mxu0 0.0
    %4062 = vmatpush1.msra.mxu0 0.0
    %4063 = vmatprep.subr.mxu0 0.0
    %4064 = vmatpush1.msra.mxu0 0.0
    %4065 = vmatprep.subr.mxu0 0.0
    %4066 = vmatpush1.msra.mxu0 0.0
    %4067 = vmatprep.subr.mxu0 0.0
    %4068 = vmatpush1.msra.mxu0 0.0
    %4069 = vmatprep.subr.mxu0 0.0
    %4070 = vmatpush1.msra.mxu0 0.0
    %4071 = vmatprep.subr.mxu0 0.0
    %4072 = vmatpush1.msra.mxu0 0.0
    %4073 = vmatprep.subr.mxu0 0.0
    %4074 = vmatpush1.msra.mxu0 0.0
    %4075 = vmatprep.subr.mxu0 0.0
    %4076 = vmatpush1.msra.mxu0 0.0
    %4077 = vmatprep.subr.mxu0 0.0
    %4078 = vmatpush1.msra.mxu0 0.0
    %4079 = vmatprep.subr.mxu0 0.0
    %4080 = vmatpush1.msra.mxu0 0.0
    %4081 = vmatprep.subr.mxu0 0.0
    %4082 = vmatpush1.msra.mxu0 0.0
    %4083 = vmatprep.subr.mxu0 0.0
    %4084 = vmatpush1.msra.mxu0 0.0
    %4085 = vmatprep.subr.mxu0 %v3931
    %4086 = vmatpush1.msra.mxu0 %v3930
    %4087 = vmatprep.subr.mxu0 %v3923
    %4088 = vmatpush1.msra.mxu0 %v3922
    %4089 = vmatprep.subr.mxu0 %v3915
    %4090 = vmatpush1.msra.mxu0 %v3914
    %4091 = vmatprep.subr.mxu0 %v3907
    %4092 = vmatpush1.msra.mxu0 %v3906
    %4093 = vmatprep.subr.mxu0 0.0
    %4094 = vmatpush2.msra.mxu0 0.0
    %4095 = vmatprep.subr.mxu0 0.0
    %4096 = vmatpush2.msra.mxu0 0.0
    %4097 = vmatprep.subr.mxu0 0.0
    %4098 = vmatpush2.msra.mxu0 0.0
    %4099 = vmatprep.subr.mxu0 0.0
    %4100 = vmatpush2.msra.mxu0 0.0
    %4101 = vmatprep.subr.mxu0 0.0
    %4102 = vmatpush2.msra.mxu0 0.0
    %4103 = vmatprep.subr.mxu0 0.0
    %4104 = vmatpush2.msra.mxu0 0.0
    %4105 = vmatprep.subr.mxu0 0.0
    %4106 = vmatpush2.msra.mxu0 0.0
    %4107 = vmatprep.subr.mxu0 0.0
    %4108 = vmatpush2.msra.mxu0 0.0
    %4109 = vmatprep.subr.mxu0 0.0
    %4110 = vmatpush2.msra.mxu0 0.0
    %4111 = vmatprep.subr.mxu0 0.0
    %4112 = vmatpush2.msra.mxu0 0.0
    %4113 = vmatprep.subr.mxu0 0.0
    %4114 = vmatpush2.msra.mxu0 0.0
    %4115 = vmatprep.subr.mxu0 0.0
    %4116 = vmatpush2.msra.mxu0 0.0
    %4117 = vmatprep.subr.mxu0 0.0
    %4118 = vmatpush2.msra.mxu0 0.0
    %4119 = vmatprep.subr.mxu0 0.0
    %4120 = vmatpush2.msra.mxu0 0.0
    %4121 = vmatprep.subr.mxu0 0.0
    %4122 = vmatpush2.msra.mxu0 0.0
    %4123 = vmatprep.subr.mxu0 0.0
    %4124 = vmatpush2.msra.mxu0 0.0
    %4125 = vmatprep.mubr.f32.mxu0 0.0
    %4126 = vmatmul.mubr.f32.gmra.mxu0 %v3979
    %v4127 = vpop.f32.mrf.mxu0
    %v4128 = vadd.f32 %v3949, %v4127
    %v4129 = vpop.f32.mrf.mxu0
    %v4130 = vadd.f32 %v3953, %v4129
    %4131 = vmatprep.mubr.f32.mxu0 0.0
    %4132 = vmatmul.mubr.f32.gmra.mxu0 %v3982
    %v4133 = vpop.f32.mrf.mxu0
    %v4134 = vadd.f32 %v3949, %v4133
    %v4135 = vpop.f32.mrf.mxu0
    %v4136 = vadd.f32 %v3953, %v4135
    %4137 = vdwg.mxu0
    %4138 = vmatprep.subr.mxu0 0.0
    %4139 = vmatpush1.msra.mxu0 0.0
    %4140 = vmatprep.subr.mxu0 0.0
    %4141 = vmatpush1.msra.mxu0 0.0
    %4142 = vmatprep.subr.mxu0 0.0
    %4143 = vmatpush1.msra.mxu0 0.0
    %4144 = vmatprep.subr.mxu0 0.0
    %4145 = vmatpush1.msra.mxu0 0.0
    %4146 = vmatprep.subr.mxu0 0.0
    %4147 = vmatpush1.msra.mxu0 0.0
    %4148 = vmatprep.subr.mxu0 0.0
    %4149 = vmatpush1.msra.mxu0 0.0
    %4150 = vmatprep.subr.mxu0 0.0
    %4151 = vmatpush1.msra.mxu0 0.0
    %4152 = vmatprep.subr.mxu0 0.0
    %4153 = vmatpush1.msra.mxu0 0.0
    %4154 = vmatprep.subr.mxu0 0.0
    %4155 = vmatpush1.msra.mxu0 0.0
    %4156 = vmatprep.subr.mxu0 0.0
    %4157 = vmatpush1.msra.mxu0 0.0
    %4158 = vmatprep.subr.mxu0 0.0
    %4159 = vmatpush1.msra.mxu0 0.0
    %4160 = vmatprep.subr.mxu0 0.0
    %4161 = vmatpush1.msra.mxu0 0.0
    %4162 = vmatprep.subr.mxu0 %v3933
    %4163 = vmatpush1.msra.mxu0 %v3932
    %4164 = vmatprep.subr.mxu0 %v3925
    %4165 = vmatpush1.msra.mxu0 %v3924
    %4166 = vmatprep.subr.mxu0 %v3917
    %4167 = vmatpush1.msra.mxu0 %v3916
    %4168 = vmatprep.subr.mxu0 %v3909
    %4169 = vmatpush1.msra.mxu0 %v3908
    %4170 = vmatprep.subr.mxu0 0.0
    %4171 = vmatpush2.msra.mxu0 0.0
    %4172 = vmatprep.subr.mxu0 0.0
    %4173 = vmatpush2.msra.mxu0 0.0
    %4174 = vmatprep.subr.mxu0 0.0
    %4175 = vmatpush2.msra.mxu0 0.0
    %4176 = vmatprep.subr.mxu0 0.0
    %4177 = vmatpush2.msra.mxu0 0.0
    %4178 = vmatprep.subr.mxu0 0.0
    %4179 = vmatpush2.msra.mxu0 0.0
    %4180 = vmatprep.subr.mxu0 0.0
    %4181 = vmatpush2.msra.mxu0 0.0
    %4182 = vmatprep.subr.mxu0 0.0
    %4183 = vmatpush2.msra.mxu0 0.0
    %4184 = vmatprep.subr.mxu0 0.0
    %4185 = vmatpush2.msra.mxu0 0.0
    %4186 = vmatprep.subr.mxu0 0.0
    %4187 = vmatpush2.msra.mxu0 0.0
    %4188 = vmatprep.subr.mxu0 0.0
    %4189 = vmatpush2.msra.mxu0 0.0
    %4190 = vmatprep.subr.mxu0 0.0
    %4191 = vmatpush2.msra.mxu0 0.0
    %4192 = vmatprep.subr.mxu0 0.0
    %4193 = vmatpush2.msra.mxu0 0.0
    %4194 = vmatprep.subr.mxu0 0.0
    %4195 = vmatpush2.msra.mxu0 0.0
    %4196 = vmatprep.subr.mxu0 0.0
    %4197 = vmatpush2.msra.mxu0 0.0
    %4198 = vmatprep.subr.mxu0 0.0
    %4199 = vmatpush2.msra.mxu0 0.0
    %4200 = vmatprep.subr.mxu0 0.0
    %4201 = vmatpush2.msra.mxu0 0.0
    %4202 = vmatprep.mubr.f32.mxu0 0.0
    %4203 = vmatmul.mubr.f32.gmra.mxu0 %v3979
    %v4204 = vpop.f32.mrf.mxu0
    %v4205 = vadd.f32 %v3957, %v4204
    %v4206 = vpop.f32.mrf.mxu0
    %v4207 = vadd.f32 %v3961, %v4206
    %4208 = vmatprep.mubr.f32.mxu0 0.0
    %4209 = vmatmul.mubr.f32.gmra.mxu0 %v3982
    %v4210 = vpop.f32.mrf.mxu0
    %v4211 = vadd.f32 %v3957, %v4210
    %v4212 = vpop.f32.mrf.mxu0
    %v4213 = vadd.f32 %v3961, %v4212
    %4214 = vdwg.mxu0
    %4215 = vmatprep.subr.mxu0 0.0
    %4216 = vmatpush1.msra.mxu0 0.0
    %4217 = vmatprep.subr.mxu0 0.0
    %4218 = vmatpush1.msra.mxu0 0.0
    %4219 = vmatprep.subr.mxu0 0.0
    %4220 = vmatpush1.msra.mxu0 0.0
    %4221 = vmatprep.subr.mxu0 0.0
    %4222 = vmatpush1.msra.mxu0 0.0
    %4223 = vmatprep.subr.mxu0 0.0
    %4224 = vmatpush1.msra.mxu0 0.0
    %4225 = vmatprep.subr.mxu0 0.0
    %4226 = vmatpush1.msra.mxu0 0.0
    %4227 = vmatprep.subr.mxu0 0.0
    %4228 = vmatpush1.msra.mxu0 0.0
    %4229 = vmatprep.subr.mxu0 0.0
    %4230 = vmatpush1.msra.mxu0 0.0
    %4231 = vmatprep.subr.mxu0 0.0
    %4232 = vmatpush1.msra.mxu0 0.0
    %4233 = vmatprep.subr.mxu0 0.0
    %4234 = vmatpush1.msra.mxu0 0.0
    %4235 = vmatprep.subr.mxu0 0.0
    %4236 = vmatpush1.msra.mxu0 0.0
    %4237 = vmatprep.subr.mxu0 0.0
    %4238 = vmatpush1.msra.mxu0 0.0
    %4239 = vmatprep.subr.mxu0 %v3935
    %4240 = vmatpush1.msra.mxu0 %v3934
    %4241 = vmatprep.subr.mxu0 %v3927
    %4242 = vmatpush1.msra.mxu0 %v3926
    %4243 = vmatprep.subr.mxu0 %v3919
    %4244 = vmatpush1.msra.mxu0 %v3918
    %4245 = vmatprep.subr.mxu0 %v3911
    %4246 = vmatpush1.msra.mxu0 %v3910
    %4247 = vmatprep.subr.mxu0 0.0
    %4248 = vmatpush2.msra.mxu0 0.0
    %4249 = vmatprep.subr.mxu0 0.0
    %4250 = vmatpush2.msra.mxu0 0.0
    %4251 = vmatprep.subr.mxu0 0.0
    %4252 = vmatpush2.msra.mxu0 0.0
    %4253 = vmatprep.subr.mxu0 0.0
    %4254 = vmatpush2.msra.mxu0 0.0
    %4255 = vmatprep.subr.mxu0 0.0
    %4256 = vmatpush2.msra.mxu0 0.0
    %4257 = vmatprep.subr.mxu0 0.0
    %4258 = vmatpush2.msra.mxu0 0.0
    %4259 = vmatprep.subr.mxu0 0.0
    %4260 = vmatpush2.msra.mxu0 0.0
    %4261 = vmatprep.subr.mxu0 0.0
    %4262 = vmatpush2.msra.mxu0 0.0
    %4263 = vmatprep.subr.mxu0 0.0
    %4264 = vmatpush2.msra.mxu0 0.0
    %4265 = vmatprep.subr.mxu0 0.0
    %4266 = vmatpush2.msra.mxu0 0.0
    %4267 = vmatprep.subr.mxu0 0.0
    %4268 = vmatpush2.msra.mxu0 0.0
    %4269 = vmatprep.subr.mxu0 0.0
    %4270 = vmatpush2.msra.mxu0 0.0
    %4271 = vmatprep.subr.mxu0 0.0
    %4272 = vmatpush2.msra.mxu0 0.0
    %4273 = vmatprep.subr.mxu0 0.0
    %4274 = vmatpush2.msra.mxu0 0.0
    %4275 = vmatprep.subr.mxu0 0.0
    %4276 = vmatpush2.msra.mxu0 0.0
    %4277 = vmatprep.subr.mxu0 0.0
    %4278 = vmatpush2.msra.mxu0 0.0
    %4279 = vmatprep.mubr.f32.mxu0 0.0
    %4280 = vmatmul.mubr.f32.gmra.mxu0 %v3979
    %v4281 = vpop.f32.mrf.mxu0
    %v4282 = vadd.f32 %v3965, %v4281
    %v4283 = vpop.f32.mrf.mxu0
    %v4284 = vadd.f32 %v3969, %v4283
    %4285 = vmatprep.mubr.f32.mxu0 0.0
    %4286 = vmatmul.mubr.f32.gmra.mxu0 %v3982
    %v4287 = vpop.f32.mrf.mxu0
    %v4288 = vadd.f32 %v3965, %v4287
    %v4289 = vpop.f32.mrf.mxu0
    %v4290 = vadd.f32 %v3969, %v4289
    %4291 = vdwg.mxu0
    %v4292 = vmax.f32 %v4051, 0.0
    %v4293 = vmax.f32 %v4053, 0.0
    %v4294 = vmax.f32 %v4128, 0.0
    %v4295 = vmax.f32 %v4130, 0.0
    %v4296 = vmax.f32 %v4205, 0.0
    %v4297 = vmax.f32 %v4207, 0.0
    %v4298 = vmax.f32 %v4282, 0.0
    %v4299 = vmax.f32 %v4284, 0.0
    %v4300 = vmax.f32 %v4057, 0.0
    %v4301 = vmax.f32 %v4059, 0.0
    %v4302 = vmax.f32 %v4134, 0.0
    %v4303 = vmax.f32 %v4136, 0.0
    %v4304 = vmax.f32 %v4211, 0.0
    %v4305 = vmax.f32 %v4213, 0.0
    %v4306 = vmax.f32 %v4288, 0.0
    %v4307 = vmax.f32 %v4290, 0.0
    %v4308 = vld [vmem:[%s7] sm:$0xff]
    %v4309 = vld [vmem:[%s7 + $0x8] sm:$0xff]
    %v4310 = vld [vmem:[%s7 + $0x10] sm:$0xff]
    %v4311 = vld [vmem:[%s7 + $0x18] sm:$0xff]
    %v4312 = vld [vmem:[%s7 + $0x20] sm:$0xff]
    %v4313 = vld [vmem:[%s7 + $0x28] sm:$0xff]
    %v4314 = vld [vmem:[%s7 + $0x30] sm:$0xff]
    %v4315 = vld [vmem:[%s7 + $0x38] sm:$0xff]
    %v4316 = vld [vmem:[%s7 + $0x40] sm:$0xff]
    %v4317 = vld [vmem:[%s7 + $0x48] sm:$0xff]
    %v4318 = vld [vmem:[%s7 + $0x50] sm:$0xff]
    %v4319 = vld [vmem:[%s7 + $0x58] sm:$0xff]
    %v4320 = vld [vmem:[%s7 + $0x60] sm:$0xff]
    %v4321 = vld [vmem:[%s7 + $0x68] sm:$0xff]
    %v4322 = vld [vmem:[%s7 + $0x70] sm:$0xff]
    %v4323 = vld [vmem:[%s7 + $0x78] sm:$0xff]
    %v4324 = vld [vmem:[%s7 + $0x80] sm:$0xff]
    %v4325 = vld [vmem:[%s7 + $0x88] sm:$0xff]
    %v4326 = vld [vmem:[%s7 + $0x90] sm:$0xff]
    %v4327 = vld [vmem:[%s7 + $0x98] sm:$0xff]
    %v4328 = vld [vmem:[%s7 + $0xa0] sm:$0xff]
    %v4329 = vld [vmem:[%s7 + $0xa8] sm:$0xff]
    %v4330 = vld [vmem:[%s7 + $0xb0] sm:$0xff]
    %v4331 = vld [vmem:[%s7 + $0xb8] sm:$0xff]
    %v4332 = vld [vmem:[%s7 + $0xc0] sm:$0xff]
    %v4333 = vld [vmem:[%s7 + $0xc8] sm:$0xff]
    %v4334 = vld [vmem:[%s7 + $0xd0] sm:$0xff]
    %v4335 = vld [vmem:[%s7 + $0xd8] sm:$0xff]
    %v4336 = vld [vmem:[%s7 + $0xe0] sm:$0xff]
    %v4337 = vld [vmem:[%s7 + $0xe8] sm:$0xff]
    %v4338 = vld [vmem:[%s7 + $0xf0] sm:$0xff]
    %v4339 = vld [vmem:[%s7 + $0xf8] sm:$0xff]
    %v4340 = vld [vmem:[%s7 + $0x100] sm:$0xff]
    %v4341 = vld [vmem:[%s7 + $0x108] sm:$0xff]
    %v4342 = vld [vmem:[%s7 + $0x110] sm:$0xff]
    %v4343 = vld [vmem:[%s7 + $0x118] sm:$0xff]
    %v4344 = vld [vmem:[%s7 + $0x120] sm:$0xff]
    %v4345 = vld [vmem:[%s7 + $0x128] sm:$0xff]
    %v4346 = vld [vmem:[%s7 + $0x130] sm:$0xff]
    %v4347 = vld [vmem:[%s7 + $0x138] sm:$0xff]
    %v4348 = vld [vmem:[%s7 + $0x140] sm:$0xff]
    %v4349 = vld [vmem:[%s7 + $0x148] sm:$0xff]
    %v4350 = vld [vmem:[%s7 + $0x150] sm:$0xff]
    %v4351 = vld [vmem:[%s7 + $0x158] sm:$0xff]
    %v4352 = vld [vmem:[%s7 + $0x160] sm:$0xff]
    %v4353 = vld [vmem:[%s7 + $0x168] sm:$0xff]
    %v4354 = vld [vmem:[%s7 + $0x170] sm:$0xff]
    %v4355 = vld [vmem:[%s7 + $0x178] sm:$0xff]
    %v4356 = vld [vmem:[%s7 + $0x180] sm:$0xff]
    %v4357 = vld [vmem:[%s7 + $0x188] sm:$0xff]
    %v4358 = vld [vmem:[%s7 + $0x190] sm:$0xff]
    %v4359 = vld [vmem:[%s7 + $0x198] sm:$0xff]
    %v4360 = vld [vmem:[%s7 + $0x1a0] sm:$0xff]
    %v4361 = vld [vmem:[%s7 + $0x1a8] sm:$0xff]
    %v4362 = vld [vmem:[%s7 + $0x1b0] sm:$0xff]
    %v4363 = vld [vmem:[%s7 + $0x1b8] sm:$0xff]
    %v4364 = vld [vmem:[%s7 + $0x1c0] sm:$0xff]
    %v4365 = vld [vmem:[%s7 + $0x1c8] sm:$0xff]
    %v4366 = vld [vmem:[%s7 + $0x1d0] sm:$0xff]
    %v4367 = vld [vmem:[%s7 + $0x1d8] sm:$0xff]
    %v4368 = vld [vmem:[%s7 + $0x1e0] sm:$0xff]
    %v4369 = vld [vmem:[%s7 + $0x1e8] sm:$0xff]
    %v4370 = vld [vmem:[%s7 + $0x1f0] sm:$0xff]
    %v4371 = vld [vmem:[%s7 + $0x1f8] sm:$0xff]
    %v4372 = vld [vmem:[%s7 + $0x200] sm:$0xff]
    %v4373 = vld [vmem:[%s7 + $0x208] sm:$0xff]
    %v4374 = vld [vmem:[%s7 + $0x210] sm:$0xff]
    %v4375 = vld [vmem:[%s7 + $0x218] sm:$0xff]
    %v4376 = vld [vmem:[%s7 + $0x220] sm:$0xff]
    %v4377 = vld [vmem:[%s7 + $0x228] sm:$0xff]
    %v4378 = vld [vmem:[%s7 + $0x230] sm:$0xff]
    %v4379 = vld [vmem:[%s7 + $0x238] sm:$0xff]
    %v4380 = vld [vmem:[%s7 + $0x240] sm:$0xff]
    %v4381 = vld [vmem:[%s7 + $0x248] sm:$0xff]
    %v4382 = vld [vmem:[%s7 + $0x250] sm:$0xff]
    %v4383 = vld [vmem:[%s7 + $0x258] sm:$0xff]
    %v4384 = vld [vmem:[%s7 + $0x260] sm:$0xff]
    %v4385 = vld [vmem:[%s7 + $0x268] sm:$0xff]
    %v4386 = vld [vmem:[%s7 + $0x270] sm:$0xff]
    %v4387 = vld [vmem:[%s7 + $0x278] sm:$0xff]
    %v4388 = vld [vmem:[%s7 + $0x280] sm:$0xff]
    %v4389 = vld [vmem:[%s7 + $0x288] sm:$0xff]
    %v4390 = vld [vmem:[%s7 + $0x290] sm:$0xff]
    %v4391 = vld [vmem:[%s7 + $0x298] sm:$0xff]
    %v4392 = vld [vmem:[%s7 + $0x2a0] sm:$0xff]
    %v4393 = vld [vmem:[%s7 + $0x2a8] sm:$0xff]
    %v4394 = vld [vmem:[%s7 + $0x2b0] sm:$0xff]
    %v4395 = vld [vmem:[%s7 + $0x2b8] sm:$0xff]
    %v4396 = vld [vmem:[%s7 + $0x2c0] sm:$0xff]
    %v4397 = vld [vmem:[%s7 + $0x2c8] sm:$0xff]
    %v4398 = vld [vmem:[%s7 + $0x2d0] sm:$0xff]
    %v4399 = vld [vmem:[%s7 + $0x2d8] sm:$0xff]
    %v4400 = vld [vmem:[%s7 + $0x2e0] sm:$0xff]
    %v4401 = vld [vmem:[%s7 + $0x2e8] sm:$0xff]
    %v4402 = vld [vmem:[%s7 + $0x2f0] sm:$0xff]
    %v4403 = vld [vmem:[%s7 + $0x2f8] sm:$0xff]
    %v4404 = vld [vmem:[%s7 + $0x300] sm:$0xff]
    %v4405 = vld [vmem:[%s7 + $0x308] sm:$0xff]
    %v4406 = vld [vmem:[%s7 + $0x310] sm:$0xff]
    %v4407 = vld [vmem:[%s7 + $0x318] sm:$0xff]
    %v4408 = vld [vmem:[%s7 + $0x320] sm:$0xff]
    %v4409 = vld [vmem:[%s7 + $0x328] sm:$0xff]
    %v4410 = vld [vmem:[%s7 + $0x330] sm:$0xff]
    %v4411 = vld [vmem:[%s7 + $0x338] sm:$0xff]
    %v4412 = vld [vmem:[%s7 + $0x340] sm:$0xff]
    %v4413 = vld [vmem:[%s7 + $0x348] sm:$0xff]
    %v4414 = vld [vmem:[%s7 + $0x350] sm:$0xff]
    %v4415 = vld [vmem:[%s7 + $0x358] sm:$0xff]
    %v4416 = vld [vmem:[%s7 + $0x360] sm:$0xff]
    %v4417 = vld [vmem:[%s7 + $0x368] sm:$0xff]
    %v4418 = vld [vmem:[%s7 + $0x370] sm:$0xff]
    %v4419 = vld [vmem:[%s7 + $0x378] sm:$0xff]
    %v4420 = vld [vmem:[%s7 + $0x380] sm:$0xff]
    %v4421 = vld [vmem:[%s7 + $0x388] sm:$0xff]
    %v4422 = vld [vmem:[%s7 + $0x390] sm:$0xff]
    %v4423 = vld [vmem:[%s7 + $0x398] sm:$0xff]
    %v4424 = vld [vmem:[%s7 + $0x3a0] sm:$0xff]
    %v4425 = vld [vmem:[%s7 + $0x3a8] sm:$0xff]
    %v4426 = vld [vmem:[%s7 + $0x3b0] sm:$0xff]
    %v4427 = vld [vmem:[%s7 + $0x3b8] sm:$0xff]
    %v4428 = vld [vmem:[%s7 + $0x3c0] sm:$0xff]
    %v4429 = vld [vmem:[%s7 + $0x3c8] sm:$0xff]
    %v4430 = vld [vmem:[%s7 + $0x3d0] sm:$0xff]
    %v4431 = vld [vmem:[%s7 + $0x3d8] sm:$0xff]
    %v4432 = vld [vmem:[%s7 + $0x3e0] sm:$0xff]
    %v4433 = vld [vmem:[%s7 + $0x3e8] sm:$0xff]
    %v4434 = vld [vmem:[%s7 + $0x3f0] sm:$0xff]
    %v4435 = vld [vmem:[%s7 + $0x3f8] sm:$0xff]
    %v4436 = vld [vmem:[%s4 + $0xc] sm:$0x1]
    %v4437 = vlaneseq
    %v4438 = vshrl.u32 %v4437, 7
    %v4439 = vsub.s32 0, %v4438
    %v4440 = vrot.slane %v4436, %v4439
    %4441 = vmatprep.subr.mxu0 0.0
    %4442 = vmatpush1.msra.mxu0 %v4323
    %4443 = vmatprep.subr.mxu0 0.0
    %4444 = vmatpush1.msra.mxu0 %v4322
    %4445 = vmatprep.subr.mxu0 0.0
    %4446 = vmatpush1.msra.mxu0 %v4321
    %4447 = vmatprep.subr.mxu0 0.0
    %4448 = vmatpush1.msra.mxu0 %v4320
    %4449 = vmatprep.subr.mxu0 0.0
    %4450 = vmatpush1.msra.mxu0 %v4319
    %4451 = vmatprep.subr.mxu0 0.0
    %4452 = vmatpush1.msra.mxu0 %v4318
    %4453 = vmatprep.subr.mxu0 0.0
    %4454 = vmatpush1.msra.mxu0 %v4317
    %4455 = vmatprep.subr.mxu0 0.0
    %4456 = vmatpush1.msra.mxu0 %v4316
    %4457 = vmatprep.subr.mxu0 0.0
    %4458 = vmatpush1.msra.mxu0 %v4315
    %4459 = vmatprep.subr.mxu0 0.0
    %4460 = vmatpush1.msra.mxu0 %v4314
    %4461 = vmatprep.subr.mxu0 0.0
    %4462 = vmatpush1.msra.mxu0 %v4313
    %4463 = vmatprep.subr.mxu0 0.0
    %4464 = vmatpush1.msra.mxu0 %v4312
    %4465 = vmatprep.subr.mxu0 0.0
    %4466 = vmatpush1.msra.mxu0 %v4311
    %4467 = vmatprep.subr.mxu0 0.0
    %4468 = vmatpush1.msra.mxu0 %v4310
    %4469 = vmatprep.subr.mxu0 0.0
    %4470 = vmatpush1.msra.mxu0 %v4309
    %4471 = vmatprep.subr.mxu0 0.0
    %4472 = vmatpush1.msra.mxu0 %v4308
    %4473 = vmatprep.subr.mxu0 0.0
    %4474 = vmatpush2.msra.mxu0 %v4339
    %4475 = vmatprep.subr.mxu0 0.0
    %4476 = vmatpush2.msra.mxu0 %v4338
    %4477 = vmatprep.subr.mxu0 0.0
    %4478 = vmatpush2.msra.mxu0 %v4337
    %4479 = vmatprep.subr.mxu0 0.0
    %4480 = vmatpush2.msra.mxu0 %v4336
    %4481 = vmatprep.subr.mxu0 0.0
    %4482 = vmatpush2.msra.mxu0 %v4335
    %4483 = vmatprep.subr.mxu0 0.0
    %4484 = vmatpush2.msra.mxu0 %v4334
    %4485 = vmatprep.subr.mxu0 0.0
    %4486 = vmatpush2.msra.mxu0 %v4333
    %4487 = vmatprep.subr.mxu0 0.0
    %4488 = vmatpush2.msra.mxu0 %v4332
    %4489 = vmatprep.subr.mxu0 0.0
    %4490 = vmatpush2.msra.mxu0 %v4331
    %4491 = vmatprep.subr.mxu0 0.0
    %4492 = vmatpush2.msra.mxu0 %v4330
    %4493 = vmatprep.subr.mxu0 0.0
    %4494 = vmatpush2.msra.mxu0 %v4329
    %4495 = vmatprep.subr.mxu0 0.0
    %4496 = vmatpush2.msra.mxu0 %v4328
    %4497 = vmatprep.subr.mxu0 0.0
    %4498 = vmatpush2.msra.mxu0 %v4327
    %4499 = vmatprep.subr.mxu0 0.0
    %4500 = vmatpush2.msra.mxu0 %v4326
    %4501 = vmatprep.subr.mxu0 0.0
    %4502 = vmatpush2.msra.mxu0 %v4325
    %4503 = vmatprep.subr.mxu0 0.0
    %4504 = vmatpush2.msra.mxu0 %v4324
    %4505 = vmatprep.mubr.f32.mxu0 %v4293
    %4506 = vmatmul.mubr.f32.gmra.mxu0 %v4292
    %v4507 = vpop.f32.mrf.mxu0
    %v4508 = vadd.f32 %v4440, %v4507
    %v4509 = vpop.f32.mrf.mxu0
    %4510 = vmatprep.mubr.f32.mxu0 %v4301
    %4511 = vmatmul.mubr.f32.gmra.mxu0 %v4300
    %v4512 = vpop.f32.mrf.mxu0
    %v4513 = vadd.f32 %v4440, %v4512
    %v4514 = vpop.f32.mrf.mxu0
    %4515 = vdwg.mxu0
    %4516 = vmatprep.subr.mxu0 0.0
    %4517 = vmatpush1.msra.mxu0 %v4355
    %4518 = vmatprep.subr.mxu0 0.0
    %4519 = vmatpush1.msra.mxu0 %v4354
    %4520 = vmatprep.subr.mxu0 0.0
    %4521 = vmatpush1.msra.mxu0 %v4353
    %4522 = vmatprep.subr.mxu0 0.0
    %4523 = vmatpush1.msra.mxu0 %v4352
    %4524 = vmatprep.subr.mxu0 0.0
    %4525 = vmatpush1.msra.mxu0 %v4351
    %4526 = vmatprep.subr.mxu0 0.0
    %4527 = vmatpush1.msra.mxu0 %v4350
    %4528 = vmatprep.subr.mxu0 0.0
    %4529 = vmatpush1.msra.mxu0 %v4349
    %4530 = vmatprep.subr.mxu0 0.0
    %4531 = vmatpush1.msra.mxu0 %v4348
    %4532 = vmatprep.subr.mxu0 0.0
    %4533 = vmatpush1.msra.mxu0 %v4347
    %4534 = vmatprep.subr.mxu0 0.0
    %4535 = vmatpush1.msra.mxu0 %v4346
    %4536 = vmatprep.subr.mxu0 0.0
    %4537 = vmatpush1.msra.mxu0 %v4345
    %4538 = vmatprep.subr.mxu0 0.0
    %4539 = vmatpush1.msra.mxu0 %v4344
    %4540 = vmatprep.subr.mxu0 0.0
    %4541 = vmatpush1.msra.mxu0 %v4343
    %4542 = vmatprep.subr.mxu0 0.0
    %4543 = vmatpush1.msra.mxu0 %v4342
    %4544 = vmatprep.subr.mxu0 0.0
    %4545 = vmatpush1.msra.mxu0 %v4341
    %4546 = vmatprep.subr.mxu0 0.0
    %4547 = vmatpush1.msra.mxu0 %v4340
    %4548 = vmatprep.subr.mxu0 0.0
    %4549 = vmatpush2.msra.mxu0 %v4371
    %4550 = vmatprep.subr.mxu0 0.0
    %4551 = vmatpush2.msra.mxu0 %v4370
    %4552 = vmatprep.subr.mxu0 0.0
    %4553 = vmatpush2.msra.mxu0 %v4369
    %4554 = vmatprep.subr.mxu0 0.0
    %4555 = vmatpush2.msra.mxu0 %v4368
    %4556 = vmatprep.subr.mxu0 0.0
    %4557 = vmatpush2.msra.mxu0 %v4367
    %4558 = vmatprep.subr.mxu0 0.0
    %4559 = vmatpush2.msra.mxu0 %v4366
    %4560 = vmatprep.subr.mxu0 0.0
    %4561 = vmatpush2.msra.mxu0 %v4365
    %4562 = vmatprep.subr.mxu0 0.0
    %4563 = vmatpush2.msra.mxu0 %v4364
    %4564 = vmatprep.subr.mxu0 0.0
    %4565 = vmatpush2.msra.mxu0 %v4363
    %4566 = vmatprep.subr.mxu0 0.0
    %4567 = vmatpush2.msra.mxu0 %v4362
    %4568 = vmatprep.subr.mxu0 0.0
    %4569 = vmatpush2.msra.mxu0 %v4361
    %4570 = vmatprep.subr.mxu0 0.0
    %4571 = vmatpush2.msra.mxu0 %v4360
    %4572 = vmatprep.subr.mxu0 0.0
    %4573 = vmatpush2.msra.mxu0 %v4359
    %4574 = vmatprep.subr.mxu0 0.0
    %4575 = vmatpush2.msra.mxu0 %v4358
    %4576 = vmatprep.subr.mxu0 0.0
    %4577 = vmatpush2.msra.mxu0 %v4357
    %4578 = vmatprep.subr.mxu0 0.0
    %4579 = vmatpush2.msra.mxu0 %v4356
    %4580 = vmatprep.mubr.f32.mxu0 %v4295
    %4581 = vmatmul.mubr.f32.gmra.mxu0 %v4294
    %v4582 = vpop.f32.mrf.mxu0
    %v4583 = vadd.f32 %v4508, %v4582
    %v4584 = vpop.f32.mrf.mxu0
    %4585 = vmatprep.mubr.f32.mxu0 %v4303
    %4586 = vmatmul.mubr.f32.gmra.mxu0 %v4302
    %v4587 = vpop.f32.mrf.mxu0
    %v4588 = vadd.f32 %v4513, %v4587
    %v4589 = vpop.f32.mrf.mxu0
    %4590 = vdwg.mxu0
    %4591 = vmatprep.subr.mxu0 0.0
    %4592 = vmatpush1.msra.mxu0 %v4387
    %4593 = vmatprep.subr.mxu0 0.0
    %4594 = vmatpush1.msra.mxu0 %v4386
    %4595 = vmatprep.subr.mxu0 0.0
    %4596 = vmatpush1.msra.mxu0 %v4385
    %4597 = vmatprep.subr.mxu0 0.0
    %4598 = vmatpush1.msra.mxu0 %v4384
    %4599 = vmatprep.subr.mxu0 0.0
    %4600 = vmatpush1.msra.mxu0 %v4383
    %4601 = vmatprep.subr.mxu0 0.0
    %4602 = vmatpush1.msra.mxu0 %v4382
    %4603 = vmatprep.subr.mxu0 0.0
    %4604 = vmatpush1.msra.mxu0 %v4381
    %4605 = vmatprep.subr.mxu0 0.0
    %4606 = vmatpush1.msra.mxu0 %v4380
    %4607 = vmatprep.subr.mxu0 0.0
    %4608 = vmatpush1.msra.mxu0 %v4379
    %4609 = vmatprep.subr.mxu0 0.0
    %4610 = vmatpush1.msra.mxu0 %v4378
    %4611 = vmatprep.subr.mxu0 0.0
    %4612 = vmatpush1.msra.mxu0 %v4377
    %4613 = vmatprep.subr.mxu0 0.0
    %4614 = vmatpush1.msra.mxu0 %v4376
    %4615 = vmatprep.subr.mxu0 0.0
    %4616 = vmatpush1.msra.mxu0 %v4375
    %4617 = vmatprep.subr.mxu0 0.0
    %4618 = vmatpush1.msra.mxu0 %v4374
    %4619 = vmatprep.subr.mxu0 0.0
    %4620 = vmatpush1.msra.mxu0 %v4373
    %4621 = vmatprep.subr.mxu0 0.0
    %4622 = vmatpush1.msra.mxu0 %v4372
    %4623 = vmatprep.subr.mxu0 0.0
    %4624 = vmatpush2.msra.mxu0 %v4403
    %4625 = vmatprep.subr.mxu0 0.0
    %4626 = vmatpush2.msra.mxu0 %v4402
    %4627 = vmatprep.subr.mxu0 0.0
    %4628 = vmatpush2.msra.mxu0 %v4401
    %4629 = vmatprep.subr.mxu0 0.0
    %4630 = vmatpush2.msra.mxu0 %v4400
    %4631 = vmatprep.subr.mxu0 0.0
    %4632 = vmatpush2.msra.mxu0 %v4399
    %4633 = vmatprep.subr.mxu0 0.0
    %4634 = vmatpush2.msra.mxu0 %v4398
    %4635 = vmatprep.subr.mxu0 0.0
    %4636 = vmatpush2.msra.mxu0 %v4397
    %4637 = vmatprep.subr.mxu0 0.0
    %4638 = vmatpush2.msra.mxu0 %v4396
    %4639 = vmatprep.subr.mxu0 0.0
    %4640 = vmatpush2.msra.mxu0 %v4395
    %4641 = vmatprep.subr.mxu0 0.0
    %4642 = vmatpush2.msra.mxu0 %v4394
    %4643 = vmatprep.subr.mxu0 0.0
    %4644 = vmatpush2.msra.mxu0 %v4393
    %4645 = vmatprep.subr.mxu0 0.0
    %4646 = vmatpush2.msra.mxu0 %v4392
    %4647 = vmatprep.subr.mxu0 0.0
    %4648 = vmatpush2.msra.mxu0 %v4391
    %4649 = vmatprep.subr.mxu0 0.0
    %4650 = vmatpush2.msra.mxu0 %v4390
    %4651 = vmatprep.subr.mxu0 0.0
    %4652 = vmatpush2.msra.mxu0 %v4389
    %4653 = vmatprep.subr.mxu0 0.0
    %4654 = vmatpush2.msra.mxu0 %v4388
    %4655 = vmatprep.mubr.f32.mxu0 %v4297
    %4656 = vmatmul.mubr.f32.gmra.mxu0 %v4296
    %v4657 = vpop.f32.mrf.mxu0
    %v4658 = vadd.f32 %v4583, %v4657
    %v4659 = vpop.f32.mrf.mxu0
    %4660 = vmatprep.mubr.f32.mxu0 %v4305
    %4661 = vmatmul.mubr.f32.gmra.mxu0 %v4304
    %v4662 = vpop.f32.mrf.mxu0
    %v4663 = vadd.f32 %v4588, %v4662
    %v4664 = vpop.f32.mrf.mxu0
    %4665 = vdwg.mxu0
    %4666 = vmatprep.subr.mxu0 0.0
    %4667 = vmatpush1.msra.mxu0 %v4419
    %4668 = vmatprep.subr.mxu0 0.0
    %4669 = vmatpush1.msra.mxu0 %v4418
    %4670 = vmatprep.subr.mxu0 0.0
    %4671 = vmatpush1.msra.mxu0 %v4417
    %4672 = vmatprep.subr.mxu0 0.0
    %4673 = vmatpush1.msra.mxu0 %v4416
    %4674 = vmatprep.subr.mxu0 0.0
    %4675 = vmatpush1.msra.mxu0 %v4415
    %4676 = vmatprep.subr.mxu0 0.0
    %4677 = vmatpush1.msra.mxu0 %v4414
    %4678 = vmatprep.subr.mxu0 0.0
    %4679 = vmatpush1.msra.mxu0 %v4413
    %4680 = vmatprep.subr.mxu0 0.0
    %4681 = vmatpush1.msra.mxu0 %v4412
    %4682 = vmatprep.subr.mxu0 0.0
    %4683 = vmatpush1.msra.mxu0 %v4411
    %4684 = vmatprep.subr.mxu0 0.0
    %4685 = vmatpush1.msra.mxu0 %v4410
    %4686 = vmatprep.subr.mxu0 0.0
    %4687 = vmatpush1.msra.mxu0 %v4409
    %4688 = vmatprep.subr.mxu0 0.0
    %4689 = vmatpush1.msra.mxu0 %v4408
    %4690 = vmatprep.subr.mxu0 0.0
    %4691 = vmatpush1.msra.mxu0 %v4407
    %4692 = vmatprep.subr.mxu0 0.0
    %4693 = vmatpush1.msra.mxu0 %v4406
    %4694 = vmatprep.subr.mxu0 0.0
    %4695 = vmatpush1.msra.mxu0 %v4405
    %4696 = vmatprep.subr.mxu0 0.0
    %4697 = vmatpush1.msra.mxu0 %v4404
    %4698 = vmatprep.subr.mxu0 0.0
    %4699 = vmatpush2.msra.mxu0 %v4435
    %4700 = vmatprep.subr.mxu0 0.0
    %4701 = vmatpush2.msra.mxu0 %v4434
    %4702 = vmatprep.subr.mxu0 0.0
    %4703 = vmatpush2.msra.mxu0 %v4433
    %4704 = vmatprep.subr.mxu0 0.0
    %4705 = vmatpush2.msra.mxu0 %v4432
    %4706 = vmatprep.subr.mxu0 0.0
    %4707 = vmatpush2.msra.mxu0 %v4431
    %4708 = vmatprep.subr.mxu0 0.0
    %4709 = vmatpush2.msra.mxu0 %v4430
    %4710 = vmatprep.subr.mxu0 0.0
    %4711 = vmatpush2.msra.mxu0 %v4429
    %4712 = vmatprep.subr.mxu0 0.0
    %4713 = vmatpush2.msra.mxu0 %v4428
    %4714 = vmatprep.subr.mxu0 0.0
    %4715 = vmatpush2.msra.mxu0 %v4427
    %4716 = vmatprep.subr.mxu0 0.0
    %4717 = vmatpush2.msra.mxu0 %v4426
    %4718 = vmatprep.subr.mxu0 0.0
    %4719 = vmatpush2.msra.mxu0 %v4425
    %4720 = vmatprep.subr.mxu0 0.0
    %4721 = vmatpush2.msra.mxu0 %v4424
    %4722 = vmatprep.subr.mxu0 0.0
    %4723 = vmatpush2.msra.mxu0 %v4423
    %4724 = vmatprep.subr.mxu0 0.0
    %4725 = vmatpush2.msra.mxu0 %v4422
    %4726 = vmatprep.subr.mxu0 0.0
    %4727 = vmatpush2.msra.mxu0 %v4421
    %4728 = vmatprep.subr.mxu0 0.0
    %4729 = vmatpush2.msra.mxu0 %v4420
    %4730 = vmatprep.mubr.f32.mxu0 %v4299
    %4731 = vmatmul.mubr.f32.gmra.mxu0 %v4298
    %v4732 = vpop.f32.mrf.mxu0
    %v4733 = vadd.f32 %v4658, %v4732
    %v4734 = vpop.f32.mrf.mxu0
    %4735 = vmatprep.mubr.f32.mxu0 %v4307
    %4736 = vmatmul.mubr.f32.gmra.mxu0 %v4306
    %v4737 = vpop.f32.mrf.mxu0
    %v4738 = vadd.f32 %v4663, %v4737
    %v4739 = vpop.f32.mrf.mxu0
    %4740 = vdwg.mxu0
    %v4741 = vadd.f32 %v3902, %v4733
    %v4742 = vadd.f32 %v3903, %v4738
    %v4743 = vld [vmem:[%s4 + $0xd] sm:$0x1]
    %v4744 = vld [vmem:[%s4 + $0xe] sm:$0x1]
    %v4745 = vsel %vm46, %v4741, 0.0
    %4746 = vadd.xlane.f32.xlu0 %v4745
    %v4747 = vpop.xlane.xlu0 %4746
    %v4748 = vsel %vm46, %v4742, 0.0
    %4749 = vadd.xlane.f32.xlu0 %v4748
    %v4750 = vpop.xlane.xlu0 %4749
    %v4751 = vmul.f32 %v4747, %v2435
    %v4752 = vmul.f32 %v4750, %v2435
    %v4753 = vsub.f32 %v4741, %v4751
    %v4754 = vsub.f32 %v4742, %v4752
    %v4755 = vmul.f32 %v4753, %v4753
    %v4756 = vmul.f32 %v4754, %v4754
    %v4757 = vsel %vm46, %v4755, 0.0
    %4758 = vadd.xlane.f32.xlu0 %v4757
    %v4759 = vpop.xlane.xlu0 %4758
    %v4760 = vsel %vm46, %v4756, 0.0
    %4761 = vadd.xlane.f32.xlu0 %v4760
    %v4762 = vpop.xlane.xlu0 %4761
    %v4763 = vmul.f32 %v4759, %v2435
    %v4764 = vmul.f32 %v4762, %v2435
    %v4765 = vadd.f32 %v4763, 1e-05
    %v4766 = vadd.f32 %v4764, 1e-05
    %v4767 = vrsqrt.pop %v4765
    %v4768 = vrsqrt.pop %v4766
    %v4769 = vmul.f32 %v4753, %v4767
    %v4770 = vmul.f32 %v4754, %v4768
    %v4771 = vlaneseq
    %v4772 = vshrl.u32 %v4771, 7
    %v4773 = vsub.s32 0, %v4772
    %v4774 = vrot.slane %v4743, %v4773
    %v4775 = vmul.f32 %v4769, %v4774
    %v4776 = vmul.f32 %v4770, %v4774
    %v4777 = vlaneseq
    %v4778 = vshrl.u32 %v4777, 7
    %v4779 = vsub.s32 0, %v4778
    %v4780 = vrot.slane %v4744, %v4779
    %v4781 = vadd.f32 %v4775, %v4780
    %v4782 = vadd.f32 %v4776, %v4780
    %4783 = vst.msk [vmem:[#allocation2] sm:$0xff] %vm46, %v4781
    %4784 = vst.msk [vmem:[#allocation2 + $0x8] sm:$0xff] %vm46, %v4782
    // Predicated region
    $region34: #{tpu_custom_call.1} parent=1 // pred_check
      _
    $region35: #{tpu_custom_call.1} parent=1 // pred_check_branch
      %4786 = sbr.rel (0) target = $region37
    $region36: #{tpu_custom_call.1} parent=1 // pred_region
      %s4788 = ssub.s32 256, 256
      %4789 = vsyncadd [#allocation3], %s4788
      %s4790 = sshll.u32 [#allocation2], 4
      %s4791 = int_to_ptr.vmem [resolvable:$true] %s4790
      %4796 = dma.vmem_to_hbm [thread:$0]  %s4791, 256, %s8, [#allocation3], 128, 128, 8
    $region37: #{tpu_custom_call.1} parent=1 // pred_fallthru
      _
    // Predicated region
    $region38: #{tpu_custom_call.1} parent=1 // pred_check
      _
    $region39: #{tpu_custom_call.1} parent=1 // pred_check_branch
      %4798 = sbr.rel (0) target = $region41
    $region40: #{tpu_custom_call.1} parent=1 // pred_region
      %4799 = dma.done [#allocation3], 256
    $region41: #{tpu_custom_call.1} parent=1 // pred_fallthru
      _
    %4800 = vsyncpa [#allocation3], 1

</llo_original>
